<compile_context>
chip_gen: v5e
topology: v5e:2x2
jax: 0.10.0
libtpu: 0.0.40
codegen_flags: <defaults>
</compile_context>

<pallas_src>
import functools

import jax
import jax.numpy as jnp
from jax.experimental import pallas as pl
from jax.experimental.pallas import tpu as pltpu

TM_MAX = 128          # M tile (rows of the im2col matrix)
CHANNELS = [8, 16, 32]


def _round_up(x, m):
    return (x + m - 1) // m * m


# ---------------------------------------------------------------------------
# Pallas kernels: single-K-block matmul + bias + activation (+ fused skip)
# ---------------------------------------------------------------------------
def _apply_act(z, act):
    if act == "relu":
        return jnp.maximum(z, 0.0)
    if act == "sigmoid":
        # EUP approx reciprocal keeps the epilogue off the VALU/store path;
        # clip guards the tiny approx overshoot so the result stays in [0, 1].
        return jnp.clip(pl.reciprocal(1.0 + jnp.exp(-z), approx=True), 0.0, 1.0)
    return z


def _mm_kernel(x_ref, w_ref, b_ref, o_ref, *, act):
    z = jnp.dot(x_ref[...], w_ref[...], preferred_element_type=jnp.float32)
    o_ref[...] = _apply_act(z + b_ref[...], act)


def _mm_skip_kernel(x_ref, w_ref, b_ref, s_ref, o_ref, *, act):
    # r = act(x @ w + bias + skip)   (decoder: deconv + skip-add + ReLU fused)
    z = jnp.dot(x_ref[...], w_ref[...], preferred_element_type=jnp.float32)
    o_ref[...] = _apply_act(z + b_ref[...] + s_ref[...], act)


def _mm_dual_kernel(x_ref, w_ref, b_ref, s_ref, o_ref, sum_ref, *, act):
    # d = act(x @ w + bias); sum = d + skip   (Dblock residual running sum)
    z = jnp.dot(x_ref[...], w_ref[...], preferred_element_type=jnp.float32)
    d = _apply_act(z + b_ref[...], act)
    o_ref[...] = d
    sum_ref[...] = d + s_ref[...]


def matmul_fused(x, w, bias, *, act="none", skip=None, dual=False):
    """(M, K) @ (K, N) + bias [+ skip], fused activation, on the MXU.

    Single full-K block (no reduction grid axis, no scratch accumulator),
    full-N output block (no Cout padding beyond 8 lanes), bf16 MXU inputs,
    f32 accumulate/epilogue. Grid is 1-D over M only ("parallel").
    """
    M, K = x.shape
    N = w.shape[1]
    Mp = _round_up(M, 8)            # tiny (usually no-op) row alignment
    Kp = _round_up(K, 128)          # lane-aligned contraction (zero padded)
    Np = _round_up(N, 8)            # only Cout=1 is padded (to 8)

    if (Mp, Kp) != (M, K):
        x = jnp.pad(x, ((0, Mp - M), (0, Kp - K)))
    if (Kp, Np) != (K, N):
        w = jnp.pad(w, ((0, Kp - K), (0, Np - N)))
    if Np != N:
        bias = jnp.pad(bias, (0, Np - N))
    if skip is not None:
        skip = skip.astype(jnp.float32)
        if (Mp, Np) != (M, N):
            skip = jnp.pad(skip, ((0, Mp - M), (0, Np - N)))

    x = x.astype(jnp.bfloat16)
    w = w.astype(jnp.bfloat16)
    b2 = bias.astype(jnp.float32).reshape(1, Np)

    tm = min(TM_MAX, Mp)
    grid = (pl.cdiv(Mp, tm),)

    in_specs = [
        pl.BlockSpec((tm, Kp), lambda i: (i, 0)),
        pl.BlockSpec((Kp, Np), lambda i: (0, 0)),
        pl.BlockSpec((1, Np), lambda i: (0, 0)),
    ]
    args = [x, w, b2]
    if skip is not None:
        in_specs.append(pl.BlockSpec((tm, Np), lambda i: (i, 0)))
        args.append(skip)

    o_spec = pl.BlockSpec((tm, Np), lambda i: (i, 0))
    if dual:
        kernel = functools.partial(_mm_dual_kernel, act=act)
        out_shape = (jax.ShapeDtypeStruct((Mp, Np), jnp.float32),
                     jax.ShapeDtypeStruct((Mp, Np), jnp.float32))
        out_specs = (o_spec, o_spec)
    elif skip is not None:
        kernel = functools.partial(_mm_skip_kernel, act=act)
        out_shape = jax.ShapeDtypeStruct((Mp, Np), jnp.float32)
        out_specs = o_spec
    else:
        kernel = functools.partial(_mm_kernel, act=act)
        out_shape = jax.ShapeDtypeStruct((Mp, Np), jnp.float32)
        out_specs = o_spec

    out = pl.pallas_call(
        kernel,
        out_shape=out_shape,
        grid=grid,
        in_specs=in_specs,
        out_specs=out_specs,
        compiler_params=pltpu.CompilerParams(
            dimension_semantics=("parallel",)),
    )(*args)

    def _trim(a):
        return a[:M, :N] if (Mp, Np) != (M, N) else a

    if dual:
        return _trim(out[0]), _trim(out[1])
    return _trim(out)


# ---------------------------------------------------------------------------
# Conv / ConvTranspose wrappers (NHWC; im2col glue fuses in XLA under jit)
# ---------------------------------------------------------------------------
def _im2col(x, kh, kw, stride, dilation, padding):
    """NHWC im2col -> (N*Ho*Wo, kh*kw*C); rows (n, ho, wo), K ordered (kh, kw, c)."""
    Nb, H, W, C = x.shape
    xp = jnp.pad(x, ((0, 0), (padding, padding), (padding, padding), (0, 0)))
    Ho = (H + 2 * padding - dilation * (kh - 1) - 1) // stride + 1
    Wo = (W + 2 * padding - dilation * (kw - 1) - 1) // stride + 1
    cols = []
    for di in range(kh):
        for dj in range(kw):
            hs, ws = di * dilation, dj * dilation
            cols.append(xp[:, hs: hs + stride * (Ho - 1) + 1: stride,
                              ws: ws + stride * (Wo - 1) + 1: stride, :])
    p = jnp.stack(cols, axis=3)                    # (N, Ho, Wo, kh*kw, C)
    return p.reshape(Nb * Ho * Wo, kh * kw * C), Nb, Ho, Wo


def conv2d(x, w, bias, *, stride=1, dilation=1, padding=0, act="none",
           skip=None, dual=False):
    """NHWC conv; w is PyTorch-layout (Cout, Cin, kh, kw); skip fused in epilogue."""
    Cout, Cin, kh, kw = w.shape
    patches, Nb, Ho, Wo = _im2col(x, kh, kw, stride, dilation, padding)
    wm = w.transpose(2, 3, 1, 0).reshape(kh * kw * Cin, Cout)   # K=(kh,kw,cin)
    skip2 = None if skip is None else skip.reshape(-1, Cout)
    out = matmul_fused(patches, wm, bias, act=act, skip=skip2, dual=dual)
    if dual:
        d, s = out
        return d.reshape(Nb, Ho, Wo, Cout), s.reshape(Nb, Ho, Wo, Cout)
    return out.reshape(Nb, Ho, Wo, Cout)


# output-row parity -> ((3x3 patch position, deconv kernel tap), ...)
_TAPS = {0: ((0, 3), (1, 1)), 1: ((1, 2), (2, 0))}


def conv_transpose2d(x, w, bias, *, act="none", skip=None):
    """ConvTranspose2d(k=4, s=2, p=1) as ONE packed stride-1 3x3 conv (sub-pixel).

    w: (Cin, Cout, 4, 4) PyTorch ConvTranspose layout. The matmul N axis packs
    (sub_row, sub_col, Cout) -> 4*Cout lanes; result is pixel-shuffled to 2x
    resolution. No zero-insertion / scatter. Skip (NHWC, 2x-resolution) + act
    are fused into the matmul epilogue.
    """
    Cin, Cout, _, _ = w.shape
    Nb, H, W, _ = x.shape

    wd = jnp.zeros((3, 3, Cin, 4, Cout), jnp.float32)
    for a in (0, 1):
        for c in (0, 1):
            for ph, ki in _TAPS[a]:
                for pw, kj in _TAPS[c]:
                    wd = wd.at[ph, pw, :, a * 2 + c, :].set(w[:, :, ki, kj])
    wd = wd.reshape(9 * Cin, 4 * Cout)
    bd = jnp.tile(bias, 4)

    patches, _, _, _ = _im2col(x, 3, 3, 1, 1, 1)       # (Nb*H*W, 9*Cin)

    skip2 = None
    if skip is not None:                               # (Nb, 2H, 2W, Cout)
        skip2 = skip.reshape(Nb, H, 2, W, 2, Cout).transpose(0, 1, 3, 2, 4, 5)
        skip2 = skip2.reshape(Nb * H * W, 4 * Cout)

    out = matmul_fused(patches, wd, bd, act=act, skip=skip2)   # (M, 4*Cout)
    out = out.reshape(Nb, H, W, 2, 2, Cout).transpose(0, 1, 3, 2, 4, 5)
    return out.reshape(Nb, 2 * H, 2 * W, Cout)


# ---------------------------------------------------------------------------
# Deterministic parameter construction (shapes per the module __init__)
# ---------------------------------------------------------------------------
def _conv_params(key, cout, cin, k):
    kw_, kb = jax.random.split(key)
    w = jax.random.normal(kw_, (cout, cin, k, k), jnp.float32)
    w = w * (1.0 / (cin * k * k) ** 0.5)
    b = jax.random.normal(kb, (cout,), jnp.float32) * 0.01
    return w, b


def _deconv_params(key, cin, cout, k):
    kw_, kb = jax.random.split(key)
    w = jax.random.normal(kw_, (cin, cout, k, k), jnp.float32)
    w = w * (1.0 / (cin * k * k) ** 0.5)
    b = jax.random.normal(kb, (cout,), jnp.float32) * 0.01
    return w, b


def init_params(key):
    keys = iter(jax.random.split(key, 32))
    params = {}
    # backbone stages  (TODO(synk): ABackbone is abstract; synthesized here)
    bb = []
    cin = 3
    for c in CHANNELS:
        bb.append(_conv_params(next(keys), c, cin, 3))
        cin = c
    params["backbone"] = bb
    # dblock: 4 chained dilated 3x3 convs on channels[-1]
    cl = CHANNELS[-1]
    params["dblock"] = [_conv_params(next(keys), cl, cl, 3) for _ in range(4)]
    # decoder up-blocks (ups[0] unused in forward -> skipped)
    ups = {}
    for i in range(1, len(CHANNELS)):
        ups[i] = _deconv_params(next(keys), CHANNELS[i], CHANNELS[i - 1], 4)
    params["ups"] = ups
    # final head
    params["final_deconv"] = _deconv_params(next(keys), CHANNELS[0], 32, 4)
    params["final_conv1"] = _conv_params(next(keys), 32, 32, 3)
    params["final_conv2"] = _conv_params(next(keys), 1, 32, 3)
    return params


# ---------------------------------------------------------------------------
# DLinkNet forward
# ---------------------------------------------------------------------------
def dlinknet_forward(params, x):
    h = x.transpose(0, 2, 3, 1)                 # NCHW -> NHWC internal layout

    # backbone
    outs = []
    for (w, b) in params["backbone"]:
        h = conv2d(h, w, b, stride=2, padding=1, act="relu")
        outs.append(h)

    # dilated center block: out = x + d1 + d2 + d3 + d4
    # (running sum fused into each conv's epilogue via the dual-output kernel)
    d = outs[-1]
    run = outs[-1]
    dil = 1
    for (w, b) in params["dblock"]:
        d, run = conv2d(d, w, b, stride=1, dilation=dil, padding=dil,
                        act="relu", skip=run, dual=True)
        dil *= 2
    bfeat = run

    # decoder with skip connections (reversed(outs[:-1]) zipped with ups)
    # TODO(synk): up_block_ctor is injected; synthesized as deconv + add + relu
    for i in range(len(CHANNELS) - 1, 0, -1):
        w, b = params["ups"][i]
        bfeat = conv_transpose2d(bfeat, w, b, act="relu", skip=outs[i - 1])

    # final head
    w, b = params["final_deconv"]
    h = conv_transpose2d(bfeat, w, b, act="relu")
    w, b = params["final_conv1"]
    h = conv2d(h, w, b, stride=1, padding=1, act="relu")
    w, b = params["final_conv2"]
    h = conv2d(h, w, b, stride=1, padding=1, act="sigmoid")
    return h.transpose(0, 3, 1, 2)              # NHWC -> NCHW


if __name__ == "__main__":
    key = jax.random.PRNGKey(0)
    kp, kx = jax.random.split(key)
    params = init_params(kp)
    x = jax.random.normal(kx, (2, 3, 16, 16), jnp.float32)

    fwd = jax.jit(dlinknet_forward)
    y = fwd(params, x)
    y = jax.block_until_ready(y)

    assert y.shape == (2, 1, 16, 16), y.shape
    assert bool(jnp.all(jnp.isfinite(y)))
    assert bool(jnp.all((y >= 0.0) & (y <= 1.0)))
    print("KERNEL_OK")
</pallas_src>

<mosaic_0001>
module attributes {stable_mosaic.version = 11 : i64} {
  func.func @_mm_kernel(%arg0: i32, %arg1: memref<128x128xbf16, #tpu.memory_space<vmem>>, %arg2: memref<128x8xbf16, #tpu.memory_space<vmem>>, %arg3: memref<1x8xf32, #tpu.memory_space<vmem>>, %arg4: memref<128x8xf32, #tpu.memory_space<vmem>>) attributes {dimension_semantics = [#tpu.dimension_semantics<parallel>], iteration_bounds = array<i64: 1>, scalar_prefetch = 0 : i64, scratch_operands = 0 : i64, tpu.core_type = #tpu.core_type<tc>, window_params = [{transform_indices = @transform_0, window_bounds = array<i64: 128, 128>}, {pipeline_mode = #tpu.pipeline_mode<synchronous>, transform_indices = @transform_1, window_bounds = array<i64: 128, 8>}, {pipeline_mode = #tpu.pipeline_mode<synchronous>, transform_indices = @transform_2, window_bounds = array<i64: 1, 8>}, {transform_indices = @transform_3, window_bounds = array<i64: 128, 8>}]} {
    %c0 = arith.constant 0 : index
    %c0_0 = arith.constant 0 : index
    %0 = vector.load %arg1[%c0, %c0_0] : memref<128x128xbf16, #tpu.memory_space<vmem>>, vector<128x128xbf16>
    %c0_1 = arith.constant 0 : index
    %c0_2 = arith.constant 0 : index
    %1 = vector.load %arg2[%c0_1, %c0_2] : memref<128x8xbf16, #tpu.memory_space<vmem>>, vector<128x8xbf16>
    %cst = arith.constant dense<0.000000e+00> : vector<128x8xf32>
    %2 = tpu.matmul %0, %1, %cst {dimension_numbers = #tpu.dot_dimension_numbers<[1], [0], [0], [1], [0, 0, 1, 1], [], []>} : vector<128x128xbf16>, vector<128x8xbf16>, vector<128x8xf32> -> vector<128x8xf32>
    %c0_3 = arith.constant 0 : index
    %c0_4 = arith.constant 0 : index
    %3 = vector.load %arg3[%c0_3, %c0_4] : memref<1x8xf32, #tpu.memory_space<vmem>>, vector<1x8xf32>
    %4 = vector.broadcast %3 : vector<1x8xf32> to vector<128x8xf32>
    %5 = arith.addf %2, %4 : vector<128x8xf32>
    %cst_5 = arith.constant 0.000000e+00 : f32
    %6 = vector.broadcast %cst_5 : f32 to vector<128x8xf32>
    %7 = arith.maximumf %5, %6 : vector<128x8xf32>
    %c0_6 = arith.constant 0 : index
    %c0_7 = arith.constant 0 : index
    %8 = vector.load %arg4[%c0_6, %c0_7] : memref<128x8xf32, #tpu.memory_space<vmem>>, vector<128x8xf32>
    tpu.vector_store %arg4[%c0_6, %c0_7], %7 {strides = array<i32>} : memref<128x8xf32, #tpu.memory_space<vmem>>, vector<128x8xf32>,
    return
  }
  func.func @transform_0(%arg0: i32) -> (i32, i32) {
    %c0_i32 = arith.constant 0 : i32
    %c0_i32_0 = arith.constant 0 : i32
    return %arg0, %c0_i32 : i32, i32
  }
  func.func @transform_1(%arg0: i32) -> (i32, i32) {
    %c0_i32 = arith.constant 0 : i32
    %c0_i32_0 = arith.constant 0 : i32
    %c0_i32_1 = arith.constant 0 : i32
    return %c0_i32, %c0_i32_0 : i32, i32
  }
  func.func @transform_2(%arg0: i32) -> (i32, i32) {
    %c0_i32 = arith.constant 0 : i32
    %c0_i32_0 = arith.constant 0 : i32
    %c0_i32_1 = arith.constant 0 : i32
    return %c0_i32, %c0_i32_0 : i32, i32
  }
  func.func @transform_3(%arg0: i32) -> (i32, i32) {
    %c0_i32 = arith.constant 0 : i32
    %c0_i32_0 = arith.constant 0 : i32
    return %arg0, %c0_i32 : i32, i32
  }
}

module attributes {stable_mosaic.version = 11 : i64} {
  func.func @_mm_kernel(%arg0: i32, %arg1: memref<32x128xbf16, #tpu.memory_space<vmem>>, %arg2: memref<128x16xbf16, #tpu.memory_space<vmem>>, %arg3: memref<1x16xf32, #tpu.memory_space<vmem>>, %arg4: memref<32x16xf32, #tpu.memory_space<vmem>>) attributes {dimension_semantics = [#tpu.dimension_semantics<parallel>], iteration_bounds = array<i64: 1>, scalar_prefetch = 0 : i64, scratch_operands = 0 : i64, tpu.core_type = #tpu.core_type<tc>, window_params = [{transform_indices = @transform_0, window_bounds = array<i64: 32, 128>}, {pipeline_mode = #tpu.pipeline_mode<synchronous>, transform_indices = @transform_1, window_bounds = array<i64: 128, 16>}, {pipeline_mode = #tpu.pipeline_mode<synchronous>, transform_indices = @transform_2, window_bounds = array<i64: 1, 16>}, {transform_indices = @transform_3, window_bounds = array<i64: 32, 16>}]} {
    %c0 = arith.constant 0 : index
    %c0_0 = arith.constant 0 : index
    %0 = vector.load %arg1[%c0, %c0_0] : memref<32x128xbf16, #tpu.memory_space<vmem>>, vector<32x128xbf16>
    %c0_1 = arith.constant 0 : index
    %c0_2 = arith.constant 0 : index
    %1 = vector.load %arg2[%c0_1, %c0_2] : memref<128x16xbf16, #tpu.memory_space<vmem>>, vector<128x16xbf16>
    %cst = arith.constant dense<0.000000e+00> : vector<32x16xf32>
    %2 = tpu.matmul %0, %1, %cst {dimension_numbers = #tpu.dot_dimension_numbers<[1], [0], [0], [1], [0, 0, 1, 1], [], []>} : vector<32x128xbf16>, vector<128x16xbf16>, vector<32x16xf32> -> vector<32x16xf32>
    %c0_3 = arith.constant 0 : index
    %c0_4 = arith.constant 0 : index
    %3 = vector.load %arg3[%c0_3, %c0_4] : memref<1x16xf32, #tpu.memory_space<vmem>>, vector<1x16xf32>
    %4 = vector.broadcast %3 : vector<1x16xf32> to vector<32x16xf32>
    %5 = arith.addf %2, %4 : vector<32x16xf32>
    %cst_5 = arith.constant 0.000000e+00 : f32
    %6 = vector.broadcast %cst_5 : f32 to vector<32x16xf32>
    %7 = arith.maximumf %5, %6 : vector<32x16xf32>
    %c0_6 = arith.constant 0 : index
    %c0_7 = arith.constant 0 : index
    %8 = vector.load %arg4[%c0_6, %c0_7] : memref<32x16xf32, #tpu.memory_space<vmem>>, vector<32x16xf32>
    tpu.vector_store %arg4[%c0_6, %c0_7], %7 {strides = array<i32>} : memref<32x16xf32, #tpu.memory_space<vmem>>, vector<32x16xf32>,
    return
  }
  func.func @transform_0(%arg0: i32) -> (i32, i32) {
    %c0_i32 = arith.constant 0 : i32
    %c0_i32_0 = arith.constant 0 : i32
    return %arg0, %c0_i32 : i32, i32
  }
  func.func @transform_1(%arg0: i32) -> (i32, i32) {
    %c0_i32 = arith.constant 0 : i32
    %c0_i32_0 = arith.constant 0 : i32
    %c0_i32_1 = arith.constant 0 : i32
    return %c0_i32, %c0_i32_0 : i32, i32
  }
  func.func @transform_2(%arg0: i32) -> (i32, i32) {
    %c0_i32 = arith.constant 0 : i32
    %c0_i32_0 = arith.constant 0 : i32
    %c0_i32_1 = arith.constant 0 : i32
    return %c0_i32, %c0_i32_0 : i32, i32
  }
  func.func @transform_3(%arg0: i32) -> (i32, i32) {
    %c0_i32 = arith.constant 0 : i32
    %c0_i32_0 = arith.constant 0 : i32
    return %arg0, %c0_i32 : i32, i32
  }
}

module attributes {stable_mosaic.version = 11 : i64} {
  func.func @_mm_kernel(%arg0: i32, %arg1: memref<8x256xbf16, #tpu.memory_space<vmem>>, %arg2: memref<256x32xbf16, #tpu.memory_space<vmem>>, %arg3: memref<1x32xf32, #tpu.memory_space<vmem>>, %arg4: memref<8x32xf32, #tpu.memory_space<vmem>>) attributes {dimension_semantics = [#tpu.dimension_semantics<parallel>], iteration_bounds = array<i64: 1>, scalar_prefetch = 0 : i64, scratch_operands = 0 : i64, tpu.core_type = #tpu.core_type<tc>, window_params = [{transform_indices = @transform_0, window_bounds = array<i64: 8, 256>}, {pipeline_mode = #tpu.pipeline_mode<synchronous>, transform_indices = @transform_1, window_bounds = array<i64: 256, 32>}, {pipeline_mode = #tpu.pipeline_mode<synchronous>, transform_indices = @transform_2, window_bounds = array<i64: 1, 32>}, {transform_indices = @transform_3, window_bounds = array<i64: 8, 32>}]} {
    %c0 = arith.constant 0 : index
    %c0_0 = arith.constant 0 : index
    %0 = vector.load %arg1[%c0, %c0_0] : memref<8x256xbf16, #tpu.memory_space<vmem>>, vector<8x256xbf16>
    %c0_1 = arith.constant 0 : index
    %c0_2 = arith.constant 0 : index
    %1 = vector.load %arg2[%c0_1, %c0_2] : memref<256x32xbf16, #tpu.memory_space<vmem>>, vector<256x32xbf16>
    %cst = arith.constant dense<0.000000e+00> : vector<8x32xf32>
    %2 = tpu.matmul %0, %1, %cst {dimension_numbers = #tpu.dot_dimension_numbers<[1], [0], [0], [1], [0, 0, 1, 1], [], []>} : vector<8x256xbf16>, vector<256x32xbf16>, vector<8x32xf32> -> vector<8x32xf32>
    %c0_3 = arith.constant 0 : index
    %c0_4 = arith.constant 0 : index
    %3 = vector.load %arg3[%c0_3, %c0_4] : memref<1x32xf32, #tpu.memory_space<vmem>>, vector<1x32xf32>
    %4 = vector.broadcast %3 : vector<1x32xf32> to vector<8x32xf32>
    %5 = arith.addf %2, %4 : vector<8x32xf32>
    %cst_5 = arith.constant 0.000000e+00 : f32
    %6 = vector.broadcast %cst_5 : f32 to vector<8x32xf32>
    %7 = arith.maximumf %5, %6 : vector<8x32xf32>
    %c0_6 = arith.constant 0 : index
    %c0_7 = arith.constant 0 : index
    %8 = vector.load %arg4[%c0_6, %c0_7] : memref<8x32xf32, #tpu.memory_space<vmem>>, vector<8x32xf32>
    tpu.vector_store %arg4[%c0_6, %c0_7], %7 {strides = array<i32>} : memref<8x32xf32, #tpu.memory_space<vmem>>, vector<8x32xf32>,
    return
  }
  func.func @transform_0(%arg0: i32) -> (i32, i32) {
    %c0_i32 = arith.constant 0 : i32
    %c0_i32_0 = arith.constant 0 : i32
    return %arg0, %c0_i32 : i32, i32
  }
  func.func @transform_1(%arg0: i32) -> (i32, i32) {
    %c0_i32 = arith.constant 0 : i32
    %c0_i32_0 = arith.constant 0 : i32
    %c0_i32_1 = arith.constant 0 : i32
    return %c0_i32, %c0_i32_0 : i32, i32
  }
  func.func @transform_2(%arg0: i32) -> (i32, i32) {
    %c0_i32 = arith.constant 0 : i32
    %c0_i32_0 = arith.constant 0 : i32
    %c0_i32_1 = arith.constant 0 : i32
    return %c0_i32, %c0_i32_0 : i32, i32
  }
  func.func @transform_3(%arg0: i32) -> (i32, i32) {
    %c0_i32 = arith.constant 0 : i32
    %c0_i32_0 = arith.constant 0 : i32
    return %arg0, %c0_i32 : i32, i32
  }
}

module attributes {stable_mosaic.version = 11 : i64} {
  func.func @_mm_dual_kernel(%arg0: i32, %arg1: memref<8x384xbf16, #tpu.memory_space<vmem>>, %arg2: memref<384x32xbf16, #tpu.memory_space<vmem>>, %arg3: memref<1x32xf32, #tpu.memory_space<vmem>>, %arg4: memref<8x32xf32, #tpu.memory_space<vmem>>, %arg5: memref<8x32xf32, #tpu.memory_space<vmem>>, %arg6: memref<8x32xf32, #tpu.memory_space<vmem>>) attributes {dimension_semantics = [#tpu.dimension_semantics<parallel>], iteration_bounds = array<i64: 1>, scalar_prefetch = 0 : i64, scratch_operands = 0 : i64, tpu.core_type = #tpu.core_type<tc>, window_params = [{transform_indices = @transform_0, window_bounds = array<i64: 8, 384>}, {pipeline_mode = #tpu.pipeline_mode<synchronous>, transform_indices = @transform_1, window_bounds = array<i64: 384, 32>}, {pipeline_mode = #tpu.pipeline_mode<synchronous>, transform_indices = @transform_2, window_bounds = array<i64: 1, 32>}, {transform_indices = @transform_3, window_bounds = array<i64: 8, 32>}, {transform_indices = @transform_4, window_bounds = array<i64: 8, 32>}, {transform_indices = @transform_5, window_bounds = array<i64: 8, 32>}]} {
    %c0 = arith.constant 0 : index
    %c0_0 = arith.constant 0 : index
    %0 = vector.load %arg1[%c0, %c0_0] : memref<8x384xbf16, #tpu.memory_space<vmem>>, vector<8x384xbf16>
    %c0_1 = arith.constant 0 : index
    %c0_2 = arith.constant 0 : index
    %1 = vector.load %arg2[%c0_1, %c0_2] : memref<384x32xbf16, #tpu.memory_space<vmem>>, vector<384x32xbf16>
    %cst = arith.constant dense<0.000000e+00> : vector<8x32xf32>
    %2 = tpu.matmul %0, %1, %cst {dimension_numbers = #tpu.dot_dimension_numbers<[1], [0], [0], [1], [0, 0, 1, 1], [], []>} : vector<8x384xbf16>, vector<384x32xbf16>, vector<8x32xf32> -> vector<8x32xf32>
    %c0_3 = arith.constant 0 : index
    %c0_4 = arith.constant 0 : index
    %3 = vector.load %arg3[%c0_3, %c0_4] : memref<1x32xf32, #tpu.memory_space<vmem>>, vector<1x32xf32>
    %4 = vector.broadcast %3 : vector<1x32xf32> to vector<8x32xf32>
    %5 = arith.addf %2, %4 : vector<8x32xf32>
    %cst_5 = arith.constant 0.000000e+00 : f32
    %6 = vector.broadcast %cst_5 : f32 to vector<8x32xf32>
    %7 = arith.maximumf %5, %6 : vector<8x32xf32>
    %c0_6 = arith.constant 0 : index
    %c0_7 = arith.constant 0 : index
    %8 = vector.load %arg5[%c0_6, %c0_7] : memref<8x32xf32, #tpu.memory_space<vmem>>, vector<8x32xf32>
    tpu.vector_store %arg5[%c0_6, %c0_7], %7 {strides = array<i32>} : memref<8x32xf32, #tpu.memory_space<vmem>>, vector<8x32xf32>,
    %c0_8 = arith.constant 0 : index
    %c0_9 = arith.constant 0 : index
    %9 = vector.load %arg4[%c0_8, %c0_9] : memref<8x32xf32, #tpu.memory_space<vmem>>, vector<8x32xf32>
    %10 = arith.addf %7, %9 : vector<8x32xf32>
    %c0_10 = arith.constant 0 : index
    %c0_11 = arith.constant 0 : index
    %11 = vector.load %arg6[%c0_10, %c0_11] : memref<8x32xf32, #tpu.memory_space<vmem>>, vector<8x32xf32>
    tpu.vector_store %arg6[%c0_10, %c0_11], %10 {strides = array<i32>} : memref<8x32xf32, #tpu.memory_space<vmem>>, vector<8x32xf32>,
    return
  }
  func.func @transform_0(%arg0: i32) -> (i32, i32) {
    %c0_i32 = arith.constant 0 : i32
    %c0_i32_0 = arith.constant 0 : i32
    return %arg0, %c0_i32 : i32, i32
  }
  func.func @transform_1(%arg0: i32) -> (i32, i32) {
    %c0_i32 = arith.constant 0 : i32
    %c0_i32_0 = arith.constant 0 : i32
    %c0_i32_1 = arith.constant 0 : i32
    return %c0_i32, %c0_i32_0 : i32, i32
  }
  func.func @transform_2(%arg0: i32) -> (i32, i32) {
    %c0_i32 = arith.constant 0 : i32
    %c0_i32_0 = arith.constant 0 : i32
    %c0_i32_1 = arith.constant 0 : i32
    return %c0_i32, %c0_i32_0 : i32, i32
  }
  func.func @transform_3(%arg0: i32) -> (i32, i32) {
    %c0_i32 = arith.constant 0 : i32
    %c0_i32_0 = arith.constant 0 : i32
    return %arg0, %c0_i32 : i32, i32
  }
  func.func @transform_4(%arg0: i32) -> (i32, i32) {
    %c0_i32 = arith.constant 0 : i32
    %c0_i32_0 = arith.constant 0 : i32
    return %arg0, %c0_i32 : i32, i32
  }
  func.func @transform_5(%arg0: i32) -> (i32, i32) {
    %c0_i32 = arith.constant 0 : i32
    %c0_i32_0 = arith.constant 0 : i32
    return %arg0, %c0_i32 : i32, i32
  }
}

module attributes {stable_mosaic.version = 11 : i64} {
  func.func @_mm_dual_kernel(%arg0: i32, %arg1: memref<8x384xbf16, #tpu.memory_space<vmem>>, %arg2: memref<384x32xbf16, #tpu.memory_space<vmem>>, %arg3: memref<1x32xf32, #tpu.memory_space<vmem>>, %arg4: memref<8x32xf32, #tpu.memory_space<vmem>>, %arg5: memref<8x32xf32, #tpu.memory_space<vmem>>, %arg6: memref<8x32xf32, #tpu.memory_space<vmem>>) attributes {dimension_semantics = [#tpu.dimension_semantics<parallel>], iteration_bounds = array<i64: 1>, scalar_prefetch = 0 : i64, scratch_operands = 0 : i64, tpu.core_type = #tpu.core_type<tc>, window_params = [{transform_indices = @transform_0, window_bounds = array<i64: 8, 384>}, {pipeline_mode = #tpu.pipeline_mode<synchronous>, transform_indices = @transform_1, window_bounds = array<i64: 384, 32>}, {pipeline_mode = #tpu.pipeline_mode<synchronous>, transform_indices = @transform_2, window_bounds = array<i64: 1, 32>}, {transform_indices = @transform_3, window_bounds = array<i64: 8, 32>}, {transform_indices = @transform_4, window_bounds = array<i64: 8, 32>}, {transform_indices = @transform_5, window_bounds = array<i64: 8, 32>}]} {
    %c0 = arith.constant 0 : index
    %c0_0 = arith.constant 0 : index
    %0 = vector.load %arg1[%c0, %c0_0] : memref<8x384xbf16, #tpu.memory_space<vmem>>, vector<8x384xbf16>
    %c0_1 = arith.constant 0 : index
    %c0_2 = arith.constant 0 : index
    %1 = vector.load %arg2[%c0_1, %c0_2] : memref<384x32xbf16, #tpu.memory_space<vmem>>, vector<384x32xbf16>
    %cst = arith.constant dense<0.000000e+00> : vector<8x32xf32>
    %2 = tpu.matmul %0, %1, %cst {dimension_numbers = #tpu.dot_dimension_numbers<[1], [0], [0], [1], [0, 0, 1, 1], [], []>} : vector<8x384xbf16>, vector<384x32xbf16>, vector<8x32xf32> -> vector<8x32xf32>
    %c0_3 = arith.constant 0 : index
    %c0_4 = arith.constant 0 : index
    %3 = vector.load %arg3[%c0_3, %c0_4] : memref<1x32xf32, #tpu.memory_space<vmem>>, vector<1x32xf32>
    %4 = vector.broadcast %3 : vector<1x32xf32> to vector<8x32xf32>
    %5 = arith.addf %2, %4 : vector<8x32xf32>
    %cst_5 = arith.constant 0.000000e+00 : f32
    %6 = vector.broadcast %cst_5 : f32 to vector<8x32xf32>
    %7 = arith.maximumf %5, %6 : vector<8x32xf32>
    %c0_6 = arith.constant 0 : index
    %c0_7 = arith.constant 0 : index
    %8 = vector.load %arg5[%c0_6, %c0_7] : memref<8x32xf32, #tpu.memory_space<vmem>>, vector<8x32xf32>
    tpu.vector_store %arg5[%c0_6, %c0_7], %7 {strides = array<i32>} : memref<8x32xf32, #tpu.memory_space<vmem>>, vector<8x32xf32>,
    %c0_8 = arith.constant 0 : index
    %c0_9 = arith.constant 0 : index
    %9 = vector.load %arg4[%c0_8, %c0_9] : memref<8x32xf32, #tpu.memory_space<vmem>>, vector<8x32xf32>
    %10 = arith.addf %7, %9 : vector<8x32xf32>
    %c0_10 = arith.constant 0 : index
    %c0_11 = arith.constant 0 : index
    %11 = vector.load %arg6[%c0_10, %c0_11] : memref<8x32xf32, #tpu.memory_space<vmem>>, vector<8x32xf32>
    tpu.vector_store %arg6[%c0_10, %c0_11], %10 {strides = array<i32>} : memref<8x32xf32, #tpu.memory_space<vmem>>, vector<8x32xf32>,
    return
  }
  func.func @transform_0(%arg0: i32) -> (i32, i32) {
    %c0_i32 = arith.constant 0 : i32
    %c0_i32_0 = arith.constant 0 : i32
    return %arg0, %c0_i32 : i32, i32
  }
  func.func @transform_1(%arg0: i32) -> (i32, i32) {
    %c0_i32 = arith.constant 0 : i32
    %c0_i32_0 = arith.constant 0 : i32
    %c0_i32_1 = arith.constant 0 : i32
    return %c0_i32, %c0_i32_0 : i32, i32
  }
  func.func @transform_2(%arg0: i32) -> (i32, i32) {
    %c0_i32 = arith.constant 0 : i32
    %c0_i32_0 = arith.constant 0 : i32
    %c0_i32_1 = arith.constant 0 : i32
    return %c0_i32, %c0_i32_0 : i32, i32
  }
  func.func @transform_3(%arg0: i32) -> (i32, i32) {
    %c0_i32 = arith.constant 0 : i32
    %c0_i32_0 = arith.constant 0 : i32
    return %arg0, %c0_i32 : i32, i32
  }
  func.func @transform_4(%arg0: i32) -> (i32, i32) {
    %c0_i32 = arith.constant 0 : i32
    %c0_i32_0 = arith.constant 0 : i32
    return %arg0, %c0_i32 : i32, i32
  }
  func.func @transform_5(%arg0: i32) -> (i32, i32) {
    %c0_i32 = arith.constant 0 : i32
    %c0_i32_0 = arith.constant 0 : i32
    return %arg0, %c0_i32 : i32, i32
  }
}

module attributes {stable_mosaic.version = 11 : i64} {
  func.func @_mm_skip_kernel(%arg0: i32, %arg1: memref<8x384xbf16, #tpu.memory_space<vmem>>, %arg2: memref<384x64xbf16, #tpu.memory_space<vmem>>, %arg3: memref<1x64xf32, #tpu.memory_space<vmem>>, %arg4: memref<8x64xf32, #tpu.memory_space<vmem>>, %arg5: memref<8x64xf32, #tpu.memory_space<vmem>>) attributes {dimension_semantics = [#tpu.dimension_semantics<parallel>], iteration_bounds = array<i64: 1>, scalar_prefetch = 0 : i64, scratch_operands = 0 : i64, tpu.core_type = #tpu.core_type<tc>, window_params = [{transform_indices = @transform_0, window_bounds = array<i64: 8, 384>}, {pipeline_mode = #tpu.pipeline_mode<synchronous>, transform_indices = @transform_1, window_bounds = array<i64: 384, 64>}, {pipeline_mode = #tpu.pipeline_mode<synchronous>, transform_indices = @transform_2, window_bounds = array<i64: 1, 64>}, {transform_indices = @transform_3, window_bounds = array<i64: 8, 64>}, {transform_indices = @transform_4, window_bounds = array<i64: 8, 64>}]} {
    %c0 = arith.constant 0 : index
    %c0_0 = arith.constant 0 : index
    %0 = vector.load %arg1[%c0, %c0_0] : memref<8x384xbf16, #tpu.memory_space<vmem>>, vector<8x384xbf16>
    %c0_1 = arith.constant 0 : index
    %c0_2 = arith.constant 0 : index
    %1 = vector.load %arg2[%c0_1, %c0_2] : memref<384x64xbf16, #tpu.memory_space<vmem>>, vector<384x64xbf16>
    %cst = arith.constant dense<0.000000e+00> : vector<8x64xf32>
    %2 = tpu.matmul %0, %1, %cst {dimension_numbers = #tpu.dot_dimension_numbers<[1], [0], [0], [1], [0, 0, 1, 1], [], []>} : vector<8x384xbf16>, vector<384x64xbf16>, vector<8x64xf32> -> vector<8x64xf32>
    %c0_3 = arith.constant 0 : index
    %c0_4 = arith.constant 0 : index
    %3 = vector.load %arg3[%c0_3, %c0_4] : memref<1x64xf32, #tpu.memory_space<vmem>>, vector<1x64xf32>
    %4 = vector.broadcast %3 : vector<1x64xf32> to vector<8x64xf32>
    %5 = arith.addf %2, %4 : vector<8x64xf32>
    %c0_5 = arith.constant 0 : index
    %c0_6 = arith.constant 0 : index
    %6 = vector.load %arg4[%c0_5, %c0_6] : memref<8x64xf32, #tpu.memory_space<vmem>>, vector<8x64xf32>
    %7 = arith.addf %5, %6 : vector<8x64xf32>
    %cst_7 = arith.constant 0.000000e+00 : f32
    %8 = vector.broadcast %cst_7 : f32 to vector<8x64xf32>
    %9 = arith.maximumf %7, %8 : vector<8x64xf32>
    %c0_8 = arith.constant 0 : index
    %c0_9 = arith.constant 0 : index
    %10 = vector.load %arg5[%c0_8, %c0_9] : memref<8x64xf32, #tpu.memory_space<vmem>>, vector<8x64xf32>
    tpu.vector_store %arg5[%c0_8, %c0_9], %9 {strides = array<i32>} : memref<8x64xf32, #tpu.memory_space<vmem>>, vector<8x64xf32>,
    return
  }
  func.func @transform_0(%arg0: i32) -> (i32, i32) {
    %c0_i32 = arith.constant 0 : i32
    %c0_i32_0 = arith.constant 0 : i32
    return %arg0, %c0_i32 : i32, i32
  }
  func.func @transform_1(%arg0: i32) -> (i32, i32) {
    %c0_i32 = arith.constant 0 : i32
    %c0_i32_0 = arith.constant 0 : i32
    %c0_i32_1 = arith.constant 0 : i32
    return %c0_i32, %c0_i32_0 : i32, i32
  }
  func.func @transform_2(%arg0: i32) -> (i32, i32) {
    %c0_i32 = arith.constant 0 : i32
    %c0_i32_0 = arith.constant 0 : i32
    %c0_i32_1 = arith.constant 0 : i32
    return %c0_i32, %c0_i32_0 : i32, i32
  }
  func.func @transform_3(%arg0: i32) -> (i32, i32) {
    %c0_i32 = arith.constant 0 : i32
    %c0_i32_0 = arith.constant 0 : i32
    return %arg0, %c0_i32 : i32, i32
  }
  func.func @transform_4(%arg0: i32) -> (i32, i32) {
    %c0_i32 = arith.constant 0 : i32
    %c0_i32_0 = arith.constant 0 : i32
    return %arg0, %c0_i32 : i32, i32
  }
}

module attributes {stable_mosaic.version = 11 : i64} {
  func.func @_mm_skip_kernel(%arg0: i32, %arg1: memref<32x256xbf16, #tpu.memory_space<vmem>>, %arg2: memref<256x32xbf16, #tpu.memory_space<vmem>>, %arg3: memref<1x32xf32, #tpu.memory_space<vmem>>, %arg4: memref<32x32xf32, #tpu.memory_space<vmem>>, %arg5: memref<32x32xf32, #tpu.memory_space<vmem>>) attributes {dimension_semantics = [#tpu.dimension_semantics<parallel>], iteration_bounds = array<i64: 1>, scalar_prefetch = 0 : i64, scratch_operands = 0 : i64, tpu.core_type = #tpu.core_type<tc>, window_params = [{transform_indices = @transform_0, window_bounds = array<i64: 32, 256>}, {pipeline_mode = #tpu.pipeline_mode<synchronous>, transform_indices = @transform_1, window_bounds = array<i64: 256, 32>}, {pipeline_mode = #tpu.pipeline_mode<synchronous>, transform_indices = @transform_2, window_bounds = array<i64: 1, 32>}, {transform_indices = @transform_3, window_bounds = array<i64: 32, 32>}, {transform_indices = @transform_4, window_bounds = array<i64: 32, 32>}]} {
    %c0 = arith.constant 0 : index
    %c0_0 = arith.constant 0 : index
    %0 = vector.load %arg1[%c0, %c0_0] : memref<32x256xbf16, #tpu.memory_space<vmem>>, vector<32x256xbf16>
    %c0_1 = arith.constant 0 : index
    %c0_2 = arith.constant 0 : index
    %1 = vector.load %arg2[%c0_1, %c0_2] : memref<256x32xbf16, #tpu.memory_space<vmem>>, vector<256x32xbf16>
    %cst = arith.constant dense<0.000000e+00> : vector<32x32xf32>
    %2 = tpu.matmul %0, %1, %cst {dimension_numbers = #tpu.dot_dimension_numbers<[1], [0], [0], [1], [0, 0, 1, 1], [], []>} : vector<32x256xbf16>, vector<256x32xbf16>, vector<32x32xf32> -> vector<32x32xf32>
    %c0_3 = arith.constant 0 : index
    %c0_4 = arith.constant 0 : index
    %3 = vector.load %arg3[%c0_3, %c0_4] : memref<1x32xf32, #tpu.memory_space<vmem>>, vector<1x32xf32>
    %4 = vector.broadcast %3 : vector<1x32xf32> to vector<32x32xf32>
    %5 = arith.addf %2, %4 : vector<32x32xf32>
    %c0_5 = arith.constant 0 : index
    %c0_6 = arith.constant 0 : index
    %6 = vector.load %arg4[%c0_5, %c0_6] : memref<32x32xf32, #tpu.memory_space<vmem>>, vector<32x32xf32>
    %7 = arith.addf %5, %6 : vector<32x32xf32>
    %cst_7 = arith.constant 0.000000e+00 : f32
    %8 = vector.broadcast %cst_7 : f32 to vector<32x32xf32>
    %9 = arith.maximumf %7, %8 : vector<32x32xf32>
    %c0_8 = arith.constant 0 : index
    %c0_9 = arith.constant 0 : index
    %10 = vector.load %arg5[%c0_8, %c0_9] : memref<32x32xf32, #tpu.memory_space<vmem>>, vector<32x32xf32>
    tpu.vector_store %arg5[%c0_8, %c0_9], %9 {strides = array<i32>} : memref<32x32xf32, #tpu.memory_space<vmem>>, vector<32x32xf32>,
    return
  }
  func.func @transform_0(%arg0: i32) -> (i32, i32) {
    %c0_i32 = arith.constant 0 : i32
    %c0_i32_0 = arith.constant 0 : i32
    return %arg0, %c0_i32 : i32, i32
  }
  func.func @transform_1(%arg0: i32) -> (i32, i32) {
    %c0_i32 = arith.constant 0 : i32
    %c0_i32_0 = arith.constant 0 : i32
    %c0_i32_1 = arith.constant 0 : i32
    return %c0_i32, %c0_i32_0 : i32, i32
  }
  func.func @transform_2(%arg0: i32) -> (i32, i32) {
    %c0_i32 = arith.constant 0 : i32
    %c0_i32_0 = arith.constant 0 : i32
    %c0_i32_1 = arith.constant 0 : i32
    return %c0_i32, %c0_i32_0 : i32, i32
  }
  func.func @transform_3(%arg0: i32) -> (i32, i32) {
    %c0_i32 = arith.constant 0 : i32
    %c0_i32_0 = arith.constant 0 : i32
    return %arg0, %c0_i32 : i32, i32
  }
  func.func @transform_4(%arg0: i32) -> (i32, i32) {
    %c0_i32 = arith.constant 0 : i32
    %c0_i32_0 = arith.constant 0 : i32
    return %arg0, %c0_i32 : i32, i32
  }
}

module attributes {stable_mosaic.version = 11 : i64} {
  func.func @_mm_kernel(%arg0: i32, %arg1: memref<128x128xbf16, #tpu.memory_space<vmem>>, %arg2: memref<128x128xbf16, #tpu.memory_space<vmem>>, %arg3: memref<1x128xf32, #tpu.memory_space<vmem>>, %arg4: memref<128x128xf32, #tpu.memory_space<vmem>>) attributes {dimension_semantics = [#tpu.dimension_semantics<parallel>], iteration_bounds = array<i64: 1>, scalar_prefetch = 0 : i64, scratch_operands = 0 : i64, tpu.core_type = #tpu.core_type<tc>, window_params = [{transform_indices = @transform_0, window_bounds = array<i64: 128, 128>}, {pipeline_mode = #tpu.pipeline_mode<synchronous>, transform_indices = @transform_1, window_bounds = array<i64: 128, 128>}, {pipeline_mode = #tpu.pipeline_mode<synchronous>, transform_indices = @transform_2, window_bounds = array<i64: 1, 128>}, {transform_indices = @transform_3, window_bounds = array<i64: 128, 128>}]} {
    %c0 = arith.constant 0 : index
    %c0_0 = arith.constant 0 : index
    %0 = vector.load %arg1[%c0, %c0_0] : memref<128x128xbf16, #tpu.memory_space<vmem>>, vector<128x128xbf16>
    %c0_1 = arith.constant 0 : index
    %c0_2 = arith.constant 0 : index
    %1 = vector.load %arg2[%c0_1, %c0_2] : memref<128x128xbf16, #tpu.memory_space<vmem>>, vector<128x128xbf16>
    %cst = arith.constant dense<0.000000e+00> : vector<128x128xf32>
    %2 = tpu.matmul %0, %1, %cst {dimension_numbers = #tpu.dot_dimension_numbers<[1], [0], [0], [1], [0, 0, 1, 1], [], []>} : vector<128x128xbf16>, vector<128x128xbf16>, vector<128x128xf32> -> vector<128x128xf32>
    %c0_3 = arith.constant 0 : index
    %c0_4 = arith.constant 0 : index
    %3 = vector.load %arg3[%c0_3, %c0_4] : memref<1x128xf32, #tpu.memory_space<vmem>>, vector<1x128xf32>
    %4 = vector.broadcast %3 : vector<1x128xf32> to vector<128x128xf32>
    %5 = arith.addf %2, %4 : vector<128x128xf32>
    %cst_5 = arith.constant 0.000000e+00 : f32
    %6 = vector.broadcast %cst_5 : f32 to vector<128x128xf32>
    %7 = arith.maximumf %5, %6 : vector<128x128xf32>
    %c0_6 = arith.constant 0 : index
    %c0_7 = arith.constant 0 : index
    %8 = vector.load %arg4[%c0_6, %c0_7] : memref<128x128xf32, #tpu.memory_space<vmem>>, vector<128x128xf32>
    tpu.vector_store %arg4[%c0_6, %c0_7], %7 {strides = array<i32>} : memref<128x128xf32, #tpu.memory_space<vmem>>, vector<128x128xf32>,
    return
  }
  func.func @transform_0(%arg0: i32) -> (i32, i32) {
    %c0_i32 = arith.constant 0 : i32
    %c0_i32_0 = arith.constant 0 : i32
    return %arg0, %c0_i32 : i32, i32
  }
  func.func @transform_1(%arg0: i32) -> (i32, i32) {
    %c0_i32 = arith.constant 0 : i32
    %c0_i32_0 = arith.constant 0 : i32
    %c0_i32_1 = arith.constant 0 : i32
    return %c0_i32, %c0_i32_0 : i32, i32
  }
  func.func @transform_2(%arg0: i32) -> (i32, i32) {
    %c0_i32 = arith.constant 0 : i32
    %c0_i32_0 = arith.constant 0 : i32
    %c0_i32_1 = arith.constant 0 : i32
    return %c0_i32, %c0_i32_0 : i32, i32
  }
  func.func @transform_3(%arg0: i32) -> (i32, i32) {
    %c0_i32 = arith.constant 0 : i32
    %c0_i32_0 = arith.constant 0 : i32
    return %arg0, %c0_i32 : i32, i32
  }
}

module attributes {stable_mosaic.version = 11 : i64} {
  func.func @_mm_kernel(%arg0: i32, %arg1: memref<128x384xbf16, #tpu.memory_space<vmem>>, %arg2: memref<384x32xbf16, #tpu.memory_space<vmem>>, %arg3: memref<1x32xf32, #tpu.memory_space<vmem>>, %arg4: memref<128x32xf32, #tpu.memory_space<vmem>>) attributes {dimension_semantics = [#tpu.dimension_semantics<parallel>], iteration_bounds = array<i64: 4>, scalar_prefetch = 0 : i64, scratch_operands = 0 : i64, tpu.core_type = #tpu.core_type<tc>, window_params = [{transform_indices = @transform_0, window_bounds = array<i64: 128, 384>}, {pipeline_mode = #tpu.pipeline_mode<synchronous>, transform_indices = @transform_1, window_bounds = array<i64: 384, 32>}, {pipeline_mode = #tpu.pipeline_mode<synchronous>, transform_indices = @transform_2, window_bounds = array<i64: 1, 32>}, {transform_indices = @transform_3, window_bounds = array<i64: 128, 32>}]} {
    %c0 = arith.constant 0 : index
    %c0_0 = arith.constant 0 : index
    %0 = vector.load %arg1[%c0, %c0_0] : memref<128x384xbf16, #tpu.memory_space<vmem>>, vector<128x384xbf16>
    %c0_1 = arith.constant 0 : index
    %c0_2 = arith.constant 0 : index
    %1 = vector.load %arg2[%c0_1, %c0_2] : memref<384x32xbf16, #tpu.memory_space<vmem>>, vector<384x32xbf16>
    %cst = arith.constant dense<0.000000e+00> : vector<128x32xf32>
    %2 = tpu.matmul %0, %1, %cst {dimension_numbers = #tpu.dot_dimension_numbers<[1], [0], [0], [1], [0, 0, 1, 1], [], []>} : vector<128x384xbf16>, vector<384x32xbf16>, vector<128x32xf32> -> vector<128x32xf32>
    %c0_3 = arith.constant 0 : index
    %c0_4 = arith.constant 0 : index
    %3 = vector.load %arg3[%c0_3, %c0_4] : memref<1x32xf32, #tpu.memory_space<vmem>>, vector<1x32xf32>
    %4 = vector.broadcast %3 : vector<1x32xf32> to vector<128x32xf32>
    %5 = arith.addf %2, %4 : vector<128x32xf32>
    %cst_5 = arith.constant 0.000000e+00 : f32
    %6 = vector.broadcast %cst_5 : f32 to vector<128x32xf32>
    %7 = arith.maximumf %5, %6 : vector<128x32xf32>
    %c0_6 = arith.constant 0 : index
    %c0_7 = arith.constant 0 : index
    %8 = vector.load %arg4[%c0_6, %c0_7] : memref<128x32xf32, #tpu.memory_space<vmem>>, vector<128x32xf32>
    tpu.vector_store %arg4[%c0_6, %c0_7], %7 {strides = array<i32>} : memref<128x32xf32, #tpu.memory_space<vmem>>, vector<128x32xf32>,
    return
  }
  func.func @transform_0(%arg0: i32) -> (i32, i32) {
    %c0_i32 = arith.constant 0 : i32
    %c0_i32_0 = arith.constant 0 : i32
    return %arg0, %c0_i32 : i32, i32
  }
  func.func @transform_1(%arg0: i32) -> (i32, i32) {
    %c0_i32 = arith.constant 0 : i32
    %c0_i32_0 = arith.constant 0 : i32
    %c0_i32_1 = arith.constant 0 : i32
    return %c0_i32, %c0_i32_0 : i32, i32
  }
  func.func @transform_2(%arg0: i32) -> (i32, i32) {
    %c0_i32 = arith.constant 0 : i32
    %c0_i32_0 = arith.constant 0 : i32
    %c0_i32_1 = arith.constant 0 : i32
    return %c0_i32, %c0_i32_0 : i32, i32
  }
  func.func @transform_3(%arg0: i32) -> (i32, i32) {
    %c0_i32 = arith.constant 0 : i32
    %c0_i32_0 = arith.constant 0 : i32
    return %arg0, %c0_i32 : i32, i32
  }
}

module attributes {stable_mosaic.version = 11 : i64} {
  func.func @_mm_kernel(%arg0: i32, %arg1: memref<128x384xbf16, #tpu.memory_space<vmem>>, %arg2: memref<384x8xbf16, #tpu.memory_space<vmem>>, %arg3: memref<1x8xf32, #tpu.memory_space<vmem>>, %arg4: memref<128x8xf32, #tpu.memory_space<vmem>>) attributes {dimension_semantics = [#tpu.dimension_semantics<parallel>], iteration_bounds = array<i64: 4>, scalar_prefetch = 0 : i64, scratch_operands = 0 : i64, tpu.core_type = #tpu.core_type<tc>, window_params = [{transform_indices = @transform_0, window_bounds = array<i64: 128, 384>}, {pipeline_mode = #tpu.pipeline_mode<synchronous>, transform_indices = @transform_1, window_bounds = array<i64: 384, 8>}, {pipeline_mode = #tpu.pipeline_mode<synchronous>, transform_indices = @transform_2, window_bounds = array<i64: 1, 8>}, {transform_indices = @transform_3, window_bounds = array<i64: 128, 8>}]} {
    %c0 = arith.constant 0 : index
    %c0_0 = arith.constant 0 : index
    %0 = vector.load %arg1[%c0, %c0_0] : memref<128x384xbf16, #tpu.memory_space<vmem>>, vector<128x384xbf16>
    %c0_1 = arith.constant 0 : index
    %c0_2 = arith.constant 0 : index
    %1 = vector.load %arg2[%c0_1, %c0_2] : memref<384x8xbf16, #tpu.memory_space<vmem>>, vector<384x8xbf16>
    %cst = arith.constant dense<0.000000e+00> : vector<128x8xf32>
    %2 = tpu.matmul %0, %1, %cst {dimension_numbers = #tpu.dot_dimension_numbers<[1], [0], [0], [1], [0, 0, 1, 1], [], []>} : vector<128x384xbf16>, vector<384x8xbf16>, vector<128x8xf32> -> vector<128x8xf32>
    %c0_3 = arith.constant 0 : index
    %c0_4 = arith.constant 0 : index
    %3 = vector.load %arg3[%c0_3, %c0_4] : memref<1x8xf32, #tpu.memory_space<vmem>>, vector<1x8xf32>
    %4 = vector.broadcast %3 : vector<1x8xf32> to vector<128x8xf32>
    %5 = arith.addf %2, %4 : vector<128x8xf32>
    %cst_5 = arith.constant 0.000000e+00 : f32
    %6 = vector.broadcast %cst_5 : f32 to vector<128x8xf32>
    %7 = arith.subf %6, %5 : vector<128x8xf32>
    %8 = math.exp %7 : vector<128x8xf32>
    %cst_6 = arith.constant 1.000000e+00 : f32
    %9 = vector.broadcast %cst_6 : f32 to vector<128x8xf32>
    %10 = arith.addf %9, %8 : vector<128x8xf32>
    %11 = tpu.reciprocal %10 {approx = true} : vector<128x8xf32> -> vector<128x8xf32>
    %cst_7 = arith.constant 0.000000e+00 : f32
    %cst_8 = arith.constant 1.000000e+00 : f32
    %12 = vector.broadcast %cst_7 : f32 to vector<128x8xf32>
    %13 = arith.maximumf %12, %11 : vector<128x8xf32>
    %14 = vector.broadcast %cst_8 : f32 to vector<128x8xf32>
    %15 = arith.minimumf %14, %13 : vector<128x8xf32>
    %c0_9 = arith.constant 0 : index
    %c0_10 = arith.constant 0 : index
    %16 = vector.load %arg4[%c0_9, %c0_10] : memref<128x8xf32, #tpu.memory_space<vmem>>, vector<128x8xf32>
    tpu.vector_store %arg4[%c0_9, %c0_10], %15 {strides = array<i32>} : memref<128x8xf32, #tpu.memory_space<vmem>>, vector<128x8xf32>,
    return
  }
  func.func @transform_0(%arg0: i32) -> (i32, i32) {
    %c0_i32 = arith.constant 0 : i32
    %c0_i32_0 = arith.constant 0 : i32
    return %arg0, %c0_i32 : i32, i32
  }
  func.func @transform_1(%arg0: i32) -> (i32, i32) {
    %c0_i32 = arith.constant 0 : i32
    %c0_i32_0 = arith.constant 0 : i32
    %c0_i32_1 = arith.constant 0 : i32
    return %c0_i32, %c0_i32_0 : i32, i32
  }
  func.func @transform_2(%arg0: i32) -> (i32, i32) {
    %c0_i32 = arith.constant 0 : i32
    %c0_i32_0 = arith.constant 0 : i32
    %c0_i32_1 = arith.constant 0 : i32
    return %c0_i32, %c0_i32_0 : i32, i32
  }
  func.func @transform_3(%arg0: i32) -> (i32, i32) {
    %c0_i32 = arith.constant 0 : i32
    %c0_i32_0 = arith.constant 0 : i32
    return %arg0, %c0_i32 : i32, i32
  }
}

</mosaic_0001>

<llo_original>
// kernel: dlinknet_forward.12
$region0: #{dlinknet_forward.12}
  #allocation0 [shape = 'u32[]', space=smem, size = 0x4, offset = 0x4, fixed_abs, tag = 'smem constant byte address 0x4 - core index']
  #allocation1 [shape = 'u32[72,128]{1,0:T(1,128)}', space=vmem, size = 0x9000, scoped, tag = 'internal scratch']
  %s0 = inlined_call_operand.vmem [shape: bf16[128,128], index: 0, kind: input, shape index: {}]
  %s1 = inlined_call_operand.vmem [shape: bf16[128,8], index: 1, kind: input, shape index: {}]
  %s2 = inlined_call_operand.hbm [shape: f32[1,8], index: 2, kind: input, shape index: {}]
  %s3 = inlined_call_operand.vmem [shape: f32[128,8], index: 3, kind: output, shape index: {}]
  %s4 = sld [smem:[#allocation0]]
  $region26: #{dlinknet_forward.12} parent=0
    _
  %s6 = ssub.s32 1, %s4
  %s7 = scalar_select 0, %s6, %s4
  $region1: #{dlinknet_forward.12} parent=0
    #allocation2 [shape = 'u8[512]{0}', space=vmem, size = 0x400, scoped, tag = 'input window, operand 2, single buffered']
    #allocation3 [shape = 's32[1]{0}', space=sflag, size = 0x4, scoped, tag = 'scoped memory for dlinknet_forward.12']
    %8 = vsyncpa [#allocation3], 0
    // Predicated region
    $region2: #{dlinknet_forward.12} parent=1 // pred_check
      _
    $region3: #{dlinknet_forward.12} parent=1 // pred_check_branch
      %10 = sbr.rel (0) target = $region5
    $region4: #{dlinknet_forward.12} parent=1 // pred_region
      _
    $region5: #{dlinknet_forward.12} parent=1 // pred_fallthru
      _
    // Predicated region
    $region6: #{dlinknet_forward.12} parent=1 // pred_check
      _
    $region7: #{dlinknet_forward.12} parent=1 // pred_check_branch
      %12 = sbr.rel (0) target = $region9
    $region8: #{dlinknet_forward.12} parent=1 // pred_region
      _
    $region9: #{dlinknet_forward.12} parent=1 // pred_fallthru
      _
    // Predicated region
    $region10: #{dlinknet_forward.12} parent=1 // pred_check
      _
    $region11: #{dlinknet_forward.12} parent=1 // pred_check_branch
      %14 = sbr.rel (0) target = $region13
    $region12: #{dlinknet_forward.12} parent=1 // pred_region
      %16 = vsyncadd [#allocation3], 0
      %s18 = sshll.u32 %s2, 4
      %s19 = int_to_ptr.hbm [resolvable:$true] %s18
      %s20 = sshll.u32 [#allocation2], 4
      %s21 = int_to_ptr.vmem [resolvable:$true] %s20
      %23 = dma.hbm_to_vmem [thread:$0]  %s19, 16, %s21, [#allocation3]
    $region13: #{dlinknet_forward.12} parent=1 // pred_fallthru
      _
    // Predicated region
    $region14: #{dlinknet_forward.12} parent=1 // pred_check
      _
    $region15: #{dlinknet_forward.12} parent=1 // pred_check_branch
      %25 = sbr.rel (0) target = $region17
    $region16: #{dlinknet_forward.12} parent=1 // pred_region
      %27 = dma.done [#allocation3], 16
    $region17: #{dlinknet_forward.12} parent=1 // pred_fallthru
      _
    %v28 = vld [vmem:[%s0] sm:$0xf]
    %v29 = vld [vmem:[%s0 + $0x4] sm:$0xf]
    %v30 = vld [vmem:[%s0 + $0x8] sm:$0xf]
    %v31 = vld [vmem:[%s0 + $0xc] sm:$0xf]
    %v32 = vld [vmem:[%s0 + $0x10] sm:$0xf]
    %v33 = vld [vmem:[%s0 + $0x14] sm:$0xf]
    %v34 = vld [vmem:[%s0 + $0x18] sm:$0xf]
    %v35 = vld [vmem:[%s0 + $0x1c] sm:$0xf]
    %v36 = vld [vmem:[%s0 + $0x20] sm:$0xf]
    %v37 = vld [vmem:[%s0 + $0x24] sm:$0xf]
    %v38 = vld [vmem:[%s0 + $0x28] sm:$0xf]
    %v39 = vld [vmem:[%s0 + $0x2c] sm:$0xf]
    %v40 = vld [vmem:[%s0 + $0x30] sm:$0xf]
    %v41 = vld [vmem:[%s0 + $0x34] sm:$0xf]
    %v42 = vld [vmem:[%s0 + $0x38] sm:$0xf]
    %v43 = vld [vmem:[%s0 + $0x3c] sm:$0xf]
    %v44 = vld [vmem:[%s1] sm:$0xf]
    %v45 = vld [vmem:[%s1 + $0x4] sm:$0xf]
    %v46 = vld [vmem:[%s1 + $0x8] sm:$0xf]
    %v47 = vld [vmem:[%s1 + $0xc] sm:$0xf]
    %v48 = vld [vmem:[%s1 + $0x10] sm:$0xf]
    %v49 = vld [vmem:[%s1 + $0x14] sm:$0xf]
    %v50 = vld [vmem:[%s1 + $0x18] sm:$0xf]
    %v51 = vld [vmem:[%s1 + $0x1c] sm:$0xf]
    %v52 = vld [vmem:[%s1 + $0x20] sm:$0xf]
    %v53 = vld [vmem:[%s1 + $0x24] sm:$0xf]
    %v54 = vld [vmem:[%s1 + $0x28] sm:$0xf]
    %v55 = vld [vmem:[%s1 + $0x2c] sm:$0xf]
    %v56 = vld [vmem:[%s1 + $0x30] sm:$0xf]
    %v57 = vld [vmem:[%s1 + $0x34] sm:$0xf]
    %v58 = vld [vmem:[%s1 + $0x38] sm:$0xf]
    %v59 = vld [vmem:[%s1 + $0x3c] sm:$0xf]
    %v60 = vld [vmem:[#allocation2] sm:$0x1]
    %v62 = vperm.slane %v60, 0
    %v80 = vunpack.c.l.b16 %v28
    %v81 = vunpack.c.l.b16 %v29
    %v82 = vunpack.c.l.b16 %v30
    %v83 = vunpack.c.l.b16 %v31
    %v84 = vunpack.c.l.b16 %v32
    %v85 = vunpack.c.l.b16 %v33
    %v86 = vunpack.c.l.b16 %v34
    %v87 = vunpack.c.l.b16 %v35
    %v88 = vunpack.c.l.b16 %v36
    %v89 = vunpack.c.l.b16 %v37
    %v90 = vunpack.c.l.b16 %v38
    %v91 = vunpack.c.l.b16 %v39
    %v92 = vunpack.c.l.b16 %v40
    %v93 = vunpack.c.l.b16 %v41
    %v94 = vunpack.c.l.b16 %v42
    %v95 = vunpack.c.l.b16 %v43
    %v96 = vpack.c.b16 %v81, %v80
    %v97 = vpack.c.b16 %v83, %v82
    %v98 = vpack.c.b16 %v85, %v84
    %v99 = vpack.c.b16 %v87, %v86
    %v100 = vpack.c.b16 %v89, %v88
    %v101 = vpack.c.b16 %v91, %v90
    %v102 = vpack.c.b16 %v93, %v92
    %v103 = vpack.c.b16 %v95, %v94
    %v128 = vunpack.c.l.b16 %v44
    %v129 = vunpack.c.l.b16 %v45
    %v130 = vunpack.c.l.b16 %v46
    %v131 = vunpack.c.l.b16 %v47
    %v132 = vunpack.c.l.b16 %v48
    %v133 = vunpack.c.l.b16 %v49
    %v134 = vunpack.c.l.b16 %v50
    %v135 = vunpack.c.l.b16 %v51
    %v136 = vunpack.c.l.b16 %v52
    %v137 = vunpack.c.l.b16 %v53
    %v138 = vunpack.c.l.b16 %v54
    %v139 = vunpack.c.l.b16 %v55
    %v140 = vunpack.c.l.b16 %v56
    %v141 = vunpack.c.l.b16 %v57
    %v142 = vunpack.c.l.b16 %v58
    %v143 = vunpack.c.l.b16 %v59
    %v144 = vpack.c.b16 %v129, %v128
    %v145 = vpack.c.b16 %v131, %v130
    %v146 = vpack.c.b16 %v133, %v132
    %v147 = vpack.c.b16 %v135, %v134
    %v148 = vpack.c.b16 %v137, %v136
    %v149 = vpack.c.b16 %v139, %v138
    %v150 = vpack.c.b16 %v141, %v140
    %v151 = vpack.c.b16 %v143, %v142
    %160 = vmatpush.bf16.msra.mxu0 %v151
    %161 = vmatpush.bf16.msra.mxu0 %v150
    %162 = vmatpush.bf16.msra.mxu0 %v149
    %163 = vmatpush.bf16.msra.mxu0 %v148
    %164 = vmatpush.bf16.msra.mxu0 %v147
    %165 = vmatpush.bf16.msra.mxu0 %v146
    %166 = vmatpush.bf16.msra.mxu0 %v145
    %167 = vmatpush.bf16.msra.mxu0 %v144
    %168 = vmatmul.bf16.gmra.mxu0 %v96
    %v169 = vpop.f32.mrf.mxu0
    %v170 = vadd.f32 %v62, %v169
    %v171 = vpop.f32.mrf.mxu0
    %v172 = vadd.f32 %v62, %v171
    %173 = vmatmul.bf16.gmra.mxu0 %v97
    %v174 = vpop.f32.mrf.mxu0
    %v175 = vadd.f32 %v62, %v174
    %v176 = vpop.f32.mrf.mxu0
    %v177 = vadd.f32 %v62, %v176
    %178 = vmatmul.bf16.gmra.mxu0 %v98
    %v179 = vpop.f32.mrf.mxu0
    %v180 = vadd.f32 %v62, %v179
    %v181 = vpop.f32.mrf.mxu0
    %v182 = vadd.f32 %v62, %v181
    %183 = vmatmul.bf16.gmra.mxu0 %v99
    %v184 = vpop.f32.mrf.mxu0
    %v185 = vadd.f32 %v62, %v184
    %v186 = vpop.f32.mrf.mxu0
    %v187 = vadd.f32 %v62, %v186
    %188 = vmatmul.bf16.gmra.mxu0 %v100
    %v189 = vpop.f32.mrf.mxu0
    %v190 = vadd.f32 %v62, %v189
    %v191 = vpop.f32.mrf.mxu0
    %v192 = vadd.f32 %v62, %v191
    %193 = vmatmul.bf16.gmra.mxu0 %v101
    %v194 = vpop.f32.mrf.mxu0
    %v195 = vadd.f32 %v62, %v194
    %v196 = vpop.f32.mrf.mxu0
    %v197 = vadd.f32 %v62, %v196
    %198 = vmatmul.bf16.gmra.mxu0 %v102
    %v199 = vpop.f32.mrf.mxu0
    %v200 = vadd.f32 %v62, %v199
    %v201 = vpop.f32.mrf.mxu0
    %v202 = vadd.f32 %v62, %v201
    %203 = vmatmul.bf16.gmra.mxu0 %v103
    %v204 = vpop.f32.mrf.mxu0
    %v205 = vadd.f32 %v62, %v204
    %v206 = vpop.f32.mrf.mxu0
    %v207 = vadd.f32 %v62, %v206
    %208 = vdwg.mxu0
    %v209 = vmax.f32 %v170, 0.0
    %v210 = vmax.f32 %v172, 0.0
    %v211 = vmax.f32 %v175, 0.0
    %v212 = vmax.f32 %v177, 0.0
    %v213 = vmax.f32 %v180, 0.0
    %v214 = vmax.f32 %v182, 0.0
    %v215 = vmax.f32 %v185, 0.0
    %v216 = vmax.f32 %v187, 0.0
    %v217 = vmax.f32 %v190, 0.0
    %v218 = vmax.f32 %v192, 0.0
    %v219 = vmax.f32 %v195, 0.0
    %v220 = vmax.f32 %v197, 0.0
    %v221 = vmax.f32 %v200, 0.0
    %v222 = vmax.f32 %v202, 0.0
    %v223 = vmax.f32 %v205, 0.0
    %v224 = vmax.f32 %v207, 0.0
    %vm225 = vcmask 64512
    %226 = vst.msk [vmem:[%s3] sm:$0xff] %vm225, %v209
    %227 = vst.msk [vmem:[%s3 + $0x8] sm:$0xff] %vm225, %v210
    %228 = vst.msk [vmem:[%s3 + $0x10] sm:$0xff] %vm225, %v211
    %229 = vst.msk [vmem:[%s3 + $0x18] sm:$0xff] %vm225, %v212
    %230 = vst.msk [vmem:[%s3 + $0x20] sm:$0xff] %vm225, %v213
    %231 = vst.msk [vmem:[%s3 + $0x28] sm:$0xff] %vm225, %v214
    %232 = vst.msk [vmem:[%s3 + $0x30] sm:$0xff] %vm225, %v215
    %233 = vst.msk [vmem:[%s3 + $0x38] sm:$0xff] %vm225, %v216
    %234 = vst.msk [vmem:[%s3 + $0x40] sm:$0xff] %vm225, %v217
    %235 = vst.msk [vmem:[%s3 + $0x48] sm:$0xff] %vm225, %v218
    %236 = vst.msk [vmem:[%s3 + $0x50] sm:$0xff] %vm225, %v219
    %237 = vst.msk [vmem:[%s3 + $0x58] sm:$0xff] %vm225, %v220
    %238 = vst.msk [vmem:[%s3 + $0x60] sm:$0xff] %vm225, %v221
    %239 = vst.msk [vmem:[%s3 + $0x68] sm:$0xff] %vm225, %v222
    %240 = vst.msk [vmem:[%s3 + $0x70] sm:$0xff] %vm225, %v223
    %241 = vst.msk [vmem:[%s3 + $0x78] sm:$0xff] %vm225, %v224
    // Predicated region
    $region18: #{dlinknet_forward.12} parent=1 // pred_check
      _
    $region19: #{dlinknet_forward.12} parent=1 // pred_check_branch
      %243 = sbr.rel (0) target = $region21
    $region20: #{dlinknet_forward.12} parent=1 // pred_region
      _
    $region21: #{dlinknet_forward.12} parent=1 // pred_fallthru
      _
    // Predicated region
    $region22: #{dlinknet_forward.12} parent=1 // pred_check
      _
    $region23: #{dlinknet_forward.12} parent=1 // pred_check_branch
      %245 = sbr.rel (0) target = $region25
    $region24: #{dlinknet_forward.12} parent=1 // pred_region
      _
    $region25: #{dlinknet_forward.12} parent=1 // pred_fallthru
      _
    %246 = vsyncpa [#allocation3], 1

// kernel: dlinknet_forward.13
$region0: #{dlinknet_forward.13}
  #allocation0 [shape = 'u32[]', space=smem, size = 0x4, offset = 0x4, fixed_abs, tag = 'smem constant byte address 0x4 - core index']
  #allocation1 [shape = 'u32[72,128]{1,0:T(1,128)}', space=vmem, size = 0x9000, scoped, tag = 'internal scratch']
  %s0 = inlined_call_operand.vmem [shape: bf16[32,128], index: 0, kind: input, shape index: {}]
  %s1 = inlined_call_operand.vmem [shape: bf16[128,16], index: 1, kind: input, shape index: {}]
  %s2 = inlined_call_operand.vmem [shape: f32[1,16], index: 2, kind: input, shape index: {}]
  %s3 = inlined_call_operand.vmem [shape: f32[32,16], index: 3, kind: output, shape index: {}]
  %s4 = sld [smem:[#allocation0]]
  $region22: #{dlinknet_forward.13} parent=0
    _
  %s6 = ssub.s32 1, %s4
  %s7 = scalar_select 0, %s6, %s4
  // Predicated region
  $region2: #{dlinknet_forward.13} parent=0 // pred_check
    _
  $region3: #{dlinknet_forward.13} parent=0 // pred_check_branch
    %9 = sbr.rel (0) target = $region5
  $region4: #{dlinknet_forward.13} parent=0 // pred_region
    _
  $region5: #{dlinknet_forward.13} parent=0 // pred_fallthru
    _
  // Predicated region
  $region6: #{dlinknet_forward.13} parent=0 // pred_check
    _
  $region7: #{dlinknet_forward.13} parent=0 // pred_check_branch
    %11 = sbr.rel (0) target = $region9
  $region8: #{dlinknet_forward.13} parent=0 // pred_region
    _
  $region9: #{dlinknet_forward.13} parent=0 // pred_fallthru
    _
  // Predicated region
  $region10: #{dlinknet_forward.13} parent=0 // pred_check
    _
  $region11: #{dlinknet_forward.13} parent=0 // pred_check_branch
    %13 = sbr.rel (0) target = $region13
  $region12: #{dlinknet_forward.13} parent=0 // pred_region
    _
  $region13: #{dlinknet_forward.13} parent=0 // pred_fallthru
    _
  %v14 = vld [vmem:[%s0] sm:$0xf]
  %v15 = vld [vmem:[%s0 + $0x4] sm:$0xf]
  %v16 = vld [vmem:[%s0 + $0x8] sm:$0xf]
  %v17 = vld [vmem:[%s0 + $0xc] sm:$0xf]
  %v18 = vld [vmem:[%s1] sm:$0xf]
  %v19 = vld [vmem:[%s1 + $0x4] sm:$0xf]
  %v20 = vld [vmem:[%s1 + $0x8] sm:$0xf]
  %v21 = vld [vmem:[%s1 + $0xc] sm:$0xf]
  %v22 = vld [vmem:[%s1 + $0x10] sm:$0xf]
  %v23 = vld [vmem:[%s1 + $0x14] sm:$0xf]
  %v24 = vld [vmem:[%s1 + $0x18] sm:$0xf]
  %v25 = vld [vmem:[%s1 + $0x1c] sm:$0xf]
  %v26 = vld [vmem:[%s1 + $0x20] sm:$0xf]
  %v27 = vld [vmem:[%s1 + $0x24] sm:$0xf]
  %v28 = vld [vmem:[%s1 + $0x28] sm:$0xf]
  %v29 = vld [vmem:[%s1 + $0x2c] sm:$0xf]
  %v30 = vld [vmem:[%s1 + $0x30] sm:$0xf]
  %v31 = vld [vmem:[%s1 + $0x34] sm:$0xf]
  %v32 = vld [vmem:[%s1 + $0x38] sm:$0xf]
  %v33 = vld [vmem:[%s1 + $0x3c] sm:$0xf]
  %v34 = vld [vmem:[%s2] sm:$0x1]
  %v36 = vperm.slane %v34, 0
  %v42 = vunpack.c.l.b16 %v14
  %v43 = vunpack.c.l.b16 %v15
  %v44 = vunpack.c.l.b16 %v16
  %v45 = vunpack.c.l.b16 %v17
  %v46 = vpack.c.b16 %v43, %v42
  %v47 = vpack.c.b16 %v45, %v44
  %v66 = vunpack.c.l.b16 %v18
  %v67 = vunpack.c.l.b16 %v19
  %v68 = vunpack.c.l.b16 %v20
  %v69 = vunpack.c.l.b16 %v21
  %v70 = vunpack.c.l.b16 %v22
  %v71 = vunpack.c.l.b16 %v23
  %v72 = vunpack.c.l.b16 %v24
  %v73 = vunpack.c.l.b16 %v25
  %v74 = vunpack.c.l.b16 %v26
  %v75 = vunpack.c.l.b16 %v27
  %v76 = vunpack.c.l.b16 %v28
  %v77 = vunpack.c.l.b16 %v29
  %v78 = vunpack.c.l.b16 %v30
  %v79 = vunpack.c.l.b16 %v31
  %v80 = vunpack.c.l.b16 %v32
  %v81 = vunpack.c.l.b16 %v33
  %v82 = vpack.c.b16 %v67, %v66
  %v83 = vpack.c.b16 %v69, %v68
  %v84 = vpack.c.b16 %v71, %v70
  %v85 = vpack.c.b16 %v73, %v72
  %v86 = vpack.c.b16 %v75, %v74
  %v87 = vpack.c.b16 %v77, %v76
  %v88 = vpack.c.b16 %v79, %v78
  %v89 = vpack.c.b16 %v81, %v80
  %98 = vmatpush.bf16.msra.mxu0 %v89
  %99 = vmatpush.bf16.msra.mxu0 %v88
  %100 = vmatpush.bf16.msra.mxu0 %v87
  %101 = vmatpush.bf16.msra.mxu0 %v86
  %102 = vmatpush.bf16.msra.mxu0 %v85
  %103 = vmatpush.bf16.msra.mxu0 %v84
  %104 = vmatpush.bf16.msra.mxu0 %v83
  %105 = vmatpush.bf16.msra.mxu0 %v82
  %106 = vmatmul.bf16.gmra.mxu0 %v46
  %v107 = vpop.f32.mrf.mxu0
  %v108 = vadd.f32 %v36, %v107
  %v109 = vpop.f32.mrf.mxu0
  %v110 = vadd.f32 %v36, %v109
  %111 = vmatmul.bf16.gmra.mxu0 %v47
  %v112 = vpop.f32.mrf.mxu0
  %v113 = vadd.f32 %v36, %v112
  %v114 = vpop.f32.mrf.mxu0
  %v115 = vadd.f32 %v36, %v114
  %116 = vdwg.mxu0
  %v117 = vmax.f32 %v108, 0.0
  %v118 = vmax.f32 %v110, 0.0
  %v119 = vmax.f32 %v113, 0.0
  %v120 = vmax.f32 %v115, 0.0
  %vm121 = vcmask 130048
  %122 = vst.msk [vmem:[%s3] sm:$0xff] %vm121, %v117
  %123 = vst.msk [vmem:[%s3 + $0x8] sm:$0xff] %vm121, %v118
  %124 = vst.msk [vmem:[%s3 + $0x10] sm:$0xff] %vm121, %v119
  %125 = vst.msk [vmem:[%s3 + $0x18] sm:$0xff] %vm121, %v120
  // Predicated region
  $region14: #{dlinknet_forward.13} parent=0 // pred_check
    _
  $region15: #{dlinknet_forward.13} parent=0 // pred_check_branch
    %127 = sbr.rel (0) target = $region17
  $region16: #{dlinknet_forward.13} parent=0 // pred_region
    _
  $region17: #{dlinknet_forward.13} parent=0 // pred_fallthru
    _
  // Predicated region
  $region18: #{dlinknet_forward.13} parent=0 // pred_check
    _
  $region19: #{dlinknet_forward.13} parent=0 // pred_check_branch
    %129 = sbr.rel (0) target = $region21
  $region20: #{dlinknet_forward.13} parent=0 // pred_region
    _
  $region21: #{dlinknet_forward.13} parent=0 // pred_fallthru
    _

// kernel: dlinknet_forward.14
$region0: #{dlinknet_forward.14}
  #allocation0 [shape = 'u32[]', space=smem, size = 0x4, offset = 0x4, fixed_abs, tag = 'smem constant byte address 0x4 - core index']
  #allocation1 [shape = 'u32[72,128]{1,0:T(1,128)}', space=vmem, size = 0x9000, scoped, tag = 'internal scratch']
  %s0 = inlined_call_operand.vmem [shape: bf16[8,256], index: 0, kind: input, shape index: {}]
  %s1 = inlined_call_operand.vmem [shape: bf16[256,32], index: 1, kind: input, shape index: {}]
  %s2 = inlined_call_operand.vmem [shape: f32[1,32], index: 2, kind: input, shape index: {}]
  %s3 = inlined_call_operand.vmem [shape: f32[8,32], index: 3, kind: output, shape index: {}]
  %s4 = sld [smem:[#allocation0]]
  $region22: #{dlinknet_forward.14} parent=0
    _
  %s6 = ssub.s32 1, %s4
  %s7 = scalar_select 0, %s6, %s4
  // Predicated region
  $region2: #{dlinknet_forward.14} parent=0 // pred_check
    _
  $region3: #{dlinknet_forward.14} parent=0 // pred_check_branch
    %9 = sbr.rel (0) target = $region5
  $region4: #{dlinknet_forward.14} parent=0 // pred_region
    _
  $region5: #{dlinknet_forward.14} parent=0 // pred_fallthru
    _
  // Predicated region
  $region6: #{dlinknet_forward.14} parent=0 // pred_check
    _
  $region7: #{dlinknet_forward.14} parent=0 // pred_check_branch
    %11 = sbr.rel (0) target = $region9
  $region8: #{dlinknet_forward.14} parent=0 // pred_region
    _
  $region9: #{dlinknet_forward.14} parent=0 // pred_fallthru
    _
  // Predicated region
  $region10: #{dlinknet_forward.14} parent=0 // pred_check
    _
  $region11: #{dlinknet_forward.14} parent=0 // pred_check_branch
    %13 = sbr.rel (0) target = $region13
  $region12: #{dlinknet_forward.14} parent=0 // pred_region
    _
  $region13: #{dlinknet_forward.14} parent=0 // pred_fallthru
    _
  %v14 = vld [vmem:[%s0] sm:$0xff]
  %v15 = vld [vmem:[%s1] sm:$0xf]
  %v16 = vld [vmem:[%s1 + $0x4] sm:$0xf]
  %v17 = vld [vmem:[%s1 + $0x8] sm:$0xf]
  %v18 = vld [vmem:[%s1 + $0xc] sm:$0xf]
  %v19 = vld [vmem:[%s1 + $0x10] sm:$0xf]
  %v20 = vld [vmem:[%s1 + $0x14] sm:$0xf]
  %v21 = vld [vmem:[%s1 + $0x18] sm:$0xf]
  %v22 = vld [vmem:[%s1 + $0x1c] sm:$0xf]
  %v23 = vld [vmem:[%s1 + $0x20] sm:$0xf]
  %v24 = vld [vmem:[%s1 + $0x24] sm:$0xf]
  %v25 = vld [vmem:[%s1 + $0x28] sm:$0xf]
  %v26 = vld [vmem:[%s1 + $0x2c] sm:$0xf]
  %v27 = vld [vmem:[%s1 + $0x30] sm:$0xf]
  %v28 = vld [vmem:[%s1 + $0x34] sm:$0xf]
  %v29 = vld [vmem:[%s1 + $0x38] sm:$0xf]
  %v30 = vld [vmem:[%s1 + $0x3c] sm:$0xf]
  %v31 = vld [vmem:[%s1 + $0x40] sm:$0xf]
  %v32 = vld [vmem:[%s1 + $0x44] sm:$0xf]
  %v33 = vld [vmem:[%s1 + $0x48] sm:$0xf]
  %v34 = vld [vmem:[%s1 + $0x4c] sm:$0xf]
  %v35 = vld [vmem:[%s1 + $0x50] sm:$0xf]
  %v36 = vld [vmem:[%s1 + $0x54] sm:$0xf]
  %v37 = vld [vmem:[%s1 + $0x58] sm:$0xf]
  %v38 = vld [vmem:[%s1 + $0x5c] sm:$0xf]
  %v39 = vld [vmem:[%s1 + $0x60] sm:$0xf]
  %v40 = vld [vmem:[%s1 + $0x64] sm:$0xf]
  %v41 = vld [vmem:[%s1 + $0x68] sm:$0xf]
  %v42 = vld [vmem:[%s1 + $0x6c] sm:$0xf]
  %v43 = vld [vmem:[%s1 + $0x70] sm:$0xf]
  %v44 = vld [vmem:[%s1 + $0x74] sm:$0xf]
  %v45 = vld [vmem:[%s1 + $0x78] sm:$0xf]
  %v46 = vld [vmem:[%s1 + $0x7c] sm:$0xf]
  %v47 = vld [vmem:[%s2] sm:$0x1]
  %v49 = vperm.slane %v47, 0
  %v52 = vunpack.c.l.b16 %v14
  %v53 = vunpack.c.h.b16 %v14
  %v54 = vpack.c.b16 %v52, %v52
  %v55 = vpack.c.b16 %v53, %v53
  %v90 = vunpack.c.l.b16 %v15
  %v91 = vunpack.c.l.b16 %v16
  %v92 = vunpack.c.l.b16 %v17
  %v93 = vunpack.c.l.b16 %v18
  %v94 = vunpack.c.l.b16 %v19
  %v95 = vunpack.c.l.b16 %v20
  %v96 = vunpack.c.l.b16 %v21
  %v97 = vunpack.c.l.b16 %v22
  %v98 = vunpack.c.l.b16 %v23
  %v99 = vunpack.c.l.b16 %v24
  %v100 = vunpack.c.l.b16 %v25
  %v101 = vunpack.c.l.b16 %v26
  %v102 = vunpack.c.l.b16 %v27
  %v103 = vunpack.c.l.b16 %v28
  %v104 = vunpack.c.l.b16 %v29
  %v105 = vunpack.c.l.b16 %v30
  %v106 = vunpack.c.l.b16 %v31
  %v107 = vunpack.c.l.b16 %v32
  %v108 = vunpack.c.l.b16 %v33
  %v109 = vunpack.c.l.b16 %v34
  %v110 = vunpack.c.l.b16 %v35
  %v111 = vunpack.c.l.b16 %v36
  %v112 = vunpack.c.l.b16 %v37
  %v113 = vunpack.c.l.b16 %v38
  %v114 = vunpack.c.l.b16 %v39
  %v115 = vunpack.c.l.b16 %v40
  %v116 = vunpack.c.l.b16 %v41
  %v117 = vunpack.c.l.b16 %v42
  %v118 = vunpack.c.l.b16 %v43
  %v119 = vunpack.c.l.b16 %v44
  %v120 = vunpack.c.l.b16 %v45
  %v121 = vunpack.c.l.b16 %v46
  %v122 = vpack.c.b16 %v91, %v90
  %v123 = vpack.c.b16 %v93, %v92
  %v124 = vpack.c.b16 %v95, %v94
  %v125 = vpack.c.b16 %v97, %v96
  %v126 = vpack.c.b16 %v99, %v98
  %v127 = vpack.c.b16 %v101, %v100
  %v128 = vpack.c.b16 %v103, %v102
  %v129 = vpack.c.b16 %v105, %v104
  %v130 = vpack.c.b16 %v107, %v106
  %v131 = vpack.c.b16 %v109, %v108
  %v132 = vpack.c.b16 %v111, %v110
  %v133 = vpack.c.b16 %v113, %v112
  %v134 = vpack.c.b16 %v115, %v114
  %v135 = vpack.c.b16 %v117, %v116
  %v136 = vpack.c.b16 %v119, %v118
  %v137 = vpack.c.b16 %v121, %v120
  %154 = vmatpush.bf16.msra.mxu0 %v129
  %155 = vmatpush.bf16.msra.mxu0 %v128
  %156 = vmatpush.bf16.msra.mxu0 %v127
  %157 = vmatpush.bf16.msra.mxu0 %v126
  %158 = vmatpush.bf16.msra.mxu0 %v125
  %159 = vmatpush.bf16.msra.mxu0 %v124
  %160 = vmatpush.bf16.msra.mxu0 %v123
  %161 = vmatpush.bf16.msra.mxu0 %v122
  %162 = vmatmul.bf16.gmra.mxu0 %v54
  %v163 = vpop.f32.mrf.mxu0
  %v164 = vadd.f32 %v49, %v163
  %v165 = vpop.f32.mrf.mxu0
  %166 = vdwg.mxu0
  %167 = vmatpush.bf16.msra.mxu0 %v137
  %168 = vmatpush.bf16.msra.mxu0 %v136
  %169 = vmatpush.bf16.msra.mxu0 %v135
  %170 = vmatpush.bf16.msra.mxu0 %v134
  %171 = vmatpush.bf16.msra.mxu0 %v133
  %172 = vmatpush.bf16.msra.mxu0 %v132
  %173 = vmatpush.bf16.msra.mxu0 %v131
  %174 = vmatpush.bf16.msra.mxu0 %v130
  %175 = vmatmul.bf16.gmra.mxu0 %v55
  %v176 = vpop.f32.mrf.mxu0
  %v177 = vadd.f32 %v164, %v176
  %v178 = vpop.f32.mrf.mxu0
  %179 = vdwg.mxu0
  %v180 = vmax.f32 %v177, 0.0
  %vm181 = vcmask 261120
  %182 = vst.msk [vmem:[%s3] sm:$0xff] %vm181, %v180
  // Predicated region
  $region14: #{dlinknet_forward.14} parent=0 // pred_check
    _
  $region15: #{dlinknet_forward.14} parent=0 // pred_check_branch
    %184 = sbr.rel (0) target = $region17
  $region16: #{dlinknet_forward.14} parent=0 // pred_region
    _
  $region17: #{dlinknet_forward.14} parent=0 // pred_fallthru
    _
  // Predicated region
  $region18: #{dlinknet_forward.14} parent=0 // pred_check
    _
  $region19: #{dlinknet_forward.14} parent=0 // pred_check_branch
    %186 = sbr.rel (0) target = $region21
  $region20: #{dlinknet_forward.14} parent=0 // pred_region
    _
  $region21: #{dlinknet_forward.14} parent=0 // pred_fallthru
    _

// kernel: dlinknet_forward.15
$region0: #{dlinknet_forward.15}
  #allocation0 [shape = 'u32[]', space=smem, size = 0x4, offset = 0x4, fixed_abs, tag = 'smem constant byte address 0x4 - core index']
  #allocation1 [shape = 'u32[72,128]{1,0:T(1,128)}', space=vmem, size = 0x9000, scoped, tag = 'internal scratch']
  %s0 = inlined_call_operand.vmem [shape: bf16[8,384], index: 0, kind: input, shape index: {}]
  %s1 = inlined_call_operand.vmem [shape: bf16[384,32], index: 1, kind: input, shape index: {}]
  %s2 = inlined_call_operand.vmem [shape: f32[1,32], index: 2, kind: input, shape index: {}]
  %s3 = inlined_call_operand.vmem [shape: f32[8,32], index: 3, kind: input, shape index: {}]
  %s4 = inlined_call_operand.vmem [shape: f32[8,32], index: 4, kind: output, shape index: {0}]
  %s5 = inlined_call_operand.vmem [shape: f32[8,32], index: 5, kind: output, shape index: {1}]
  %6 = xla_tuple %s4, %s5
  %s7 = sld [smem:[#allocation0]]
  $region34: #{dlinknet_forward.15} parent=0
    _
  %s9 = ssub.s32 1, %s7
  %s10 = scalar_select 0, %s9, %s7
  // Predicated region
  $region2: #{dlinknet_forward.15} parent=0 // pred_check
    _
  $region3: #{dlinknet_forward.15} parent=0 // pred_check_branch
    %12 = sbr.rel (0) target = $region5
  $region4: #{dlinknet_forward.15} parent=0 // pred_region
    _
  $region5: #{dlinknet_forward.15} parent=0 // pred_fallthru
    _
  // Predicated region
  $region6: #{dlinknet_forward.15} parent=0 // pred_check
    _
  $region7: #{dlinknet_forward.15} parent=0 // pred_check_branch
    %14 = sbr.rel (0) target = $region9
  $region8: #{dlinknet_forward.15} parent=0 // pred_region
    _
  $region9: #{dlinknet_forward.15} parent=0 // pred_fallthru
    _
  // Predicated region
  $region10: #{dlinknet_forward.15} parent=0 // pred_check
    _
  $region11: #{dlinknet_forward.15} parent=0 // pred_check_branch
    %16 = sbr.rel (0) target = $region13
  $region12: #{dlinknet_forward.15} parent=0 // pred_region
    _
  $region13: #{dlinknet_forward.15} parent=0 // pred_fallthru
    _
  // Predicated region
  $region14: #{dlinknet_forward.15} parent=0 // pred_check
    _
  $region15: #{dlinknet_forward.15} parent=0 // pred_check_branch
    %18 = sbr.rel (0) target = $region17
  $region16: #{dlinknet_forward.15} parent=0 // pred_region
    _
  $region17: #{dlinknet_forward.15} parent=0 // pred_fallthru
    _
  %v19 = vld [vmem:[%s0] sm:$0xff]
  %v20 = vld [vmem:[%s0 + $0x8] sm:$0xf]
  %v21 = vld [vmem:[%s1] sm:$0xf]
  %v22 = vld [vmem:[%s1 + $0x4] sm:$0xf]
  %v23 = vld [vmem:[%s1 + $0x8] sm:$0xf]
  %v24 = vld [vmem:[%s1 + $0xc] sm:$0xf]
  %v25 = vld [vmem:[%s1 + $0x10] sm:$0xf]
  %v26 = vld [vmem:[%s1 + $0x14] sm:$0xf]
  %v27 = vld [vmem:[%s1 + $0x18] sm:$0xf]
  %v28 = vld [vmem:[%s1 + $0x1c] sm:$0xf]
  %v29 = vld [vmem:[%s1 + $0x20] sm:$0xf]
  %v30 = vld [vmem:[%s1 + $0x24] sm:$0xf]
  %v31 = vld [vmem:[%s1 + $0x28] sm:$0xf]
  %v32 = vld [vmem:[%s1 + $0x2c] sm:$0xf]
  %v33 = vld [vmem:[%s1 + $0x30] sm:$0xf]
  %v34 = vld [vmem:[%s1 + $0x34] sm:$0xf]
  %v35 = vld [vmem:[%s1 + $0x38] sm:$0xf]
  %v36 = vld [vmem:[%s1 + $0x3c] sm:$0xf]
  %v37 = vld [vmem:[%s1 + $0x40] sm:$0xf]
  %v38 = vld [vmem:[%s1 + $0x44] sm:$0xf]
  %v39 = vld [vmem:[%s1 + $0x48] sm:$0xf]
  %v40 = vld [vmem:[%s1 + $0x4c] sm:$0xf]
  %v41 = vld [vmem:[%s1 + $0x50] sm:$0xf]
  %v42 = vld [vmem:[%s1 + $0x54] sm:$0xf]
  %v43 = vld [vmem:[%s1 + $0x58] sm:$0xf]
  %v44 = vld [vmem:[%s1 + $0x5c] sm:$0xf]
  %v45 = vld [vmem:[%s1 + $0x60] sm:$0xf]
  %v46 = vld [vmem:[%s1 + $0x64] sm:$0xf]
  %v47 = vld [vmem:[%s1 + $0x68] sm:$0xf]
  %v48 = vld [vmem:[%s1 + $0x6c] sm:$0xf]
  %v49 = vld [vmem:[%s1 + $0x70] sm:$0xf]
  %v50 = vld [vmem:[%s1 + $0x74] sm:$0xf]
  %v51 = vld [vmem:[%s1 + $0x78] sm:$0xf]
  %v52 = vld [vmem:[%s1 + $0x7c] sm:$0xf]
  %v53 = vld [vmem:[%s1 + $0x80] sm:$0xf]
  %v54 = vld [vmem:[%s1 + $0x84] sm:$0xf]
  %v55 = vld [vmem:[%s1 + $0x88] sm:$0xf]
  %v56 = vld [vmem:[%s1 + $0x8c] sm:$0xf]
  %v57 = vld [vmem:[%s1 + $0x90] sm:$0xf]
  %v58 = vld [vmem:[%s1 + $0x94] sm:$0xf]
  %v59 = vld [vmem:[%s1 + $0x98] sm:$0xf]
  %v60 = vld [vmem:[%s1 + $0x9c] sm:$0xf]
  %v61 = vld [vmem:[%s1 + $0xa0] sm:$0xf]
  %v62 = vld [vmem:[%s1 + $0xa4] sm:$0xf]
  %v63 = vld [vmem:[%s1 + $0xa8] sm:$0xf]
  %v64 = vld [vmem:[%s1 + $0xac] sm:$0xf]
  %v65 = vld [vmem:[%s1 + $0xb0] sm:$0xf]
  %v66 = vld [vmem:[%s1 + $0xb4] sm:$0xf]
  %v67 = vld [vmem:[%s1 + $0xb8] sm:$0xf]
  %v68 = vld [vmem:[%s1 + $0xbc] sm:$0xf]
  %v69 = vld [vmem:[%s2] sm:$0x1]
  %v71 = vperm.slane %v69, 0
  %v75 = vunpack.c.l.b16 %v19
  %v76 = vunpack.c.h.b16 %v19
  %v77 = vunpack.c.l.b16 %v20
  %v78 = vpack.c.b16 %v75, %v75
  %v79 = vpack.c.b16 %v76, %v76
  %v80 = vpack.c.b16 %v77, %v77
  %v132 = vunpack.c.l.b16 %v21
  %v133 = vunpack.c.l.b16 %v22
  %v134 = vunpack.c.l.b16 %v23
  %v135 = vunpack.c.l.b16 %v24
  %v136 = vunpack.c.l.b16 %v25
  %v137 = vunpack.c.l.b16 %v26
  %v138 = vunpack.c.l.b16 %v27
  %v139 = vunpack.c.l.b16 %v28
  %v140 = vunpack.c.l.b16 %v29
  %v141 = vunpack.c.l.b16 %v30
  %v142 = vunpack.c.l.b16 %v31
  %v143 = vunpack.c.l.b16 %v32
  %v144 = vunpack.c.l.b16 %v33
  %v145 = vunpack.c.l.b16 %v34
  %v146 = vunpack.c.l.b16 %v35
  %v147 = vunpack.c.l.b16 %v36
  %v148 = vunpack.c.l.b16 %v37
  %v149 = vunpack.c.l.b16 %v38
  %v150 = vunpack.c.l.b16 %v39
  %v151 = vunpack.c.l.b16 %v40
  %v152 = vunpack.c.l.b16 %v41
  %v153 = vunpack.c.l.b16 %v42
  %v154 = vunpack.c.l.b16 %v43
  %v155 = vunpack.c.l.b16 %v44
  %v156 = vunpack.c.l.b16 %v45
  %v157 = vunpack.c.l.b16 %v46
  %v158 = vunpack.c.l.b16 %v47
  %v159 = vunpack.c.l.b16 %v48
  %v160 = vunpack.c.l.b16 %v49
  %v161 = vunpack.c.l.b16 %v50
  %v162 = vunpack.c.l.b16 %v51
  %v163 = vunpack.c.l.b16 %v52
  %v164 = vunpack.c.l.b16 %v53
  %v165 = vunpack.c.l.b16 %v54
  %v166 = vunpack.c.l.b16 %v55
  %v167 = vunpack.c.l.b16 %v56
  %v168 = vunpack.c.l.b16 %v57
  %v169 = vunpack.c.l.b16 %v58
  %v170 = vunpack.c.l.b16 %v59
  %v171 = vunpack.c.l.b16 %v60
  %v172 = vunpack.c.l.b16 %v61
  %v173 = vunpack.c.l.b16 %v62
  %v174 = vunpack.c.l.b16 %v63
  %v175 = vunpack.c.l.b16 %v64
  %v176 = vunpack.c.l.b16 %v65
  %v177 = vunpack.c.l.b16 %v66
  %v178 = vunpack.c.l.b16 %v67
  %v179 = vunpack.c.l.b16 %v68
  %v180 = vpack.c.b16 %v133, %v132
  %v181 = vpack.c.b16 %v135, %v134
  %v182 = vpack.c.b16 %v137, %v136
  %v183 = vpack.c.b16 %v139, %v138
  %v184 = vpack.c.b16 %v141, %v140
  %v185 = vpack.c.b16 %v143, %v142
  %v186 = vpack.c.b16 %v145, %v144
  %v187 = vpack.c.b16 %v147, %v146
  %v188 = vpack.c.b16 %v149, %v148
  %v189 = vpack.c.b16 %v151, %v150
  %v190 = vpack.c.b16 %v153, %v152
  %v191 = vpack.c.b16 %v155, %v154
  %v192 = vpack.c.b16 %v157, %v156
  %v193 = vpack.c.b16 %v159, %v158
  %v194 = vpack.c.b16 %v161, %v160
  %v195 = vpack.c.b16 %v163, %v162
  %v196 = vpack.c.b16 %v165, %v164
  %v197 = vpack.c.b16 %v167, %v166
  %v198 = vpack.c.b16 %v169, %v168
  %v199 = vpack.c.b16 %v171, %v170
  %v200 = vpack.c.b16 %v173, %v172
  %v201 = vpack.c.b16 %v175, %v174
  %v202 = vpack.c.b16 %v177, %v176
  %v203 = vpack.c.b16 %v179, %v178
  %228 = vmatpush.bf16.msra.mxu0 %v187
  %229 = vmatpush.bf16.msra.mxu0 %v186
  %230 = vmatpush.bf16.msra.mxu0 %v185
  %231 = vmatpush.bf16.msra.mxu0 %v184
  %232 = vmatpush.bf16.msra.mxu0 %v183
  %233 = vmatpush.bf16.msra.mxu0 %v182
  %234 = vmatpush.bf16.msra.mxu0 %v181
  %235 = vmatpush.bf16.msra.mxu0 %v180
  %236 = vmatmul.bf16.gmra.mxu0 %v78
  %v237 = vpop.f32.mrf.mxu0
  %v238 = vadd.f32 %v71, %v237
  %v239 = vpop.f32.mrf.mxu0
  %240 = vdwg.mxu0
  %241 = vmatpush.bf16.msra.mxu0 %v195
  %242 = vmatpush.bf16.msra.mxu0 %v194
  %243 = vmatpush.bf16.msra.mxu0 %v193
  %244 = vmatpush.bf16.msra.mxu0 %v192
  %245 = vmatpush.bf16.msra.mxu0 %v191
  %246 = vmatpush.bf16.msra.mxu0 %v190
  %247 = vmatpush.bf16.msra.mxu0 %v189
  %248 = vmatpush.bf16.msra.mxu0 %v188
  %249 = vmatmul.bf16.gmra.mxu0 %v79
  %v250 = vpop.f32.mrf.mxu0
  %v251 = vadd.f32 %v238, %v250
  %v252 = vpop.f32.mrf.mxu0
  %253 = vdwg.mxu0
  %254 = vmatpush.bf16.msra.mxu0 %v203
  %255 = vmatpush.bf16.msra.mxu0 %v202
  %256 = vmatpush.bf16.msra.mxu0 %v201
  %257 = vmatpush.bf16.msra.mxu0 %v200
  %258 = vmatpush.bf16.msra.mxu0 %v199
  %259 = vmatpush.bf16.msra.mxu0 %v198
  %260 = vmatpush.bf16.msra.mxu0 %v197
  %261 = vmatpush.bf16.msra.mxu0 %v196
  %262 = vmatmul.bf16.gmra.mxu0 %v80
  %v263 = vpop.f32.mrf.mxu0
  %v264 = vadd.f32 %v251, %v263
  %v265 = vpop.f32.mrf.mxu0
  %266 = vdwg.mxu0
  %v267 = vmax.f32 %v264, 0.0
  %vm268 = vcmask 261120
  %269 = vst.msk [vmem:[%s4] sm:$0xff] %vm268, %v267
  %v270 = vld [vmem:[%s3] sm:$0xff]
  %v271 = vadd.f32 %v267, %v270
  %272 = vst.msk [vmem:[%s5] sm:$0xff] %vm268, %v271
  // Predicated region
  $region18: #{dlinknet_forward.15} parent=0 // pred_check
    _
  $region19: #{dlinknet_forward.15} parent=0 // pred_check_branch
    %274 = sbr.rel (0) target = $region21
  $region20: #{dlinknet_forward.15} parent=0 // pred_region
    _
  $region21: #{dlinknet_forward.15} parent=0 // pred_fallthru
    _
  // Predicated region
  $region22: #{dlinknet_forward.15} parent=0 // pred_check
    _
  $region23: #{dlinknet_forward.15} parent=0 // pred_check_branch
    %276 = sbr.rel (0) target = $region25
  $region24: #{dlinknet_forward.15} parent=0 // pred_region
    _
  $region25: #{dlinknet_forward.15} parent=0 // pred_fallthru
    _
  // Predicated region
  $region26: #{dlinknet_forward.15} parent=0 // pred_check
    _
  $region27: #{dlinknet_forward.15} parent=0 // pred_check_branch
    %278 = sbr.rel (0) target = $region29
  $region28: #{dlinknet_forward.15} parent=0 // pred_region
    _
  $region29: #{dlinknet_forward.15} parent=0 // pred_fallthru
    _
  // Predicated region
  $region30: #{dlinknet_forward.15} parent=0 // pred_check
    _
  $region31: #{dlinknet_forward.15} parent=0 // pred_check_branch
    %280 = sbr.rel (0) target = $region33
  $region32: #{dlinknet_forward.15} parent=0 // pred_region
    _
  $region33: #{dlinknet_forward.15} parent=0 // pred_fallthru
    _

// kernel: dlinknet_forward.18
$region0: #{dlinknet_forward.18}
  #allocation0 [shape = 'u32[]', space=smem, size = 0x4, offset = 0x4, fixed_abs, tag = 'smem constant byte address 0x4 - core index']
  #allocation1 [shape = 'u32[72,128]{1,0:T(1,128)}', space=vmem, size = 0x9000, scoped, tag = 'internal scratch']
  %s0 = inlined_call_operand.vmem [shape: bf16[8,384], index: 0, kind: input, shape index: {}]
  %s1 = inlined_call_operand.vmem [shape: bf16[384,32], index: 1, kind: input, shape index: {}]
  %s2 = inlined_call_operand.vmem [shape: f32[1,32], index: 2, kind: input, shape index: {}]
  %s3 = inlined_call_operand.vmem [shape: f32[8,32], index: 3, kind: input, shape index: {}]
  %s4 = inlined_call_operand.hbm [shape: f32[8,32], index: 4, kind: output, shape index: {0}]
  %s5 = inlined_call_operand.vmem [shape: f32[8,32], index: 5, kind: output, shape index: {1}]
  %6 = xla_tuple %s4, %s5
  %s7 = sld [smem:[#allocation0]]
  $region34: #{dlinknet_forward.18} parent=0
    _
  %s9 = ssub.s32 1, %s7
  %s10 = scalar_select 0, %s9, %s7
  $region1: #{dlinknet_forward.18} parent=0
    #allocation2 [shape = 'u8[4096]{0}', space=vmem, size = 0x1000, scoped, tag = 'output window, operand 0, single buffered']
    #allocation3 [shape = 's32[1]{0}', space=sflag, size = 0x4, scoped, tag = 'scoped memory for dlinknet_forward.18']
    %11 = vsyncpa [#allocation3], 0
    // Predicated region
    $region2: #{dlinknet_forward.18} parent=1 // pred_check
      _
    $region3: #{dlinknet_forward.18} parent=1 // pred_check_branch
      %13 = sbr.rel (0) target = $region5
    $region4: #{dlinknet_forward.18} parent=1 // pred_region
      _
    $region5: #{dlinknet_forward.18} parent=1 // pred_fallthru
      _
    // Predicated region
    $region6: #{dlinknet_forward.18} parent=1 // pred_check
      _
    $region7: #{dlinknet_forward.18} parent=1 // pred_check_branch
      %15 = sbr.rel (0) target = $region9
    $region8: #{dlinknet_forward.18} parent=1 // pred_region
      _
    $region9: #{dlinknet_forward.18} parent=1 // pred_fallthru
      _
    // Predicated region
    $region10: #{dlinknet_forward.18} parent=1 // pred_check
      _
    $region11: #{dlinknet_forward.18} parent=1 // pred_check_branch
      %17 = sbr.rel (0) target = $region13
    $region12: #{dlinknet_forward.18} parent=1 // pred_region
      _
    $region13: #{dlinknet_forward.18} parent=1 // pred_fallthru
      _
    // Predicated region
    $region14: #{dlinknet_forward.18} parent=1 // pred_check
      _
    $region15: #{dlinknet_forward.18} parent=1 // pred_check_branch
      %19 = sbr.rel (0) target = $region17
    $region16: #{dlinknet_forward.18} parent=1 // pred_region
      _
    $region17: #{dlinknet_forward.18} parent=1 // pred_fallthru
      _
    %v20 = vld [vmem:[%s0] sm:$0xff]
    %v21 = vld [vmem:[%s0 + $0x8] sm:$0xf]
    %v22 = vld [vmem:[%s1] sm:$0xf]
    %v23 = vld [vmem:[%s1 + $0x4] sm:$0xf]
    %v24 = vld [vmem:[%s1 + $0x8] sm:$0xf]
    %v25 = vld [vmem:[%s1 + $0xc] sm:$0xf]
    %v26 = vld [vmem:[%s1 + $0x10] sm:$0xf]
    %v27 = vld [vmem:[%s1 + $0x14] sm:$0xf]
    %v28 = vld [vmem:[%s1 + $0x18] sm:$0xf]
    %v29 = vld [vmem:[%s1 + $0x1c] sm:$0xf]
    %v30 = vld [vmem:[%s1 + $0x20] sm:$0xf]
    %v31 = vld [vmem:[%s1 + $0x24] sm:$0xf]
    %v32 = vld [vmem:[%s1 + $0x28] sm:$0xf]
    %v33 = vld [vmem:[%s1 + $0x2c] sm:$0xf]
    %v34 = vld [vmem:[%s1 + $0x30] sm:$0xf]
    %v35 = vld [vmem:[%s1 + $0x34] sm:$0xf]
    %v36 = vld [vmem:[%s1 + $0x38] sm:$0xf]
    %v37 = vld [vmem:[%s1 + $0x3c] sm:$0xf]
    %v38 = vld [vmem:[%s1 + $0x40] sm:$0xf]
    %v39 = vld [vmem:[%s1 + $0x44] sm:$0xf]
    %v40 = vld [vmem:[%s1 + $0x48] sm:$0xf]
    %v41 = vld [vmem:[%s1 + $0x4c] sm:$0xf]
    %v42 = vld [vmem:[%s1 + $0x50] sm:$0xf]
    %v43 = vld [vmem:[%s1 + $0x54] sm:$0xf]
    %v44 = vld [vmem:[%s1 + $0x58] sm:$0xf]
    %v45 = vld [vmem:[%s1 + $0x5c] sm:$0xf]
    %v46 = vld [vmem:[%s1 + $0x60] sm:$0xf]
    %v47 = vld [vmem:[%s1 + $0x64] sm:$0xf]
    %v48 = vld [vmem:[%s1 + $0x68] sm:$0xf]
    %v49 = vld [vmem:[%s1 + $0x6c] sm:$0xf]
    %v50 = vld [vmem:[%s1 + $0x70] sm:$0xf]
    %v51 = vld [vmem:[%s1 + $0x74] sm:$0xf]
    %v52 = vld [vmem:[%s1 + $0x78] sm:$0xf]
    %v53 = vld [vmem:[%s1 + $0x7c] sm:$0xf]
    %v54 = vld [vmem:[%s1 + $0x80] sm:$0xf]
    %v55 = vld [vmem:[%s1 + $0x84] sm:$0xf]
    %v56 = vld [vmem:[%s1 + $0x88] sm:$0xf]
    %v57 = vld [vmem:[%s1 + $0x8c] sm:$0xf]
    %v58 = vld [vmem:[%s1 + $0x90] sm:$0xf]
    %v59 = vld [vmem:[%s1 + $0x94] sm:$0xf]
    %v60 = vld [vmem:[%s1 + $0x98] sm:$0xf]
    %v61 = vld [vmem:[%s1 + $0x9c] sm:$0xf]
    %v62 = vld [vmem:[%s1 + $0xa0] sm:$0xf]
    %v63 = vld [vmem:[%s1 + $0xa4] sm:$0xf]
    %v64 = vld [vmem:[%s1 + $0xa8] sm:$0xf]
    %v65 = vld [vmem:[%s1 + $0xac] sm:$0xf]
    %v66 = vld [vmem:[%s1 + $0xb0] sm:$0xf]
    %v67 = vld [vmem:[%s1 + $0xb4] sm:$0xf]
    %v68 = vld [vmem:[%s1 + $0xb8] sm:$0xf]
    %v69 = vld [vmem:[%s1 + $0xbc] sm:$0xf]
    %v70 = vld [vmem:[%s2] sm:$0x1]
    %v72 = vperm.slane %v70, 0
    %v76 = vunpack.c.l.b16 %v20
    %v77 = vunpack.c.h.b16 %v20
    %v78 = vunpack.c.l.b16 %v21
    %v79 = vpack.c.b16 %v76, %v76
    %v80 = vpack.c.b16 %v77, %v77
    %v81 = vpack.c.b16 %v78, %v78
    %v133 = vunpack.c.l.b16 %v22
    %v134 = vunpack.c.l.b16 %v23
    %v135 = vunpack.c.l.b16 %v24
    %v136 = vunpack.c.l.b16 %v25
    %v137 = vunpack.c.l.b16 %v26
    %v138 = vunpack.c.l.b16 %v27
    %v139 = vunpack.c.l.b16 %v28
    %v140 = vunpack.c.l.b16 %v29
    %v141 = vunpack.c.l.b16 %v30
    %v142 = vunpack.c.l.b16 %v31
    %v143 = vunpack.c.l.b16 %v32
    %v144 = vunpack.c.l.b16 %v33
    %v145 = vunpack.c.l.b16 %v34
    %v146 = vunpack.c.l.b16 %v35
    %v147 = vunpack.c.l.b16 %v36
    %v148 = vunpack.c.l.b16 %v37
    %v149 = vunpack.c.l.b16 %v38
    %v150 = vunpack.c.l.b16 %v39
    %v151 = vunpack.c.l.b16 %v40
    %v152 = vunpack.c.l.b16 %v41
    %v153 = vunpack.c.l.b16 %v42
    %v154 = vunpack.c.l.b16 %v43
    %v155 = vunpack.c.l.b16 %v44
    %v156 = vunpack.c.l.b16 %v45
    %v157 = vunpack.c.l.b16 %v46
    %v158 = vunpack.c.l.b16 %v47
    %v159 = vunpack.c.l.b16 %v48
    %v160 = vunpack.c.l.b16 %v49
    %v161 = vunpack.c.l.b16 %v50
    %v162 = vunpack.c.l.b16 %v51
    %v163 = vunpack.c.l.b16 %v52
    %v164 = vunpack.c.l.b16 %v53
    %v165 = vunpack.c.l.b16 %v54
    %v166 = vunpack.c.l.b16 %v55
    %v167 = vunpack.c.l.b16 %v56
    %v168 = vunpack.c.l.b16 %v57
    %v169 = vunpack.c.l.b16 %v58
    %v170 = vunpack.c.l.b16 %v59
    %v171 = vunpack.c.l.b16 %v60
    %v172 = vunpack.c.l.b16 %v61
    %v173 = vunpack.c.l.b16 %v62
    %v174 = vunpack.c.l.b16 %v63
    %v175 = vunpack.c.l.b16 %v64
    %v176 = vunpack.c.l.b16 %v65
    %v177 = vunpack.c.l.b16 %v66
    %v178 = vunpack.c.l.b16 %v67
    %v179 = vunpack.c.l.b16 %v68
    %v180 = vunpack.c.l.b16 %v69
    %v181 = vpack.c.b16 %v134, %v133
    %v182 = vpack.c.b16 %v136, %v135
    %v183 = vpack.c.b16 %v138, %v137
    %v184 = vpack.c.b16 %v140, %v139
    %v185 = vpack.c.b16 %v142, %v141
    %v186 = vpack.c.b16 %v144, %v143
    %v187 = vpack.c.b16 %v146, %v145
    %v188 = vpack.c.b16 %v148, %v147
    %v189 = vpack.c.b16 %v150, %v149
    %v190 = vpack.c.b16 %v152, %v151
    %v191 = vpack.c.b16 %v154, %v153
    %v192 = vpack.c.b16 %v156, %v155
    %v193 = vpack.c.b16 %v158, %v157
    %v194 = vpack.c.b16 %v160, %v159
    %v195 = vpack.c.b16 %v162, %v161
    %v196 = vpack.c.b16 %v164, %v163
    %v197 = vpack.c.b16 %v166, %v165
    %v198 = vpack.c.b16 %v168, %v167
    %v199 = vpack.c.b16 %v170, %v169
    %v200 = vpack.c.b16 %v172, %v171
    %v201 = vpack.c.b16 %v174, %v173
    %v202 = vpack.c.b16 %v176, %v175
    %v203 = vpack.c.b16 %v178, %v177
    %v204 = vpack.c.b16 %v180, %v179
    %229 = vmatpush.bf16.msra.mxu0 %v188
    %230 = vmatpush.bf16.msra.mxu0 %v187
    %231 = vmatpush.bf16.msra.mxu0 %v186
    %232 = vmatpush.bf16.msra.mxu0 %v185
    %233 = vmatpush.bf16.msra.mxu0 %v184
    %234 = vmatpush.bf16.msra.mxu0 %v183
    %235 = vmatpush.bf16.msra.mxu0 %v182
    %236 = vmatpush.bf16.msra.mxu0 %v181
    %237 = vmatmul.bf16.gmra.mxu0 %v79
    %v238 = vpop.f32.mrf.mxu0
    %v239 = vadd.f32 %v72, %v238
    %v240 = vpop.f32.mrf.mxu0
    %241 = vdwg.mxu0
    %242 = vmatpush.bf16.msra.mxu0 %v196
    %243 = vmatpush.bf16.msra.mxu0 %v195
    %244 = vmatpush.bf16.msra.mxu0 %v194
    %245 = vmatpush.bf16.msra.mxu0 %v193
    %246 = vmatpush.bf16.msra.mxu0 %v192
    %247 = vmatpush.bf16.msra.mxu0 %v191
    %248 = vmatpush.bf16.msra.mxu0 %v190
    %249 = vmatpush.bf16.msra.mxu0 %v189
    %250 = vmatmul.bf16.gmra.mxu0 %v80
    %v251 = vpop.f32.mrf.mxu0
    %v252 = vadd.f32 %v239, %v251
    %v253 = vpop.f32.mrf.mxu0
    %254 = vdwg.mxu0
    %255 = vmatpush.bf16.msra.mxu0 %v204
    %256 = vmatpush.bf16.msra.mxu0 %v203
    %257 = vmatpush.bf16.msra.mxu0 %v202
    %258 = vmatpush.bf16.msra.mxu0 %v201
    %259 = vmatpush.bf16.msra.mxu0 %v200
    %260 = vmatpush.bf16.msra.mxu0 %v199
    %261 = vmatpush.bf16.msra.mxu0 %v198
    %262 = vmatpush.bf16.msra.mxu0 %v197
    %263 = vmatmul.bf16.gmra.mxu0 %v81
    %v264 = vpop.f32.mrf.mxu0
    %v265 = vadd.f32 %v252, %v264
    %v266 = vpop.f32.mrf.mxu0
    %267 = vdwg.mxu0
    %v268 = vmax.f32 %v265, 0.0
    %vm269 = vcmask 261120
    %270 = vst.msk [vmem:[#allocation2] sm:$0xff] %vm269, %v268
    %v271 = vld [vmem:[%s3] sm:$0xff]
    %v272 = vadd.f32 %v268, %v271
    %273 = vst.msk [vmem:[%s5] sm:$0xff] %vm269, %v272
    // Predicated region
    $region18: #{dlinknet_forward.18} parent=1 // pred_check
      _
    $region19: #{dlinknet_forward.18} parent=1 // pred_check_branch
      %275 = sbr.rel (0) target = $region21
    $region20: #{dlinknet_forward.18} parent=1 // pred_region
      %277 = vsyncadd [#allocation3], 0
      %s279 = sshll.u32 [#allocation2], 4
      %s280 = int_to_ptr.vmem [resolvable:$true] %s279
      %s281 = sshll.u32 %s4, 4
      %s282 = int_to_ptr.hbm [resolvable:$true] %s281
      %284 = dma.vmem_to_hbm [thread:$0]  %s280, 128, %s282, [#allocation3]
    $region21: #{dlinknet_forward.18} parent=1 // pred_fallthru
      _
    // Predicated region
    $region22: #{dlinknet_forward.18} parent=1 // pred_check
      _
    $region23: #{dlinknet_forward.18} parent=1 // pred_check_branch
      %286 = sbr.rel (0) target = $region25
    $region24: #{dlinknet_forward.18} parent=1 // pred_region
      _
    $region25: #{dlinknet_forward.18} parent=1 // pred_fallthru
      _
    // Predicated region
    $region26: #{dlinknet_forward.18} parent=1 // pred_check
      _
    $region27: #{dlinknet_forward.18} parent=1 // pred_check_branch
      %288 = sbr.rel (0) target = $region29
    $region28: #{dlinknet_forward.18} parent=1 // pred_region
      %290 = dma.done [#allocation3], 128
    $region29: #{dlinknet_forward.18} parent=1 // pred_fallthru
      _
    // Predicated region
    $region30: #{dlinknet_forward.18} parent=1 // pred_check
      _
    $region31: #{dlinknet_forward.18} parent=1 // pred_check_branch
      %292 = sbr.rel (0) target = $region33
    $region32: #{dlinknet_forward.18} parent=1 // pred_region
      _
    $region33: #{dlinknet_forward.18} parent=1 // pred_fallthru
      _
    %293 = vsyncpa [#allocation3], 1

// kernel: tile.18
$region0: #{tile.18}
  #allocation0 [shape = 's32[1]{0}', space=sflag, size = 0x4, scoped, tag = 'scoped memory for tile.18']
  %s0 = inlined_call_operand.vmem [shape: f32[16], index: 0, kind: input, shape index: {}]
  %s1 = inlined_call_operand.vmem [shape: f32[4,16], index: 1, kind: output, shape index: {}]
  // Predicated region
  $region2: #{tile.18} parent=0 // pred_check
    _
  $region3: #{tile.18} parent=0 // pred_check_branch
    %3 = sbr.rel (0) target = $region5
  $region4: #{tile.18} parent=0 // pred_region
    _
  $region5: #{tile.18} parent=0 // pred_fallthru
    _
  %v4 = vld [vmem:[%s0] ss:$0 sm:$0xff]
  %5 = vst [vmem:[%s1] sm:$0xf] %v4

// kernel: tile.19
$region0: #{tile.19}
  %s0 = inlined_call_operand.vmem [shape: f32[4,16], index: 0, kind: input, shape index: {}]
  %s1 = inlined_call_operand.vmem [shape: f32[1,64], index: 1, kind: output, shape index: {}]
  $region1: #{tile.19} parent=0
    #allocation0 [shape = 'u8[4096]{0}', space=vmem, size = 0x1000, scoped, tag = 'scoped mem for output reshape']
    #allocation1 [shape = 'u8[4096]{0}', space=vmem, size = 0x1000, scoped, tag = 'scoped mem for input reshape']
    %s3 = ssub.s32 16, 1
    %v4 = vld [vmem:[%s0] sm:%s3]
    %5 = vst [vmem:[#allocation1] sm:%s3] %v4
    %v6 = vld [vmem:[#allocation1] sm:$0x1]
    %vm7 = vcmask 130048
    %8 = vst.msk [vmem:[#allocation0] sm:$0x1] %vm7, %v6
    %s9 = scalar_lea.vmem [#allocation1], 3
    %v10 = vld [vmem:[%s9] sm:$0x1]
    %11 = vrot.lane.b32.xlu0 %v10, 48
    %v12 = vpop.permute.xlu0 %11
    %vm13 = vcmask 523648
    %14 = vst.msk [vmem:[#allocation0] sm:$0x1] %vm13, %v12
    %s15 = scalar_lea.vmem [#allocation1], 2
    %v16 = vld [vmem:[%s15] sm:$0x1]
    %17 = vrot.lane.b32.xlu0 %v16, 32
    %v18 = vpop.permute.xlu0 %17
    %vm19 = vcmask 392448
    %20 = vst.msk [vmem:[#allocation0] sm:$0x1] %vm19, %v18
    %s21 = scalar_lea.vmem [#allocation1], 1
    %v22 = vld [vmem:[%s21] sm:$0x1]
    %23 = vrot.lane.b32.xlu0 %v22, 16
    %v24 = vpop.permute.xlu0 %23
    %vm25 = vcmask 261248
    %26 = vst.msk [vmem:[#allocation0] sm:$0x1] %vm25, %v24
    %s28 = ssub.s32 2, 1
    %v29 = vld [vmem:[#allocation0] sm:%s28]
    %s31 = ssub.s32 2, 1
    %32 = vst [vmem:[%s1] sm:%s31] %v29

// kernel: dlinknet_forward.19
$region0: #{dlinknet_forward.19}
  #allocation0 [shape = 'u32[]', space=smem, size = 0x4, offset = 0x4, fixed_abs, tag = 'smem constant byte address 0x4 - core index']
  #allocation1 [shape = 'u32[72,128]{1,0:T(1,128)}', space=vmem, size = 0x9000, scoped, tag = 'internal scratch']
  %s0 = inlined_call_operand.vmem [shape: bf16[8,384], index: 0, kind: input, shape index: {}]
  %s1 = inlined_call_operand.vmem [shape: bf16[384,64], index: 1, kind: input, shape index: {}]
  %s2 = inlined_call_operand.vmem [shape: f32[1,64], index: 2, kind: input, shape index: {}]
  %s3 = inlined_call_operand.vmem [shape: f32[8,64], index: 3, kind: input, shape index: {}]
  %s4 = inlined_call_operand.vmem [shape: f32[8,64], index: 4, kind: output, shape index: {}]
  %s5 = sld [smem:[#allocation0]]
  $region26: #{dlinknet_forward.19} parent=0
    _
  %s7 = ssub.s32 1, %s5
  %s8 = scalar_select 0, %s7, %s5
  // Predicated region
  $region2: #{dlinknet_forward.19} parent=0 // pred_check
    _
  $region3: #{dlinknet_forward.19} parent=0 // pred_check_branch
    %10 = sbr.rel (0) target = $region5
  $region4: #{dlinknet_forward.19} parent=0 // pred_region
    _
  $region5: #{dlinknet_forward.19} parent=0 // pred_fallthru
    _
  // Predicated region
  $region6: #{dlinknet_forward.19} parent=0 // pred_check
    _
  $region7: #{dlinknet_forward.19} parent=0 // pred_check_branch
    %12 = sbr.rel (0) target = $region9
  $region8: #{dlinknet_forward.19} parent=0 // pred_region
    _
  $region9: #{dlinknet_forward.19} parent=0 // pred_fallthru
    _
  // Predicated region
  $region10: #{dlinknet_forward.19} parent=0 // pred_check
    _
  $region11: #{dlinknet_forward.19} parent=0 // pred_check_branch
    %14 = sbr.rel (0) target = $region13
  $region12: #{dlinknet_forward.19} parent=0 // pred_region
    _
  $region13: #{dlinknet_forward.19} parent=0 // pred_fallthru
    _
  // Predicated region
  $region14: #{dlinknet_forward.19} parent=0 // pred_check
    _
  $region15: #{dlinknet_forward.19} parent=0 // pred_check_branch
    %16 = sbr.rel (0) target = $region17
  $region16: #{dlinknet_forward.19} parent=0 // pred_region
    _
  $region17: #{dlinknet_forward.19} parent=0 // pred_fallthru
    _
  %v17 = vld [vmem:[%s0] sm:$0xff]
  %v18 = vld [vmem:[%s0 + $0x8] sm:$0xf]
  %v19 = vld [vmem:[%s1] sm:$0xf]
  %v20 = vld [vmem:[%s1 + $0x4] sm:$0xf]
  %v21 = vld [vmem:[%s1 + $0x8] sm:$0xf]
  %v22 = vld [vmem:[%s1 + $0xc] sm:$0xf]
  %v23 = vld [vmem:[%s1 + $0x10] sm:$0xf]
  %v24 = vld [vmem:[%s1 + $0x14] sm:$0xf]
  %v25 = vld [vmem:[%s1 + $0x18] sm:$0xf]
  %v26 = vld [vmem:[%s1 + $0x1c] sm:$0xf]
  %v27 = vld [vmem:[%s1 + $0x20] sm:$0xf]
  %v28 = vld [vmem:[%s1 + $0x24] sm:$0xf]
  %v29 = vld [vmem:[%s1 + $0x28] sm:$0xf]
  %v30 = vld [vmem:[%s1 + $0x2c] sm:$0xf]
  %v31 = vld [vmem:[%s1 + $0x30] sm:$0xf]
  %v32 = vld [vmem:[%s1 + $0x34] sm:$0xf]
  %v33 = vld [vmem:[%s1 + $0x38] sm:$0xf]
  %v34 = vld [vmem:[%s1 + $0x3c] sm:$0xf]
  %v35 = vld [vmem:[%s1 + $0x40] sm:$0xf]
  %v36 = vld [vmem:[%s1 + $0x44] sm:$0xf]
  %v37 = vld [vmem:[%s1 + $0x48] sm:$0xf]
  %v38 = vld [vmem:[%s1 + $0x4c] sm:$0xf]
  %v39 = vld [vmem:[%s1 + $0x50] sm:$0xf]
  %v40 = vld [vmem:[%s1 + $0x54] sm:$0xf]
  %v41 = vld [vmem:[%s1 + $0x58] sm:$0xf]
  %v42 = vld [vmem:[%s1 + $0x5c] sm:$0xf]
  %v43 = vld [vmem:[%s1 + $0x60] sm:$0xf]
  %v44 = vld [vmem:[%s1 + $0x64] sm:$0xf]
  %v45 = vld [vmem:[%s1 + $0x68] sm:$0xf]
  %v46 = vld [vmem:[%s1 + $0x6c] sm:$0xf]
  %v47 = vld [vmem:[%s1 + $0x70] sm:$0xf]
  %v48 = vld [vmem:[%s1 + $0x74] sm:$0xf]
  %v49 = vld [vmem:[%s1 + $0x78] sm:$0xf]
  %v50 = vld [vmem:[%s1 + $0x7c] sm:$0xf]
  %v51 = vld [vmem:[%s1 + $0x80] sm:$0xf]
  %v52 = vld [vmem:[%s1 + $0x84] sm:$0xf]
  %v53 = vld [vmem:[%s1 + $0x88] sm:$0xf]
  %v54 = vld [vmem:[%s1 + $0x8c] sm:$0xf]
  %v55 = vld [vmem:[%s1 + $0x90] sm:$0xf]
  %v56 = vld [vmem:[%s1 + $0x94] sm:$0xf]
  %v57 = vld [vmem:[%s1 + $0x98] sm:$0xf]
  %v58 = vld [vmem:[%s1 + $0x9c] sm:$0xf]
  %v59 = vld [vmem:[%s1 + $0xa0] sm:$0xf]
  %v60 = vld [vmem:[%s1 + $0xa4] sm:$0xf]
  %v61 = vld [vmem:[%s1 + $0xa8] sm:$0xf]
  %v62 = vld [vmem:[%s1 + $0xac] sm:$0xf]
  %v63 = vld [vmem:[%s1 + $0xb0] sm:$0xf]
  %v64 = vld [vmem:[%s1 + $0xb4] sm:$0xf]
  %v65 = vld [vmem:[%s1 + $0xb8] sm:$0xf]
  %v66 = vld [vmem:[%s1 + $0xbc] sm:$0xf]
  %v67 = vld [vmem:[%s2] sm:$0x1]
  %v69 = vperm.slane %v67, 0
  %v73 = vunpack.c.l.b16 %v17
  %v74 = vunpack.c.h.b16 %v17
  %v75 = vunpack.c.l.b16 %v18
  %v76 = vpack.c.b16 %v73, %v73
  %v77 = vpack.c.b16 %v74, %v74
  %v78 = vpack.c.b16 %v75, %v75
  %v130 = vunpack.c.l.b16 %v19
  %v131 = vunpack.c.l.b16 %v20
  %v132 = vunpack.c.l.b16 %v21
  %v133 = vunpack.c.l.b16 %v22
  %v134 = vunpack.c.l.b16 %v23
  %v135 = vunpack.c.l.b16 %v24
  %v136 = vunpack.c.l.b16 %v25
  %v137 = vunpack.c.l.b16 %v26
  %v138 = vunpack.c.l.b16 %v27
  %v139 = vunpack.c.l.b16 %v28
  %v140 = vunpack.c.l.b16 %v29
  %v141 = vunpack.c.l.b16 %v30
  %v142 = vunpack.c.l.b16 %v31
  %v143 = vunpack.c.l.b16 %v32
  %v144 = vunpack.c.l.b16 %v33
  %v145 = vunpack.c.l.b16 %v34
  %v146 = vunpack.c.l.b16 %v35
  %v147 = vunpack.c.l.b16 %v36
  %v148 = vunpack.c.l.b16 %v37
  %v149 = vunpack.c.l.b16 %v38
  %v150 = vunpack.c.l.b16 %v39
  %v151 = vunpack.c.l.b16 %v40
  %v152 = vunpack.c.l.b16 %v41
  %v153 = vunpack.c.l.b16 %v42
  %v154 = vunpack.c.l.b16 %v43
  %v155 = vunpack.c.l.b16 %v44
  %v156 = vunpack.c.l.b16 %v45
  %v157 = vunpack.c.l.b16 %v46
  %v158 = vunpack.c.l.b16 %v47
  %v159 = vunpack.c.l.b16 %v48
  %v160 = vunpack.c.l.b16 %v49
  %v161 = vunpack.c.l.b16 %v50
  %v162 = vunpack.c.l.b16 %v51
  %v163 = vunpack.c.l.b16 %v52
  %v164 = vunpack.c.l.b16 %v53
  %v165 = vunpack.c.l.b16 %v54
  %v166 = vunpack.c.l.b16 %v55
  %v167 = vunpack.c.l.b16 %v56
  %v168 = vunpack.c.l.b16 %v57
  %v169 = vunpack.c.l.b16 %v58
  %v170 = vunpack.c.l.b16 %v59
  %v171 = vunpack.c.l.b16 %v60
  %v172 = vunpack.c.l.b16 %v61
  %v173 = vunpack.c.l.b16 %v62
  %v174 = vunpack.c.l.b16 %v63
  %v175 = vunpack.c.l.b16 %v64
  %v176 = vunpack.c.l.b16 %v65
  %v177 = vunpack.c.l.b16 %v66
  %v178 = vpack.c.b16 %v131, %v130
  %v179 = vpack.c.b16 %v133, %v132
  %v180 = vpack.c.b16 %v135, %v134
  %v181 = vpack.c.b16 %v137, %v136
  %v182 = vpack.c.b16 %v139, %v138
  %v183 = vpack.c.b16 %v141, %v140
  %v184 = vpack.c.b16 %v143, %v142
  %v185 = vpack.c.b16 %v145, %v144
  %v186 = vpack.c.b16 %v147, %v146
  %v187 = vpack.c.b16 %v149, %v148
  %v188 = vpack.c.b16 %v151, %v150
  %v189 = vpack.c.b16 %v153, %v152
  %v190 = vpack.c.b16 %v155, %v154
  %v191 = vpack.c.b16 %v157, %v156
  %v192 = vpack.c.b16 %v159, %v158
  %v193 = vpack.c.b16 %v161, %v160
  %v194 = vpack.c.b16 %v163, %v162
  %v195 = vpack.c.b16 %v165, %v164
  %v196 = vpack.c.b16 %v167, %v166
  %v197 = vpack.c.b16 %v169, %v168
  %v198 = vpack.c.b16 %v171, %v170
  %v199 = vpack.c.b16 %v173, %v172
  %v200 = vpack.c.b16 %v175, %v174
  %v201 = vpack.c.b16 %v177, %v176
  %226 = vmatpush.bf16.msra.mxu0 %v185
  %227 = vmatpush.bf16.msra.mxu0 %v184
  %228 = vmatpush.bf16.msra.mxu0 %v183
  %229 = vmatpush.bf16.msra.mxu0 %v182
  %230 = vmatpush.bf16.msra.mxu0 %v181
  %231 = vmatpush.bf16.msra.mxu0 %v180
  %232 = vmatpush.bf16.msra.mxu0 %v179
  %233 = vmatpush.bf16.msra.mxu0 %v178
  %234 = vmatmul.bf16.gmra.mxu0 %v76
  %v235 = vpop.f32.mrf.mxu0
  %v236 = vadd.f32 %v69, %v235
  %v237 = vpop.f32.mrf.mxu0
  %238 = vdwg.mxu0
  %239 = vmatpush.bf16.msra.mxu0 %v193
  %240 = vmatpush.bf16.msra.mxu0 %v192
  %241 = vmatpush.bf16.msra.mxu0 %v191
  %242 = vmatpush.bf16.msra.mxu0 %v190
  %243 = vmatpush.bf16.msra.mxu0 %v189
  %244 = vmatpush.bf16.msra.mxu0 %v188
  %245 = vmatpush.bf16.msra.mxu0 %v187
  %246 = vmatpush.bf16.msra.mxu0 %v186
  %247 = vmatmul.bf16.gmra.mxu0 %v77
  %v248 = vpop.f32.mrf.mxu0
  %v249 = vadd.f32 %v236, %v248
  %v250 = vpop.f32.mrf.mxu0
  %251 = vdwg.mxu0
  %252 = vmatpush.bf16.msra.mxu0 %v201
  %253 = vmatpush.bf16.msra.mxu0 %v200
  %254 = vmatpush.bf16.msra.mxu0 %v199
  %255 = vmatpush.bf16.msra.mxu0 %v198
  %256 = vmatpush.bf16.msra.mxu0 %v197
  %257 = vmatpush.bf16.msra.mxu0 %v196
  %258 = vmatpush.bf16.msra.mxu0 %v195
  %259 = vmatpush.bf16.msra.mxu0 %v194
  %260 = vmatmul.bf16.gmra.mxu0 %v78
  %v261 = vpop.f32.mrf.mxu0
  %v262 = vadd.f32 %v249, %v261
  %v263 = vpop.f32.mrf.mxu0
  %264 = vdwg.mxu0
  %v265 = vld [vmem:[%s3] sm:$0xff]
  %v266 = vadd.f32 %v262, %v265
  %v267 = vmax.f32 %v266, 0.0
  %vm268 = vcmask 523264
  %269 = vst.msk [vmem:[%s4] sm:$0xff] %vm268, %v267
  // Predicated region
  $region18: #{dlinknet_forward.19} parent=0 // pred_check
    _
  $region19: #{dlinknet_forward.19} parent=0 // pred_check_branch
    %271 = sbr.rel (0) target = $region21
  $region20: #{dlinknet_forward.19} parent=0 // pred_region
    _
  $region21: #{dlinknet_forward.19} parent=0 // pred_fallthru
    _
  // Predicated region
  $region22: #{dlinknet_forward.19} parent=0 // pred_check
    _
  $region23: #{dlinknet_forward.19} parent=0 // pred_check_branch
    %273 = sbr.rel (0) target = $region25
  $region24: #{dlinknet_forward.19} parent=0 // pred_region
    _
  $region25: #{dlinknet_forward.19} parent=0 // pred_fallthru
    _

// kernel: tile.23
$region0: #{tile.23}
  #allocation0 [shape = 's32[1]{0}', space=sflag, size = 0x4, scoped, tag = 'scoped memory for tile.23']
  %s0 = inlined_call_operand.vmem [shape: f32[8], index: 0, kind: input, shape index: {}]
  %s1 = inlined_call_operand.vmem [shape: f32[4,8], index: 1, kind: output, shape index: {}]
  // Predicated region
  $region2: #{tile.23} parent=0 // pred_check
    _
  $region3: #{tile.23} parent=0 // pred_check_branch
    %3 = sbr.rel (0) target = $region5
  $region4: #{tile.23} parent=0 // pred_region
    _
  $region5: #{tile.23} parent=0 // pred_fallthru
    _
  %v4 = vld [vmem:[%s0] ss:$0 sm:$0xff]
  %5 = vst [vmem:[%s1] sm:$0xf] %v4

// kernel: tile.24
$region0: #{tile.24}
  %s0 = inlined_call_operand.vmem [shape: f32[4,8], index: 0, kind: input, shape index: {}]
  %s1 = inlined_call_operand.vmem [shape: f32[1,32], index: 1, kind: output, shape index: {}]
  $region1: #{tile.24} parent=0
    #allocation0 [shape = 'u8[4096]{0}', space=vmem, size = 0x1000, scoped, tag = 'scoped mem for output reshape']
    #allocation1 [shape = 'u8[4096]{0}', space=vmem, size = 0x1000, scoped, tag = 'scoped mem for input reshape']
    %s3 = ssub.s32 16, 1
    %v4 = vld [vmem:[%s0] sm:%s3]
    %5 = vst [vmem:[#allocation1] sm:%s3] %v4
    %v6 = vld [vmem:[#allocation1] sm:$0x1]
    %vm7 = vcmask 64512
    %8 = vst.msk [vmem:[#allocation0] sm:$0x1] %vm7, %v6
    %s9 = scalar_lea.vmem [#allocation1], 3
    %v10 = vld [vmem:[%s9] sm:$0x1]
    %11 = vrot.lane.b32.xlu0 %v10, 24
    %v12 = vpop.permute.xlu0 %11
    %vm13 = vcmask 261312
    %14 = vst.msk [vmem:[#allocation0] sm:$0x1] %vm13, %v12
    %s15 = scalar_lea.vmem [#allocation1], 2
    %v16 = vld [vmem:[%s15] sm:$0x1]
    %17 = vrot.lane.b32.xlu0 %v16, 16
    %v18 = vpop.permute.xlu0 %17
    %vm19 = vcmask 195712
    %20 = vst.msk [vmem:[#allocation0] sm:$0x1] %vm19, %v18
    %s21 = scalar_lea.vmem [#allocation1], 1
    %v22 = vld [vmem:[%s21] sm:$0x1]
    %23 = vrot.lane.b32.xlu0 %v22, 8
    %v24 = vpop.permute.xlu0 %23
    %vm25 = vcmask 130112
    %26 = vst.msk [vmem:[#allocation0] sm:$0x1] %vm25, %v24
    %s28 = ssub.s32 2, 1
    %v29 = vld [vmem:[#allocation0] sm:%s28]
    %s31 = ssub.s32 2, 1
    %32 = vst [vmem:[%s1] sm:%s31] %v29

// kernel: dlinknet_forward.20
$region0: #{dlinknet_forward.20}
  #allocation0 [shape = 'u32[]', space=smem, size = 0x4, offset = 0x4, fixed_abs, tag = 'smem constant byte address 0x4 - core index']
  #allocation1 [shape = 'u32[72,128]{1,0:T(1,128)}', space=vmem, size = 0x9000, scoped, tag = 'internal scratch']
  %s0 = inlined_call_operand.vmem [shape: bf16[32,256], index: 0, kind: input, shape index: {}]
  %s1 = inlined_call_operand.vmem [shape: bf16[256,32], index: 1, kind: input, shape index: {}]
  %s2 = inlined_call_operand.vmem [shape: f32[1,32], index: 2, kind: input, shape index: {}]
  %s3 = inlined_call_operand.vmem [shape: f32[32,32], index: 3, kind: input, shape index: {}]
  %s4 = inlined_call_operand.vmem [shape: f32[32,32], index: 4, kind: output, shape index: {}]
  %s5 = sld [smem:[#allocation0]]
  $region26: #{dlinknet_forward.20} parent=0
    _
  %s7 = ssub.s32 1, %s5
  %s8 = scalar_select 0, %s7, %s5
  // Predicated region
  $region2: #{dlinknet_forward.20} parent=0 // pred_check
    _
  $region3: #{dlinknet_forward.20} parent=0 // pred_check_branch
    %10 = sbr.rel (0) target = $region5
  $region4: #{dlinknet_forward.20} parent=0 // pred_region
    _
  $region5: #{dlinknet_forward.20} parent=0 // pred_fallthru
    _
  // Predicated region
  $region6: #{dlinknet_forward.20} parent=0 // pred_check
    _
  $region7: #{dlinknet_forward.20} parent=0 // pred_check_branch
    %12 = sbr.rel (0) target = $region9
  $region8: #{dlinknet_forward.20} parent=0 // pred_region
    _
  $region9: #{dlinknet_forward.20} parent=0 // pred_fallthru
    _
  // Predicated region
  $region10: #{dlinknet_forward.20} parent=0 // pred_check
    _
  $region11: #{dlinknet_forward.20} parent=0 // pred_check_branch
    %14 = sbr.rel (0) target = $region13
  $region12: #{dlinknet_forward.20} parent=0 // pred_region
    _
  $region13: #{dlinknet_forward.20} parent=0 // pred_fallthru
    _
  // Predicated region
  $region14: #{dlinknet_forward.20} parent=0 // pred_check
    _
  $region15: #{dlinknet_forward.20} parent=0 // pred_check_branch
    %16 = sbr.rel (0) target = $region17
  $region16: #{dlinknet_forward.20} parent=0 // pred_region
    _
  $region17: #{dlinknet_forward.20} parent=0 // pred_fallthru
    _
  %v17 = vld [vmem:[%s0] sm:$0xff]
  %v18 = vld [vmem:[%s0 + $0x8] sm:$0xff]
  %v19 = vld [vmem:[%s0 + $0x10] sm:$0xff]
  %v20 = vld [vmem:[%s0 + $0x18] sm:$0xff]
  %v21 = vld [vmem:[%s1] sm:$0xf]
  %v22 = vld [vmem:[%s1 + $0x4] sm:$0xf]
  %v23 = vld [vmem:[%s1 + $0x8] sm:$0xf]
  %v24 = vld [vmem:[%s1 + $0xc] sm:$0xf]
  %v25 = vld [vmem:[%s1 + $0x10] sm:$0xf]
  %v26 = vld [vmem:[%s1 + $0x14] sm:$0xf]
  %v27 = vld [vmem:[%s1 + $0x18] sm:$0xf]
  %v28 = vld [vmem:[%s1 + $0x1c] sm:$0xf]
  %v29 = vld [vmem:[%s1 + $0x20] sm:$0xf]
  %v30 = vld [vmem:[%s1 + $0x24] sm:$0xf]
  %v31 = vld [vmem:[%s1 + $0x28] sm:$0xf]
  %v32 = vld [vmem:[%s1 + $0x2c] sm:$0xf]
  %v33 = vld [vmem:[%s1 + $0x30] sm:$0xf]
  %v34 = vld [vmem:[%s1 + $0x34] sm:$0xf]
  %v35 = vld [vmem:[%s1 + $0x38] sm:$0xf]
  %v36 = vld [vmem:[%s1 + $0x3c] sm:$0xf]
  %v37 = vld [vmem:[%s1 + $0x40] sm:$0xf]
  %v38 = vld [vmem:[%s1 + $0x44] sm:$0xf]
  %v39 = vld [vmem:[%s1 + $0x48] sm:$0xf]
  %v40 = vld [vmem:[%s1 + $0x4c] sm:$0xf]
  %v41 = vld [vmem:[%s1 + $0x50] sm:$0xf]
  %v42 = vld [vmem:[%s1 + $0x54] sm:$0xf]
  %v43 = vld [vmem:[%s1 + $0x58] sm:$0xf]
  %v44 = vld [vmem:[%s1 + $0x5c] sm:$0xf]
  %v45 = vld [vmem:[%s1 + $0x60] sm:$0xf]
  %v46 = vld [vmem:[%s1 + $0x64] sm:$0xf]
  %v47 = vld [vmem:[%s1 + $0x68] sm:$0xf]
  %v48 = vld [vmem:[%s1 + $0x6c] sm:$0xf]
  %v49 = vld [vmem:[%s1 + $0x70] sm:$0xf]
  %v50 = vld [vmem:[%s1 + $0x74] sm:$0xf]
  %v51 = vld [vmem:[%s1 + $0x78] sm:$0xf]
  %v52 = vld [vmem:[%s1 + $0x7c] sm:$0xf]
  %v53 = vld [vmem:[%s2] sm:$0x1]
  %v55 = vperm.slane %v53, 0
  %v61 = vunpack.c.l.b16 %v17
  %v62 = vunpack.c.h.b16 %v17
  %v63 = vunpack.c.l.b16 %v18
  %v64 = vunpack.c.h.b16 %v18
  %v65 = vunpack.c.l.b16 %v19
  %v66 = vunpack.c.h.b16 %v19
  %v67 = vunpack.c.l.b16 %v20
  %v68 = vunpack.c.h.b16 %v20
  %v69 = vpack.c.b16 %v63, %v61
  %v70 = vpack.c.b16 %v64, %v62
  %v71 = vpack.c.b16 %v67, %v65
  %v72 = vpack.c.b16 %v68, %v66
  %v109 = vunpack.c.l.b16 %v21
  %v110 = vunpack.c.l.b16 %v22
  %v111 = vunpack.c.l.b16 %v23
  %v112 = vunpack.c.l.b16 %v24
  %v113 = vunpack.c.l.b16 %v25
  %v114 = vunpack.c.l.b16 %v26
  %v115 = vunpack.c.l.b16 %v27
  %v116 = vunpack.c.l.b16 %v28
  %v117 = vunpack.c.l.b16 %v29
  %v118 = vunpack.c.l.b16 %v30
  %v119 = vunpack.c.l.b16 %v31
  %v120 = vunpack.c.l.b16 %v32
  %v121 = vunpack.c.l.b16 %v33
  %v122 = vunpack.c.l.b16 %v34
  %v123 = vunpack.c.l.b16 %v35
  %v124 = vunpack.c.l.b16 %v36
  %v125 = vunpack.c.l.b16 %v37
  %v126 = vunpack.c.l.b16 %v38
  %v127 = vunpack.c.l.b16 %v39
  %v128 = vunpack.c.l.b16 %v40
  %v129 = vunpack.c.l.b16 %v41
  %v130 = vunpack.c.l.b16 %v42
  %v131 = vunpack.c.l.b16 %v43
  %v132 = vunpack.c.l.b16 %v44
  %v133 = vunpack.c.l.b16 %v45
  %v134 = vunpack.c.l.b16 %v46
  %v135 = vunpack.c.l.b16 %v47
  %v136 = vunpack.c.l.b16 %v48
  %v137 = vunpack.c.l.b16 %v49
  %v138 = vunpack.c.l.b16 %v50
  %v139 = vunpack.c.l.b16 %v51
  %v140 = vunpack.c.l.b16 %v52
  %v141 = vpack.c.b16 %v110, %v109
  %v142 = vpack.c.b16 %v112, %v111
  %v143 = vpack.c.b16 %v114, %v113
  %v144 = vpack.c.b16 %v116, %v115
  %v145 = vpack.c.b16 %v118, %v117
  %v146 = vpack.c.b16 %v120, %v119
  %v147 = vpack.c.b16 %v122, %v121
  %v148 = vpack.c.b16 %v124, %v123
  %v149 = vpack.c.b16 %v126, %v125
  %v150 = vpack.c.b16 %v128, %v127
  %v151 = vpack.c.b16 %v130, %v129
  %v152 = vpack.c.b16 %v132, %v131
  %v153 = vpack.c.b16 %v134, %v133
  %v154 = vpack.c.b16 %v136, %v135
  %v155 = vpack.c.b16 %v138, %v137
  %v156 = vpack.c.b16 %v140, %v139
  %173 = vmatpush.bf16.msra.mxu0 %v148
  %174 = vmatpush.bf16.msra.mxu0 %v147
  %175 = vmatpush.bf16.msra.mxu0 %v146
  %176 = vmatpush.bf16.msra.mxu0 %v145
  %177 = vmatpush.bf16.msra.mxu0 %v144
  %178 = vmatpush.bf16.msra.mxu0 %v143
  %179 = vmatpush.bf16.msra.mxu0 %v142
  %180 = vmatpush.bf16.msra.mxu0 %v141
  %181 = vmatmul.bf16.gmra.mxu0 %v69
  %v182 = vpop.f32.mrf.mxu0
  %v183 = vadd.f32 %v55, %v182
  %v184 = vpop.f32.mrf.mxu0
  %v185 = vadd.f32 %v55, %v184
  %186 = vmatmul.bf16.gmra.mxu0 %v71
  %v187 = vpop.f32.mrf.mxu0
  %v188 = vadd.f32 %v55, %v187
  %v189 = vpop.f32.mrf.mxu0
  %v190 = vadd.f32 %v55, %v189
  %191 = vdwg.mxu0
  %192 = vmatpush.bf16.msra.mxu0 %v156
  %193 = vmatpush.bf16.msra.mxu0 %v155
  %194 = vmatpush.bf16.msra.mxu0 %v154
  %195 = vmatpush.bf16.msra.mxu0 %v153
  %196 = vmatpush.bf16.msra.mxu0 %v152
  %197 = vmatpush.bf16.msra.mxu0 %v151
  %198 = vmatpush.bf16.msra.mxu0 %v150
  %199 = vmatpush.bf16.msra.mxu0 %v149
  %200 = vmatmul.bf16.gmra.mxu0 %v70
  %v201 = vpop.f32.mrf.mxu0
  %v202 = vadd.f32 %v183, %v201
  %v203 = vpop.f32.mrf.mxu0
  %v204 = vadd.f32 %v185, %v203
  %205 = vmatmul.bf16.gmra.mxu0 %v72
  %v206 = vpop.f32.mrf.mxu0
  %v207 = vadd.f32 %v188, %v206
  %v208 = vpop.f32.mrf.mxu0
  %v209 = vadd.f32 %v190, %v208
  %210 = vdwg.mxu0
  %v211 = vld [vmem:[%s3] sm:$0xff]
  %v212 = vld [vmem:[%s3 + $0x8] sm:$0xff]
  %v213 = vld [vmem:[%s3 + $0x10] sm:$0xff]
  %v214 = vld [vmem:[%s3 + $0x18] sm:$0xff]
  %v215 = vadd.f32 %v202, %v211
  %v216 = vadd.f32 %v204, %v212
  %v217 = vadd.f32 %v207, %v213
  %v218 = vadd.f32 %v209, %v214
  %v219 = vmax.f32 %v215, 0.0
  %v220 = vmax.f32 %v216, 0.0
  %v221 = vmax.f32 %v217, 0.0
  %v222 = vmax.f32 %v218, 0.0
  %vm223 = vcmask 261120
  %224 = vst.msk [vmem:[%s4] sm:$0xff] %vm223, %v219
  %225 = vst.msk [vmem:[%s4 + $0x8] sm:$0xff] %vm223, %v220
  %226 = vst.msk [vmem:[%s4 + $0x10] sm:$0xff] %vm223, %v221
  %227 = vst.msk [vmem:[%s4 + $0x18] sm:$0xff] %vm223, %v222
  // Predicated region
  $region18: #{dlinknet_forward.20} parent=0 // pred_check
    _
  $region19: #{dlinknet_forward.20} parent=0 // pred_check_branch
    %229 = sbr.rel (0) target = $region21
  $region20: #{dlinknet_forward.20} parent=0 // pred_region
    _
  $region21: #{dlinknet_forward.20} parent=0 // pred_fallthru
    _
  // Predicated region
  $region22: #{dlinknet_forward.20} parent=0 // pred_check
    _
  $region23: #{dlinknet_forward.20} parent=0 // pred_check_branch
    %231 = sbr.rel (0) target = $region25
  $region24: #{dlinknet_forward.20} parent=0 // pred_region
    _
  $region25: #{dlinknet_forward.20} parent=0 // pred_fallthru
    _

// kernel: tile.28
$region0: #{tile.28}
  #allocation0 [shape = 's32[1]{0}', space=sflag, size = 0x4, scoped, tag = 'scoped memory for tile.28']
  %s0 = inlined_call_operand.vmem [shape: f32[32], index: 0, kind: input, shape index: {}]
  %s1 = inlined_call_operand.vmem [shape: f32[4,32], index: 1, kind: output, shape index: {}]
  // Predicated region
  $region2: #{tile.28} parent=0 // pred_check
    _
  $region3: #{tile.28} parent=0 // pred_check_branch
    %3 = sbr.rel (0) target = $region5
  $region4: #{tile.28} parent=0 // pred_region
    _
  $region5: #{tile.28} parent=0 // pred_fallthru
    _
  %v4 = vld [vmem:[%s0] ss:$0 sm:$0xff]
  %5 = vst [vmem:[%s1] sm:$0xf] %v4

// kernel: tile.29
$region0: #{tile.29}
  %s0 = inlined_call_operand.vmem [shape: f32[4,32], index: 0, kind: input, shape index: {}]
  %s1 = inlined_call_operand.vmem [shape: f32[1,128], index: 1, kind: output, shape index: {}]
  $region1: #{tile.29} parent=0
    #allocation0 [shape = 'u8[4096]{0}', space=vmem, size = 0x1000, scoped, tag = 'scoped mem for output reshape']
    #allocation1 [shape = 'u8[4096]{0}', space=vmem, size = 0x1000, scoped, tag = 'scoped mem for input reshape']
    %s3 = ssub.s32 16, 1
    %v4 = vld [vmem:[%s0] sm:%s3]
    %5 = vst [vmem:[#allocation1] sm:%s3] %v4
    %v6 = vld [vmem:[#allocation1] sm:$0x1]
    %vm7 = vcmask 261120
    %8 = vst.msk [vmem:[#allocation0] sm:$0x1] %vm7, %v6
    %s9 = scalar_lea.vmem [#allocation1], 3
    %v10 = vld [vmem:[%s9] sm:$0x1]
    %11 = vrot.lane.b32.xlu0 %v10, 96
    %v12 = vpop.permute.xlu0 %11
    %vm13 = vcmask 1048320
    %14 = vst.msk [vmem:[#allocation0] sm:$0x1] %vm13, %v12
    %s15 = scalar_lea.vmem [#allocation1], 2
    %v16 = vld [vmem:[%s15] sm:$0x1]
    %17 = vrot.lane.b32.xlu0 %v16, 64
    %v18 = vpop.permute.xlu0 %17
    %vm19 = vcmask 785920
    %20 = vst.msk [vmem:[#allocation0] sm:$0x1] %vm19, %v18
    %s21 = scalar_lea.vmem [#allocation1], 1
    %v22 = vld [vmem:[%s21] sm:$0x1]
    %23 = vrot.lane.b32.xlu0 %v22, 32
    %v24 = vpop.permute.xlu0 %23
    %vm25 = vcmask 523520
    %26 = vst.msk [vmem:[#allocation0] sm:$0x1] %vm25, %v24
    %s28 = ssub.s32 2, 1
    %v29 = vld [vmem:[#allocation0] sm:%s28]
    %s31 = ssub.s32 2, 1
    %32 = vst [vmem:[%s1] sm:%s31] %v29

// kernel: dlinknet_forward.21
$region0: #{dlinknet_forward.21}
  #allocation0 [shape = 'u32[]', space=smem, size = 0x4, offset = 0x4, fixed_abs, tag = 'smem constant byte address 0x4 - core index']
  #allocation1 [shape = 'u32[72,128]{1,0:T(1,128)}', space=vmem, size = 0x9000, scoped, tag = 'internal scratch']
  %s0 = inlined_call_operand.vmem [shape: bf16[128,128], index: 0, kind: input, shape index: {}]
  %s1 = inlined_call_operand.vmem [shape: bf16[128,128], index: 1, kind: input, shape index: {}]
  %s2 = inlined_call_operand.vmem [shape: f32[1,128], index: 2, kind: input, shape index: {}]
  %s3 = inlined_call_operand.vmem [shape: f32[128,128], index: 3, kind: output, shape index: {}]
  %s4 = sld [smem:[#allocation0]]
  $region22: #{dlinknet_forward.21} parent=0
    _
  %s6 = ssub.s32 1, %s4
  %s7 = scalar_select 0, %s6, %s4
  // Predicated region
  $region2: #{dlinknet_forward.21} parent=0 // pred_check
    _
  $region3: #{dlinknet_forward.21} parent=0 // pred_check_branch
    %9 = sbr.rel (0) target = $region5
  $region4: #{dlinknet_forward.21} parent=0 // pred_region
    _
  $region5: #{dlinknet_forward.21} parent=0 // pred_fallthru
    _
  // Predicated region
  $region6: #{dlinknet_forward.21} parent=0 // pred_check
    _
  $region7: #{dlinknet_forward.21} parent=0 // pred_check_branch
    %11 = sbr.rel (0) target = $region9
  $region8: #{dlinknet_forward.21} parent=0 // pred_region
    _
  $region9: #{dlinknet_forward.21} parent=0 // pred_fallthru
    _
  // Predicated region
  $region10: #{dlinknet_forward.21} parent=0 // pred_check
    _
  $region11: #{dlinknet_forward.21} parent=0 // pred_check_branch
    %13 = sbr.rel (0) target = $region13
  $region12: #{dlinknet_forward.21} parent=0 // pred_region
    _
  $region13: #{dlinknet_forward.21} parent=0 // pred_fallthru
    _
  %v14 = vld [vmem:[%s0] sm:$0xf]
  %v15 = vld [vmem:[%s0 + $0x4] sm:$0xf]
  %v16 = vld [vmem:[%s0 + $0x8] sm:$0xf]
  %v17 = vld [vmem:[%s0 + $0xc] sm:$0xf]
  %v18 = vld [vmem:[%s0 + $0x10] sm:$0xf]
  %v19 = vld [vmem:[%s0 + $0x14] sm:$0xf]
  %v20 = vld [vmem:[%s0 + $0x18] sm:$0xf]
  %v21 = vld [vmem:[%s0 + $0x1c] sm:$0xf]
  %v22 = vld [vmem:[%s0 + $0x20] sm:$0xf]
  %v23 = vld [vmem:[%s0 + $0x24] sm:$0xf]
  %v24 = vld [vmem:[%s0 + $0x28] sm:$0xf]
  %v25 = vld [vmem:[%s0 + $0x2c] sm:$0xf]
  %v26 = vld [vmem:[%s0 + $0x30] sm:$0xf]
  %v27 = vld [vmem:[%s0 + $0x34] sm:$0xf]
  %v28 = vld [vmem:[%s0 + $0x38] sm:$0xf]
  %v29 = vld [vmem:[%s0 + $0x3c] sm:$0xf]
  %v30 = vld [vmem:[%s1] sm:$0xf]
  %v31 = vld [vmem:[%s1 + $0x4] sm:$0xf]
  %v32 = vld [vmem:[%s1 + $0x8] sm:$0xf]
  %v33 = vld [vmem:[%s1 + $0xc] sm:$0xf]
  %v34 = vld [vmem:[%s1 + $0x10] sm:$0xf]
  %v35 = vld [vmem:[%s1 + $0x14] sm:$0xf]
  %v36 = vld [vmem:[%s1 + $0x18] sm:$0xf]
  %v37 = vld [vmem:[%s1 + $0x1c] sm:$0xf]
  %v38 = vld [vmem:[%s1 + $0x20] sm:$0xf]
  %v39 = vld [vmem:[%s1 + $0x24] sm:$0xf]
  %v40 = vld [vmem:[%s1 + $0x28] sm:$0xf]
  %v41 = vld [vmem:[%s1 + $0x2c] sm:$0xf]
  %v42 = vld [vmem:[%s1 + $0x30] sm:$0xf]
  %v43 = vld [vmem:[%s1 + $0x34] sm:$0xf]
  %v44 = vld [vmem:[%s1 + $0x38] sm:$0xf]
  %v45 = vld [vmem:[%s1 + $0x3c] sm:$0xf]
  %v46 = vld [vmem:[%s2] sm:$0x1]
  %v48 = vperm.slane %v46, 0
  %v66 = vunpack.c.l.b16 %v14
  %v67 = vunpack.c.l.b16 %v15
  %v68 = vunpack.c.l.b16 %v16
  %v69 = vunpack.c.l.b16 %v17
  %v70 = vunpack.c.l.b16 %v18
  %v71 = vunpack.c.l.b16 %v19
  %v72 = vunpack.c.l.b16 %v20
  %v73 = vunpack.c.l.b16 %v21
  %v74 = vunpack.c.l.b16 %v22
  %v75 = vunpack.c.l.b16 %v23
  %v76 = vunpack.c.l.b16 %v24
  %v77 = vunpack.c.l.b16 %v25
  %v78 = vunpack.c.l.b16 %v26
  %v79 = vunpack.c.l.b16 %v27
  %v80 = vunpack.c.l.b16 %v28
  %v81 = vunpack.c.l.b16 %v29
  %v82 = vpack.c.b16 %v67, %v66
  %v83 = vpack.c.b16 %v69, %v68
  %v84 = vpack.c.b16 %v71, %v70
  %v85 = vpack.c.b16 %v73, %v72
  %v86 = vpack.c.b16 %v75, %v74
  %v87 = vpack.c.b16 %v77, %v76
  %v88 = vpack.c.b16 %v79, %v78
  %v89 = vpack.c.b16 %v81, %v80
  %v114 = vunpack.c.l.b16 %v30
  %v115 = vunpack.c.l.b16 %v31
  %v116 = vunpack.c.l.b16 %v32
  %v117 = vunpack.c.l.b16 %v33
  %v118 = vunpack.c.l.b16 %v34
  %v119 = vunpack.c.l.b16 %v35
  %v120 = vunpack.c.l.b16 %v36
  %v121 = vunpack.c.l.b16 %v37
  %v122 = vunpack.c.l.b16 %v38
  %v123 = vunpack.c.l.b16 %v39
  %v124 = vunpack.c.l.b16 %v40
  %v125 = vunpack.c.l.b16 %v41
  %v126 = vunpack.c.l.b16 %v42
  %v127 = vunpack.c.l.b16 %v43
  %v128 = vunpack.c.l.b16 %v44
  %v129 = vunpack.c.l.b16 %v45
  %v130 = vpack.c.b16 %v115, %v114
  %v131 = vpack.c.b16 %v117, %v116
  %v132 = vpack.c.b16 %v119, %v118
  %v133 = vpack.c.b16 %v121, %v120
  %v134 = vpack.c.b16 %v123, %v122
  %v135 = vpack.c.b16 %v125, %v124
  %v136 = vpack.c.b16 %v127, %v126
  %v137 = vpack.c.b16 %v129, %v128
  %146 = vmatpush.bf16.msra.mxu0 %v137
  %147 = vmatpush.bf16.msra.mxu0 %v136
  %148 = vmatpush.bf16.msra.mxu0 %v135
  %149 = vmatpush.bf16.msra.mxu0 %v134
  %150 = vmatpush.bf16.msra.mxu0 %v133
  %151 = vmatpush.bf16.msra.mxu0 %v132
  %152 = vmatpush.bf16.msra.mxu0 %v131
  %153 = vmatpush.bf16.msra.mxu0 %v130
  %154 = vmatmul.bf16.gmra.mxu0 %v82
  %v155 = vpop.f32.mrf.mxu0
  %v156 = vadd.f32 %v48, %v155
  %v157 = vpop.f32.mrf.mxu0
  %v158 = vadd.f32 %v48, %v157
  %159 = vmatmul.bf16.gmra.mxu0 %v83
  %v160 = vpop.f32.mrf.mxu0
  %v161 = vadd.f32 %v48, %v160
  %v162 = vpop.f32.mrf.mxu0
  %v163 = vadd.f32 %v48, %v162
  %164 = vmatmul.bf16.gmra.mxu0 %v84
  %v165 = vpop.f32.mrf.mxu0
  %v166 = vadd.f32 %v48, %v165
  %v167 = vpop.f32.mrf.mxu0
  %v168 = vadd.f32 %v48, %v167
  %169 = vmatmul.bf16.gmra.mxu0 %v85
  %v170 = vpop.f32.mrf.mxu0
  %v171 = vadd.f32 %v48, %v170
  %v172 = vpop.f32.mrf.mxu0
  %v173 = vadd.f32 %v48, %v172
  %174 = vmatmul.bf16.gmra.mxu0 %v86
  %v175 = vpop.f32.mrf.mxu0
  %v176 = vadd.f32 %v48, %v175
  %v177 = vpop.f32.mrf.mxu0
  %v178 = vadd.f32 %v48, %v177
  %179 = vmatmul.bf16.gmra.mxu0 %v87
  %v180 = vpop.f32.mrf.mxu0
  %v181 = vadd.f32 %v48, %v180
  %v182 = vpop.f32.mrf.mxu0
  %v183 = vadd.f32 %v48, %v182
  %184 = vmatmul.bf16.gmra.mxu0 %v88
  %v185 = vpop.f32.mrf.mxu0
  %v186 = vadd.f32 %v48, %v185
  %v187 = vpop.f32.mrf.mxu0
  %v188 = vadd.f32 %v48, %v187
  %189 = vmatmul.bf16.gmra.mxu0 %v89
  %v190 = vpop.f32.mrf.mxu0
  %v191 = vadd.f32 %v48, %v190
  %v192 = vpop.f32.mrf.mxu0
  %v193 = vadd.f32 %v48, %v192
  %194 = vdwg.mxu0
  %v195 = vmax.f32 %v156, 0.0
  %v196 = vmax.f32 %v158, 0.0
  %v197 = vmax.f32 %v161, 0.0
  %v198 = vmax.f32 %v163, 0.0
  %v199 = vmax.f32 %v166, 0.0
  %v200 = vmax.f32 %v168, 0.0
  %v201 = vmax.f32 %v171, 0.0
  %v202 = vmax.f32 %v173, 0.0
  %v203 = vmax.f32 %v176, 0.0
  %v204 = vmax.f32 %v178, 0.0
  %v205 = vmax.f32 %v181, 0.0
  %v206 = vmax.f32 %v183, 0.0
  %v207 = vmax.f32 %v186, 0.0
  %v208 = vmax.f32 %v188, 0.0
  %v209 = vmax.f32 %v191, 0.0
  %v210 = vmax.f32 %v193, 0.0
  %211 = vst [vmem:[%s3] sm:$0xff] %v195
  %212 = vst [vmem:[%s3 + $0x8] sm:$0xff] %v196
  %213 = vst [vmem:[%s3 + $0x10] sm:$0xff] %v197
  %214 = vst [vmem:[%s3 + $0x18] sm:$0xff] %v198
  %215 = vst [vmem:[%s3 + $0x20] sm:$0xff] %v199
  %216 = vst [vmem:[%s3 + $0x28] sm:$0xff] %v200
  %217 = vst [vmem:[%s3 + $0x30] sm:$0xff] %v201
  %218 = vst [vmem:[%s3 + $0x38] sm:$0xff] %v202
  %219 = vst [vmem:[%s3 + $0x40] sm:$0xff] %v203
  %220 = vst [vmem:[%s3 + $0x48] sm:$0xff] %v204
  %221 = vst [vmem:[%s3 + $0x50] sm:$0xff] %v205
  %222 = vst [vmem:[%s3 + $0x58] sm:$0xff] %v206
  %223 = vst [vmem:[%s3 + $0x60] sm:$0xff] %v207
  %224 = vst [vmem:[%s3 + $0x68] sm:$0xff] %v208
  %225 = vst [vmem:[%s3 + $0x70] sm:$0xff] %v209
  %226 = vst [vmem:[%s3 + $0x78] sm:$0xff] %v210
  // Predicated region
  $region14: #{dlinknet_forward.21} parent=0 // pred_check
    _
  $region15: #{dlinknet_forward.21} parent=0 // pred_check_branch
    %228 = sbr.rel (0) target = $region17
  $region16: #{dlinknet_forward.21} parent=0 // pred_region
    _
  $region17: #{dlinknet_forward.21} parent=0 // pred_fallthru
    _
  // Predicated region
  $region18: #{dlinknet_forward.21} parent=0 // pred_check
    _
  $region19: #{dlinknet_forward.21} parent=0 // pred_check_branch
    %230 = sbr.rel (0) target = $region21
  $region20: #{dlinknet_forward.21} parent=0 // pred_region
    _
  $region21: #{dlinknet_forward.21} parent=0 // pred_fallthru
    _

// kernel: dlinknet_forward.22
$region0: #{dlinknet_forward.22}
  #allocation0 [shape = 'u32[]', space=smem, size = 0x4, offset = 0x4, fixed_abs, tag = 'smem constant byte address 0x4 - core index']
  #allocation1 [shape = 'u32[72,128]{1,0:T(1,128)}', space=vmem, size = 0x9000, scoped, tag = 'internal scratch']
  %s0 = inlined_call_operand.vmem [shape: bf16[512,384], index: 0, kind: input, shape index: {}]
  %s1 = inlined_call_operand.vmem [shape: bf16[384,32], index: 1, kind: input, shape index: {}]
  %s2 = inlined_call_operand.vmem [shape: f32[1,32], index: 2, kind: input, shape index: {}]
  %s3 = inlined_call_operand.vmem [shape: f32[512,32], index: 3, kind: output, shape index: {}]
  %s4 = sld [smem:[#allocation0]]
  $region45: #{dlinknet_forward.22} parent=0
    _
  %s6 = ssub.s32 1, %s4
  %s7 = scalar_select 0, %s6, %s4
  loop: start=0, step=1, limit=6
  $region2: #{dlinknet_forward.22} parent=0 // loop_pre_header
    _
  $region3: #{dlinknet_forward.22} parent=0 // loop_header
    %s9 = sphi 0, %s13
    %p10 = scmp.ge.s32.totalorder %s9, 6
    %s19 = sphi 0, %s21
    %s22 = sphi 0, %s19
    %s23 = sphi 0, %s22
    %s39 = sphi 0, %s23
    %s43 = sphi 0, %s43
    %s45 = sphi 0, %s43
    %s46 = sphi 0, %s45
    %s60 = sphi 0, %s46
    %s64 = sphi 0, %s64
    %s66 = sphi 0, %s64
    %s67 = sphi 0, %s66
    %s81 = sphi 0, %s67
    %s87 = sphi 0, %s89
    %s90 = sphi 0, %s87
    %s91 = sphi 0, %s90
    %s107 = sphi 0, %s91
  $region4: #{dlinknet_forward.22} parent=0 // loop_header_branch
    %12 = sbr.rel (%p10) target = $region8
  $region5: #{dlinknet_forward.22} parent=0 // loop_body
    %s14 = ssub.s32 %s9, 1
    %s15 = ssub.s32 %s9, 2
    %s16 = sadd.s32 %s9, 1
    %s17 = ssub.s32 %s9, %s16
    %p18 = scmp.eq.s32.totalorder %s17, 0
    %s20 = sadd.s32 %s19, 1
    %s21 = scalar_select %p18, %s19, %s20
    %p24 = pneg %p18
    %p25 = scmp.eq.s32.totalorder %s9, 3
    %p26 = por %p24, %p25
    %p27 = scmp.ne.s32.totalorder %s19, %s22
    %p28 = scmp.eq.s32.totalorder %s9, 0
    %p29 = por %p27, %p28
    %p30 = scmp.ne.s32.totalorder %s19, %s22
    %p31 = scmp.eq.s32.totalorder %s14, 3
    %p32 = por %p30, %p31
    %p33 = scmp.ne.s32.totalorder %s22, %s23
    %p34 = scmp.eq.s32.totalorder %s14, 0
    %p35 = por %p33, %p34
    %p36 = scmp.ne.s32.totalorder %s22, %s23
    %p37 = scmp.eq.s32.totalorder %s15, 3
    %p38 = por %p36, %p37
    %p40 = scmp.ne.s32.totalorder %s23, %s39
    %p41 = scmp.eq.s32.totalorder %s15, 0
    %p42 = por %p40, %p41
    %s44 = sadd.s32 %s43, 1
    %p47 = scmp.eq.s32.totalorder %s9, 3
    %p48 = scmp.ne.s32.totalorder %s43, %s45
    %p49 = scmp.eq.s32.totalorder %s9, 0
    %p50 = por %p48, %p49
    %p51 = scmp.ne.s32.totalorder %s43, %s45
    %p52 = scmp.eq.s32.totalorder %s14, 3
    %p53 = por %p51, %p52
    %p54 = scmp.ne.s32.totalorder %s45, %s46
    %p55 = scmp.eq.s32.totalorder %s14, 0
    %p56 = por %p54, %p55
    %p57 = scmp.ne.s32.totalorder %s45, %s46
    %p58 = scmp.eq.s32.totalorder %s15, 3
    %p59 = por %p57, %p58
    %p61 = scmp.ne.s32.totalorder %s46, %s60
    %p62 = scmp.eq.s32.totalorder %s15, 0
    %p63 = por %p61, %p62
    %s65 = sadd.s32 %s64, 1
    %p68 = scmp.eq.s32.totalorder %s9, 3
    %p69 = scmp.ne.s32.totalorder %s64, %s66
    %p70 = scmp.eq.s32.totalorder %s9, 0
    %p71 = por %p69, %p70
    %p72 = scmp.ne.s32.totalorder %s64, %s66
    %p73 = scmp.eq.s32.totalorder %s14, 3
    %p74 = por %p72, %p73
    %p75 = scmp.ne.s32.totalorder %s66, %s67
    %p76 = scmp.eq.s32.totalorder %s14, 0
    %p77 = por %p75, %p76
    %p78 = scmp.ne.s32.totalorder %s66, %s67
    %p79 = scmp.eq.s32.totalorder %s15, 3
    %p80 = por %p78, %p79
    %p82 = scmp.ne.s32.totalorder %s67, %s81
    %p83 = scmp.eq.s32.totalorder %s15, 0
    %p84 = por %p82, %p83
    %s85 = ssub.s32 %s9, %s16
    %p86 = scmp.eq.s32.totalorder %s85, 0
    %s88 = sadd.s32 %s87, 1
    %s89 = scalar_select %p86, %s87, %s88
    %p92 = pneg %p86
    %p93 = scmp.eq.s32.totalorder %s9, 3
    %p94 = por %p92, %p93
    %p95 = scmp.ne.s32.totalorder %s87, %s90
    %p96 = scmp.eq.s32.totalorder %s9, 0
    %p97 = por %p95, %p96
    %p98 = scmp.ne.s32.totalorder %s87, %s90
    %p99 = scmp.eq.s32.totalorder %s14, 3
    %p100 = por %p98, %p99
    %p101 = scmp.ne.s32.totalorder %s90, %s91
    %p102 = scmp.eq.s32.totalorder %s14, 0
    %p103 = por %p101, %p102
    %p104 = scmp.ne.s32.totalorder %s90, %s91
    %p105 = scmp.eq.s32.totalorder %s15, 3
    %p106 = por %p104, %p105
    %p108 = scmp.ne.s32.totalorder %s91, %s107
    %p109 = scmp.eq.s32.totalorder %s15, 0
    %p110 = por %p108, %p109
    %p111 = scmp.le.s32.totalorder 1, %s9
    %p112 = scmp.lt.s32.totalorder %s9, 5
    %p113 = pnand %p111, %p112
    %p114 = pneg %p113
    // Predicated region
    $region9: #{dlinknet_forward.22} parent=5 // pred_check
      _
    $region10: #{dlinknet_forward.22} parent=5 // pred_check_branch
      %116 = sbr.rel (%p113) target = $region12
    $region11: #{dlinknet_forward.22} parent=5 // pred_region
      %s117 = ssub.s32 %s9, 1
      // Predicated region
      $region13: #{dlinknet_forward.22} parent=11 // pred_check
        %p118 = pneg %p56
      $region14: #{dlinknet_forward.22} parent=11 // pred_check_branch
        %120 = sbr.rel (%p118) target = $region16
      $region15: #{dlinknet_forward.22} parent=11 // pred_region
        _
      $region16: #{dlinknet_forward.22} parent=11 // pred_fallthru
        _
      // Predicated region
      $region17: #{dlinknet_forward.22} parent=11 // pred_check
        %p121 = pneg %p77
      $region18: #{dlinknet_forward.22} parent=11 // pred_check_branch
        %123 = sbr.rel (%p121) target = $region20
      $region19: #{dlinknet_forward.22} parent=11 // pred_region
        _
      $region20: #{dlinknet_forward.22} parent=11 // pred_fallthru
        _
    $region12: #{dlinknet_forward.22} parent=5 // pred_fallthru
      _
    %p124 = scmp.lt.s32.totalorder %s9, 4
    // Predicated region
    $region21: #{dlinknet_forward.22} parent=5 // pred_check
      %p125 = pneg %p124
    $region22: #{dlinknet_forward.22} parent=5 // pred_check_branch
      %127 = sbr.rel (%p125) target = $region24
    $region23: #{dlinknet_forward.22} parent=5 // pred_region
      // Predicated region
      $region25: #{dlinknet_forward.22} parent=23 // pred_check
        %p128 = pneg %p29
      $region26: #{dlinknet_forward.22} parent=23 // pred_check_branch
        %130 = sbr.rel (%p128) target = $region28
      $region27: #{dlinknet_forward.22} parent=23 // pred_region
        %s131 = smul.u32 16, %s9
        %p132 = scmp.lt.s32.totalorder %s131, 63
        %s133 = scalar_select %p132, %s131, 63
        %s134 = smul.addr %s133, 3
        %s135 = smul.addr %s134, 4
        %s136 = scalar_lea.vmem %s0, %s135
        %s137 = smul.u32 16, %s9
      $region28: #{dlinknet_forward.22} parent=23 // pred_fallthru
        _
    $region24: #{dlinknet_forward.22} parent=5 // pred_fallthru
      _
    %p138 = scmp.le.s32.totalorder 1, %s9
    %p139 = scmp.lt.s32.totalorder %s9, 5
    %p140 = pnand %p138, %p139
    %p141 = pneg %p140
    // Predicated region
    $region29: #{dlinknet_forward.22} parent=5 // pred_check
      _
    $region30: #{dlinknet_forward.22} parent=5 // pred_check_branch
      %143 = sbr.rel (%p140) target = $region32
    $region31: #{dlinknet_forward.22} parent=5 // pred_region
      %s144 = ssub.s32 %s9, 1
      %s145 = smul.u32 16, %s14
      %p146 = scmp.lt.s32.totalorder %s145, 63
      %s147 = scalar_select %p146, %s145, 63
      %s148 = smul.addr %s147, 3
      %s149 = smul.addr %s148, 4
      %s150 = scalar_lea.vmem %s0, %s149
      %p151 = pneg %p35
      %p152 = pneg %p32
      %p153 = pneg %p56
      %p154 = pneg %p53
      %p155 = pneg %p77
      %p156 = pneg %p74
      %p157 = pneg %p103
      %p158 = pneg %p100
      %s159 = smul.u32 16, %s14
      %p160 = scmp.lt.s32.totalorder %s159, 63
      %s161 = scalar_select %p160, %s159, 63
      %s162 = smul.addr %s161, 8
      %s163 = scalar_lea.vmem %s3, %s162
      %s164 = smul.u32 16, %s14
      %p165 = scmp.lt.s32.totalorder %s164, 63
      %s166 = scalar_select %p165, %s164, 63
      %s167 = smul.addr %s166, 3
      %s168 = smul.addr %s167, 4
      %s169 = scalar_lea.vmem %s0, %s168
      %s170 = smul.u32 16, %s14
      %s171 = smul.u32 16, %s14
      %p172 = scmp.lt.s32.totalorder %s171, 63
      %s173 = scalar_select %p172, %s171, 63
      %s174 = smul.addr %s173, 8
      %s175 = scalar_lea.vmem %s3, %s174
      %s176 = smul.u32 16, %s14
      %v177 = vld [vmem:[%s169] sm:$0xff]
      %v178 = vld [vmem:[%s169 + $0x8] sm:$0xf]
      %v179 = vld [vmem:[%s169 + $0xc] sm:$0xff]
      %v180 = vld [vmem:[%s169 + $0x14] sm:$0xf]
      %v181 = vld [vmem:[%s169 + $0x18] sm:$0xff]
      %v182 = vld [vmem:[%s169 + $0x20] sm:$0xf]
      %v183 = vld [vmem:[%s169 + $0x24] sm:$0xff]
      %v184 = vld [vmem:[%s169 + $0x2c] sm:$0xf]
      %v185 = vld [vmem:[%s169 + $0x30] sm:$0xff]
      %v186 = vld [vmem:[%s169 + $0x38] sm:$0xf]
      %v187 = vld [vmem:[%s169 + $0x3c] sm:$0xff]
      %v188 = vld [vmem:[%s169 + $0x44] sm:$0xf]
      %v189 = vld [vmem:[%s169 + $0x48] sm:$0xff]
      %v190 = vld [vmem:[%s169 + $0x50] sm:$0xf]
      %v191 = vld [vmem:[%s169 + $0x54] sm:$0xff]
      %v192 = vld [vmem:[%s169 + $0x5c] sm:$0xf]
      %v193 = vld [vmem:[%s169 + $0x60] sm:$0xff]
      %v194 = vld [vmem:[%s169 + $0x68] sm:$0xf]
      %v195 = vld [vmem:[%s169 + $0x6c] sm:$0xff]
      %v196 = vld [vmem:[%s169 + $0x74] sm:$0xf]
      %v197 = vld [vmem:[%s169 + $0x78] sm:$0xff]
      %v198 = vld [vmem:[%s169 + $0x80] sm:$0xf]
      %v199 = vld [vmem:[%s169 + $0x84] sm:$0xff]
      %v200 = vld [vmem:[%s169 + $0x8c] sm:$0xf]
      %v201 = vld [vmem:[%s169 + $0x90] sm:$0xff]
      %v202 = vld [vmem:[%s169 + $0x98] sm:$0xf]
      %v203 = vld [vmem:[%s169 + $0x9c] sm:$0xff]
      %v204 = vld [vmem:[%s169 + $0xa4] sm:$0xf]
      %v205 = vld [vmem:[%s169 + $0xa8] sm:$0xff]
      %v206 = vld [vmem:[%s169 + $0xb0] sm:$0xf]
      %v207 = vld [vmem:[%s169 + $0xb4] sm:$0xff]
      %v208 = vld [vmem:[%s169 + $0xbc] sm:$0xf]
      %v209 = vld [vmem:[%s1] sm:$0xf]
      %v210 = vld [vmem:[%s1 + $0x4] sm:$0xf]
      %v211 = vld [vmem:[%s1 + $0x8] sm:$0xf]
      %v212 = vld [vmem:[%s1 + $0xc] sm:$0xf]
      %v213 = vld [vmem:[%s1 + $0x10] sm:$0xf]
      %v214 = vld [vmem:[%s1 + $0x14] sm:$0xf]
      %v215 = vld [vmem:[%s1 + $0x18] sm:$0xf]
      %v216 = vld [vmem:[%s1 + $0x1c] sm:$0xf]
      %v217 = vld [vmem:[%s1 + $0x20] sm:$0xf]
      %v218 = vld [vmem:[%s1 + $0x24] sm:$0xf]
      %v219 = vld [vmem:[%s1 + $0x28] sm:$0xf]
      %v220 = vld [vmem:[%s1 + $0x2c] sm:$0xf]
      %v221 = vld [vmem:[%s1 + $0x30] sm:$0xf]
      %v222 = vld [vmem:[%s1 + $0x34] sm:$0xf]
      %v223 = vld [vmem:[%s1 + $0x38] sm:$0xf]
      %v224 = vld [vmem:[%s1 + $0x3c] sm:$0xf]
      %v225 = vld [vmem:[%s1 + $0x40] sm:$0xf]
      %v226 = vld [vmem:[%s1 + $0x44] sm:$0xf]
      %v227 = vld [vmem:[%s1 + $0x48] sm:$0xf]
      %v228 = vld [vmem:[%s1 + $0x4c] sm:$0xf]
      %v229 = vld [vmem:[%s1 + $0x50] sm:$0xf]
      %v230 = vld [vmem:[%s1 + $0x54] sm:$0xf]
      %v231 = vld [vmem:[%s1 + $0x58] sm:$0xf]
      %v232 = vld [vmem:[%s1 + $0x5c] sm:$0xf]
      %v233 = vld [vmem:[%s1 + $0x60] sm:$0xf]
      %v234 = vld [vmem:[%s1 + $0x64] sm:$0xf]
      %v235 = vld [vmem:[%s1 + $0x68] sm:$0xf]
      %v236 = vld [vmem:[%s1 + $0x6c] sm:$0xf]
      %v237 = vld [vmem:[%s1 + $0x70] sm:$0xf]
      %v238 = vld [vmem:[%s1 + $0x74] sm:$0xf]
      %v239 = vld [vmem:[%s1 + $0x78] sm:$0xf]
      %v240 = vld [vmem:[%s1 + $0x7c] sm:$0xf]
      %v241 = vld [vmem:[%s1 + $0x80] sm:$0xf]
      %v242 = vld [vmem:[%s1 + $0x84] sm:$0xf]
      %v243 = vld [vmem:[%s1 + $0x88] sm:$0xf]
      %v244 = vld [vmem:[%s1 + $0x8c] sm:$0xf]
      %v245 = vld [vmem:[%s1 + $0x90] sm:$0xf]
      %v246 = vld [vmem:[%s1 + $0x94] sm:$0xf]
      %v247 = vld [vmem:[%s1 + $0x98] sm:$0xf]
      %v248 = vld [vmem:[%s1 + $0x9c] sm:$0xf]
      %v249 = vld [vmem:[%s1 + $0xa0] sm:$0xf]
      %v250 = vld [vmem:[%s1 + $0xa4] sm:$0xf]
      %v251 = vld [vmem:[%s1 + $0xa8] sm:$0xf]
      %v252 = vld [vmem:[%s1 + $0xac] sm:$0xf]
      %v253 = vld [vmem:[%s1 + $0xb0] sm:$0xf]
      %v254 = vld [vmem:[%s1 + $0xb4] sm:$0xf]
      %v255 = vld [vmem:[%s1 + $0xb8] sm:$0xf]
      %v256 = vld [vmem:[%s1 + $0xbc] sm:$0xf]
      %v257 = vld [vmem:[%s2] sm:$0x1]
      %v259 = vperm.slane %v257, 0
      %v293 = vunpack.c.l.b16 %v177
      %v294 = vunpack.c.h.b16 %v177
      %v295 = vunpack.c.l.b16 %v178
      %v296 = vunpack.c.l.b16 %v179
      %v297 = vunpack.c.h.b16 %v179
      %v298 = vunpack.c.l.b16 %v180
      %v299 = vunpack.c.l.b16 %v181
      %v300 = vunpack.c.h.b16 %v181
      %v301 = vunpack.c.l.b16 %v182
      %v302 = vunpack.c.l.b16 %v183
      %v303 = vunpack.c.h.b16 %v183
      %v304 = vunpack.c.l.b16 %v184
      %v305 = vunpack.c.l.b16 %v185
      %v306 = vunpack.c.h.b16 %v185
      %v307 = vunpack.c.l.b16 %v186
      %v308 = vunpack.c.l.b16 %v187
      %v309 = vunpack.c.h.b16 %v187
      %v310 = vunpack.c.l.b16 %v188
      %v311 = vunpack.c.l.b16 %v189
      %v312 = vunpack.c.h.b16 %v189
      %v313 = vunpack.c.l.b16 %v190
      %v314 = vunpack.c.l.b16 %v191
      %v315 = vunpack.c.h.b16 %v191
      %v316 = vunpack.c.l.b16 %v192
      %v317 = vunpack.c.l.b16 %v193
      %v318 = vunpack.c.h.b16 %v193
      %v319 = vunpack.c.l.b16 %v194
      %v320 = vunpack.c.l.b16 %v195
      %v321 = vunpack.c.h.b16 %v195
      %v322 = vunpack.c.l.b16 %v196
      %v323 = vunpack.c.l.b16 %v197
      %v324 = vunpack.c.h.b16 %v197
      %v325 = vunpack.c.l.b16 %v198
      %v326 = vunpack.c.l.b16 %v199
      %v327 = vunpack.c.h.b16 %v199
      %v328 = vunpack.c.l.b16 %v200
      %v329 = vunpack.c.l.b16 %v201
      %v330 = vunpack.c.h.b16 %v201
      %v331 = vunpack.c.l.b16 %v202
      %v332 = vunpack.c.l.b16 %v203
      %v333 = vunpack.c.h.b16 %v203
      %v334 = vunpack.c.l.b16 %v204
      %v335 = vunpack.c.l.b16 %v205
      %v336 = vunpack.c.h.b16 %v205
      %v337 = vunpack.c.l.b16 %v206
      %v338 = vunpack.c.l.b16 %v207
      %v339 = vunpack.c.h.b16 %v207
      %v340 = vunpack.c.l.b16 %v208
      %v341 = vpack.c.b16 %v296, %v293
      %v342 = vpack.c.b16 %v297, %v294
      %v343 = vpack.c.b16 %v298, %v295
      %v344 = vpack.c.b16 %v302, %v299
      %v345 = vpack.c.b16 %v303, %v300
      %v346 = vpack.c.b16 %v304, %v301
      %v347 = vpack.c.b16 %v308, %v305
      %v348 = vpack.c.b16 %v309, %v306
      %v349 = vpack.c.b16 %v310, %v307
      %v350 = vpack.c.b16 %v314, %v311
      %v351 = vpack.c.b16 %v315, %v312
      %v352 = vpack.c.b16 %v316, %v313
      %v353 = vpack.c.b16 %v320, %v317
      %v354 = vpack.c.b16 %v321, %v318
      %v355 = vpack.c.b16 %v322, %v319
      %v356 = vpack.c.b16 %v326, %v323
      %v357 = vpack.c.b16 %v327, %v324
      %v358 = vpack.c.b16 %v328, %v325
      %v359 = vpack.c.b16 %v332, %v329
      %v360 = vpack.c.b16 %v333, %v330
      %v361 = vpack.c.b16 %v334, %v331
      %v362 = vpack.c.b16 %v338, %v335
      %v363 = vpack.c.b16 %v339, %v336
      %v364 = vpack.c.b16 %v340, %v337
      %v437 = vunpack.c.l.b16 %v209
      %v438 = vunpack.c.l.b16 %v210
      %v439 = vunpack.c.l.b16 %v211
      %v440 = vunpack.c.l.b16 %v212
      %v441 = vunpack.c.l.b16 %v213
      %v442 = vunpack.c.l.b16 %v214
      %v443 = vunpack.c.l.b16 %v215
      %v444 = vunpack.c.l.b16 %v216
      %v445 = vunpack.c.l.b16 %v217
      %v446 = vunpack.c.l.b16 %v218
      %v447 = vunpack.c.l.b16 %v219
      %v448 = vunpack.c.l.b16 %v220
      %v449 = vunpack.c.l.b16 %v221
      %v450 = vunpack.c.l.b16 %v222
      %v451 = vunpack.c.l.b16 %v223
      %v452 = vunpack.c.l.b16 %v224
      %v453 = vunpack.c.l.b16 %v225
      %v454 = vunpack.c.l.b16 %v226
      %v455 = vunpack.c.l.b16 %v227
      %v456 = vunpack.c.l.b16 %v228
      %v457 = vunpack.c.l.b16 %v229
      %v458 = vunpack.c.l.b16 %v230
      %v459 = vunpack.c.l.b16 %v231
      %v460 = vunpack.c.l.b16 %v232
      %v461 = vunpack.c.l.b16 %v233
      %v462 = vunpack.c.l.b16 %v234
      %v463 = vunpack.c.l.b16 %v235
      %v464 = vunpack.c.l.b16 %v236
      %v465 = vunpack.c.l.b16 %v237
      %v466 = vunpack.c.l.b16 %v238
      %v467 = vunpack.c.l.b16 %v239
      %v468 = vunpack.c.l.b16 %v240
      %v469 = vunpack.c.l.b16 %v241
      %v470 = vunpack.c.l.b16 %v242
      %v471 = vunpack.c.l.b16 %v243
      %v472 = vunpack.c.l.b16 %v244
      %v473 = vunpack.c.l.b16 %v245
      %v474 = vunpack.c.l.b16 %v246
      %v475 = vunpack.c.l.b16 %v247
      %v476 = vunpack.c.l.b16 %v248
      %v477 = vunpack.c.l.b16 %v249
      %v478 = vunpack.c.l.b16 %v250
      %v479 = vunpack.c.l.b16 %v251
      %v480 = vunpack.c.l.b16 %v252
      %v481 = vunpack.c.l.b16 %v253
      %v482 = vunpack.c.l.b16 %v254
      %v483 = vunpack.c.l.b16 %v255
      %v484 = vunpack.c.l.b16 %v256
      %v485 = vpack.c.b16 %v438, %v437
      %v486 = vpack.c.b16 %v440, %v439
      %v487 = vpack.c.b16 %v442, %v441
      %v488 = vpack.c.b16 %v444, %v443
      %v489 = vpack.c.b16 %v446, %v445
      %v490 = vpack.c.b16 %v448, %v447
      %v491 = vpack.c.b16 %v450, %v449
      %v492 = vpack.c.b16 %v452, %v451
      %v493 = vpack.c.b16 %v454, %v453
      %v494 = vpack.c.b16 %v456, %v455
      %v495 = vpack.c.b16 %v458, %v457
      %v496 = vpack.c.b16 %v460, %v459
      %v497 = vpack.c.b16 %v462, %v461
      %v498 = vpack.c.b16 %v464, %v463
      %v499 = vpack.c.b16 %v466, %v465
      %v500 = vpack.c.b16 %v468, %v467
      %v501 = vpack.c.b16 %v470, %v469
      %v502 = vpack.c.b16 %v472, %v471
      %v503 = vpack.c.b16 %v474, %v473
      %v504 = vpack.c.b16 %v476, %v475
      %v505 = vpack.c.b16 %v478, %v477
      %v506 = vpack.c.b16 %v480, %v479
      %v507 = vpack.c.b16 %v482, %v481
      %v508 = vpack.c.b16 %v484, %v483
      %533 = vmatpush.bf16.msra.mxu0 %v492
      %534 = vmatpush.bf16.msra.mxu0 %v491
      %535 = vmatpush.bf16.msra.mxu0 %v490
      %536 = vmatpush.bf16.msra.mxu0 %v489
      %537 = vmatpush.bf16.msra.mxu0 %v488
      %538 = vmatpush.bf16.msra.mxu0 %v487
      %539 = vmatpush.bf16.msra.mxu0 %v486
      %540 = vmatpush.bf16.msra.mxu0 %v485
      %541 = vmatmul.bf16.gmra.mxu0 %v341
      %v542 = vpop.f32.mrf.mxu0
      %v543 = vadd.f32 %v259, %v542
      %v544 = vpop.f32.mrf.mxu0
      %v545 = vadd.f32 %v259, %v544
      %546 = vmatmul.bf16.gmra.mxu0 %v344
      %v547 = vpop.f32.mrf.mxu0
      %v548 = vadd.f32 %v259, %v547
      %v549 = vpop.f32.mrf.mxu0
      %v550 = vadd.f32 %v259, %v549
      %551 = vmatmul.bf16.gmra.mxu0 %v347
      %v552 = vpop.f32.mrf.mxu0
      %v553 = vadd.f32 %v259, %v552
      %v554 = vpop.f32.mrf.mxu0
      %v555 = vadd.f32 %v259, %v554
      %556 = vmatmul.bf16.gmra.mxu0 %v350
      %v557 = vpop.f32.mrf.mxu0
      %v558 = vadd.f32 %v259, %v557
      %v559 = vpop.f32.mrf.mxu0
      %v560 = vadd.f32 %v259, %v559
      %561 = vmatmul.bf16.gmra.mxu0 %v353
      %v562 = vpop.f32.mrf.mxu0
      %v563 = vadd.f32 %v259, %v562
      %v564 = vpop.f32.mrf.mxu0
      %v565 = vadd.f32 %v259, %v564
      %566 = vmatmul.bf16.gmra.mxu0 %v356
      %v567 = vpop.f32.mrf.mxu0
      %v568 = vadd.f32 %v259, %v567
      %v569 = vpop.f32.mrf.mxu0
      %v570 = vadd.f32 %v259, %v569
      %571 = vmatmul.bf16.gmra.mxu0 %v359
      %v572 = vpop.f32.mrf.mxu0
      %v573 = vadd.f32 %v259, %v572
      %v574 = vpop.f32.mrf.mxu0
      %v575 = vadd.f32 %v259, %v574
      %576 = vmatmul.bf16.gmra.mxu0 %v362
      %v577 = vpop.f32.mrf.mxu0
      %v578 = vadd.f32 %v259, %v577
      %v579 = vpop.f32.mrf.mxu0
      %v580 = vadd.f32 %v259, %v579
      %581 = vdwg.mxu0
      %582 = vmatpush.bf16.msra.mxu0 %v500
      %583 = vmatpush.bf16.msra.mxu0 %v499
      %584 = vmatpush.bf16.msra.mxu0 %v498
      %585 = vmatpush.bf16.msra.mxu0 %v497
      %586 = vmatpush.bf16.msra.mxu0 %v496
      %587 = vmatpush.bf16.msra.mxu0 %v495
      %588 = vmatpush.bf16.msra.mxu0 %v494
      %589 = vmatpush.bf16.msra.mxu0 %v493
      %590 = vmatmul.bf16.gmra.mxu0 %v342
      %v591 = vpop.f32.mrf.mxu0
      %v592 = vadd.f32 %v543, %v591
      %v593 = vpop.f32.mrf.mxu0
      %v594 = vadd.f32 %v545, %v593
      %595 = vmatmul.bf16.gmra.mxu0 %v345
      %v596 = vpop.f32.mrf.mxu0
      %v597 = vadd.f32 %v548, %v596
      %v598 = vpop.f32.mrf.mxu0
      %v599 = vadd.f32 %v550, %v598
      %600 = vmatmul.bf16.gmra.mxu0 %v348
      %v601 = vpop.f32.mrf.mxu0
      %v602 = vadd.f32 %v553, %v601
      %v603 = vpop.f32.mrf.mxu0
      %v604 = vadd.f32 %v555, %v603
      %605 = vmatmul.bf16.gmra.mxu0 %v351
      %v606 = vpop.f32.mrf.mxu0
      %v607 = vadd.f32 %v558, %v606
      %v608 = vpop.f32.mrf.mxu0
      %v609 = vadd.f32 %v560, %v608
      %610 = vmatmul.bf16.gmra.mxu0 %v354
      %v611 = vpop.f32.mrf.mxu0
      %v612 = vadd.f32 %v563, %v611
      %v613 = vpop.f32.mrf.mxu0
      %v614 = vadd.f32 %v565, %v613
      %615 = vmatmul.bf16.gmra.mxu0 %v357
      %v616 = vpop.f32.mrf.mxu0
      %v617 = vadd.f32 %v568, %v616
      %v618 = vpop.f32.mrf.mxu0
      %v619 = vadd.f32 %v570, %v618
      %620 = vmatmul.bf16.gmra.mxu0 %v360
      %v621 = vpop.f32.mrf.mxu0
      %v622 = vadd.f32 %v573, %v621
      %v623 = vpop.f32.mrf.mxu0
      %v624 = vadd.f32 %v575, %v623
      %625 = vmatmul.bf16.gmra.mxu0 %v363
      %v626 = vpop.f32.mrf.mxu0
      %v627 = vadd.f32 %v578, %v626
      %v628 = vpop.f32.mrf.mxu0
      %v629 = vadd.f32 %v580, %v628
      %630 = vdwg.mxu0
      %631 = vmatpush.bf16.msra.mxu0 %v508
      %632 = vmatpush.bf16.msra.mxu0 %v507
      %633 = vmatpush.bf16.msra.mxu0 %v506
      %634 = vmatpush.bf16.msra.mxu0 %v505
      %635 = vmatpush.bf16.msra.mxu0 %v504
      %636 = vmatpush.bf16.msra.mxu0 %v503
      %637 = vmatpush.bf16.msra.mxu0 %v502
      %638 = vmatpush.bf16.msra.mxu0 %v501
      %639 = vmatmul.bf16.gmra.mxu0 %v343
      %v640 = vpop.f32.mrf.mxu0
      %v641 = vadd.f32 %v592, %v640
      %v642 = vpop.f32.mrf.mxu0
      %v643 = vadd.f32 %v594, %v642
      %644 = vmatmul.bf16.gmra.mxu0 %v346
      %v645 = vpop.f32.mrf.mxu0
      %v646 = vadd.f32 %v597, %v645
      %v647 = vpop.f32.mrf.mxu0
      %v648 = vadd.f32 %v599, %v647
      %649 = vmatmul.bf16.gmra.mxu0 %v349
      %v650 = vpop.f32.mrf.mxu0
      %v651 = vadd.f32 %v602, %v650
      %v652 = vpop.f32.mrf.mxu0
      %v653 = vadd.f32 %v604, %v652
      %654 = vmatmul.bf16.gmra.mxu0 %v352
      %v655 = vpop.f32.mrf.mxu0
      %v656 = vadd.f32 %v607, %v655
      %v657 = vpop.f32.mrf.mxu0
      %v658 = vadd.f32 %v609, %v657
      %659 = vmatmul.bf16.gmra.mxu0 %v355
      %v660 = vpop.f32.mrf.mxu0
      %v661 = vadd.f32 %v612, %v660
      %v662 = vpop.f32.mrf.mxu0
      %v663 = vadd.f32 %v614, %v662
      %664 = vmatmul.bf16.gmra.mxu0 %v358
      %v665 = vpop.f32.mrf.mxu0
      %v666 = vadd.f32 %v617, %v665
      %v667 = vpop.f32.mrf.mxu0
      %v668 = vadd.f32 %v619, %v667
      %669 = vmatmul.bf16.gmra.mxu0 %v361
      %v670 = vpop.f32.mrf.mxu0
      %v671 = vadd.f32 %v622, %v670
      %v672 = vpop.f32.mrf.mxu0
      %v673 = vadd.f32 %v624, %v672
      %674 = vmatmul.bf16.gmra.mxu0 %v364
      %v675 = vpop.f32.mrf.mxu0
      %v676 = vadd.f32 %v627, %v675
      %v677 = vpop.f32.mrf.mxu0
      %v678 = vadd.f32 %v629, %v677
      %679 = vdwg.mxu0
      %v680 = vmax.f32 %v641, 0.0
      %v681 = vmax.f32 %v643, 0.0
      %v682 = vmax.f32 %v646, 0.0
      %v683 = vmax.f32 %v648, 0.0
      %v684 = vmax.f32 %v651, 0.0
      %v685 = vmax.f32 %v653, 0.0
      %v686 = vmax.f32 %v656, 0.0
      %v687 = vmax.f32 %v658, 0.0
      %v688 = vmax.f32 %v661, 0.0
      %v689 = vmax.f32 %v663, 0.0
      %v690 = vmax.f32 %v666, 0.0
      %v691 = vmax.f32 %v668, 0.0
      %v692 = vmax.f32 %v671, 0.0
      %v693 = vmax.f32 %v673, 0.0
      %v694 = vmax.f32 %v676, 0.0
      %v695 = vmax.f32 %v678, 0.0
      %vm696 = vcmask 261120
      %697 = vst.msk [vmem:[%s175] sm:$0xff] %vm696, %v680
      %698 = vst.msk [vmem:[%s175 + $0x8] sm:$0xff] %vm696, %v681
      %699 = vst.msk [vmem:[%s175 + $0x10] sm:$0xff] %vm696, %v682
      %700 = vst.msk [vmem:[%s175 + $0x18] sm:$0xff] %vm696, %v683
      %701 = vst.msk [vmem:[%s175 + $0x20] sm:$0xff] %vm696, %v684
      %702 = vst.msk [vmem:[%s175 + $0x28] sm:$0xff] %vm696, %v685
      %703 = vst.msk [vmem:[%s175 + $0x30] sm:$0xff] %vm696, %v686
      %704 = vst.msk [vmem:[%s175 + $0x38] sm:$0xff] %vm696, %v687
      %705 = vst.msk [vmem:[%s175 + $0x40] sm:$0xff] %vm696, %v688
      %706 = vst.msk [vmem:[%s175 + $0x48] sm:$0xff] %vm696, %v689
      %707 = vst.msk [vmem:[%s175 + $0x50] sm:$0xff] %vm696, %v690
      %708 = vst.msk [vmem:[%s175 + $0x58] sm:$0xff] %vm696, %v691
      %709 = vst.msk [vmem:[%s175 + $0x60] sm:$0xff] %vm696, %v692
      %710 = vst.msk [vmem:[%s175 + $0x68] sm:$0xff] %vm696, %v693
      %711 = vst.msk [vmem:[%s175 + $0x70] sm:$0xff] %vm696, %v694
      %712 = vst.msk [vmem:[%s175 + $0x78] sm:$0xff] %vm696, %v695
      %s713 = smul.u32 16, %s14
      %p714 = scmp.lt.s32.totalorder %s713, 63
      %s715 = scalar_select %p714, %s713, 63
      %s716 = smul.addr %s715, 8
      %s717 = scalar_lea.vmem %s3, %s716
      // Predicated region
      $region33: #{dlinknet_forward.22} parent=31 // pred_check
        %p718 = pneg %p100
      $region34: #{dlinknet_forward.22} parent=31 // pred_check_branch
        %720 = sbr.rel (%p718) target = $region36
      $region35: #{dlinknet_forward.22} parent=31 // pred_region
        %s721 = smul.u32 16, %s14
      $region36: #{dlinknet_forward.22} parent=31 // pred_fallthru
        _
    $region32: #{dlinknet_forward.22} parent=5 // pred_fallthru
      _
    %p722 = scmp.le.s32.totalorder 2, %s9
    // Predicated region
    $region37: #{dlinknet_forward.22} parent=5 // pred_check
      %p723 = pneg %p722
    $region38: #{dlinknet_forward.22} parent=5 // pred_check_branch
      %725 = sbr.rel (%p723) target = $region40
    $region39: #{dlinknet_forward.22} parent=5 // pred_region
      %s726 = ssub.s32 %s9, 2
      // Predicated region
      $region41: #{dlinknet_forward.22} parent=39 // pred_check
        %p727 = pneg %p106
      $region42: #{dlinknet_forward.22} parent=39 // pred_check_branch
        %729 = sbr.rel (%p727) target = $region44
      $region43: #{dlinknet_forward.22} parent=39 // pred_region
        %s730 = smul.u32 16, %s15
        %p731 = scmp.lt.s32.totalorder %s730, 63
        %s732 = scalar_select %p731, %s730, 63
        %s733 = smul.addr %s732, 8
        %s734 = scalar_lea.vmem %s3, %s733
      $region44: #{dlinknet_forward.22} parent=39 // pred_fallthru
        _
    $region40: #{dlinknet_forward.22} parent=5 // pred_fallthru
      _
  $region6: #{dlinknet_forward.22} parent=0 // loop_footer
    %s13 = sadd.s32 1, %s9
  $region7: #{dlinknet_forward.22} parent=0 // loop_footer_branch
    %8 = sbr.rel target = $region3
  $region8: #{dlinknet_forward.22} parent=0 // loop_exit
    _

// kernel: dlinknet_forward.23
$region0: #{dlinknet_forward.23}
  #allocation0 [shape = 'u32[]', space=smem, size = 0x4, offset = 0x4, fixed_abs, tag = 'smem constant byte address 0x4 - core index']
  #allocation1 [shape = 'u32[72,128]{1,0:T(1,128)}', space=vmem, size = 0x9000, scoped, tag = 'internal scratch']
  %s0 = inlined_call_operand.vmem [shape: bf16[512,384], index: 0, kind: input, shape index: {}]
  %s1 = inlined_call_operand.vmem [shape: bf16[384,8], index: 1, kind: input, shape index: {}]
  %s2 = inlined_call_operand.vmem [shape: f32[1,8], index: 2, kind: input, shape index: {}]
  %s3 = inlined_call_operand.vmem [shape: f32[512,8], index: 3, kind: output, shape index: {}]
  %s4 = sld [smem:[#allocation0]]
  $region45: #{dlinknet_forward.23} parent=0
    _
  %s6 = ssub.s32 1, %s4
  %s7 = scalar_select 0, %s6, %s4
  loop: start=0, step=1, limit=6
  $region2: #{dlinknet_forward.23} parent=0 // loop_pre_header
    _
  $region3: #{dlinknet_forward.23} parent=0 // loop_header
    %s9 = sphi 0, %s13
    %p10 = scmp.ge.s32.totalorder %s9, 6
    %s19 = sphi 0, %s21
    %s22 = sphi 0, %s19
    %s23 = sphi 0, %s22
    %s39 = sphi 0, %s23
    %s43 = sphi 0, %s43
    %s45 = sphi 0, %s43
    %s46 = sphi 0, %s45
    %s60 = sphi 0, %s46
    %s64 = sphi 0, %s64
    %s66 = sphi 0, %s64
    %s67 = sphi 0, %s66
    %s81 = sphi 0, %s67
    %s87 = sphi 0, %s89
    %s90 = sphi 0, %s87
    %s91 = sphi 0, %s90
    %s107 = sphi 0, %s91
  $region4: #{dlinknet_forward.23} parent=0 // loop_header_branch
    %12 = sbr.rel (%p10) target = $region8
  $region5: #{dlinknet_forward.23} parent=0 // loop_body
    %s14 = ssub.s32 %s9, 1
    %s15 = ssub.s32 %s9, 2
    %s16 = sadd.s32 %s9, 1
    %s17 = ssub.s32 %s9, %s16
    %p18 = scmp.eq.s32.totalorder %s17, 0
    %s20 = sadd.s32 %s19, 1
    %s21 = scalar_select %p18, %s19, %s20
    %p24 = pneg %p18
    %p25 = scmp.eq.s32.totalorder %s9, 3
    %p26 = por %p24, %p25
    %p27 = scmp.ne.s32.totalorder %s19, %s22
    %p28 = scmp.eq.s32.totalorder %s9, 0
    %p29 = por %p27, %p28
    %p30 = scmp.ne.s32.totalorder %s19, %s22
    %p31 = scmp.eq.s32.totalorder %s14, 3
    %p32 = por %p30, %p31
    %p33 = scmp.ne.s32.totalorder %s22, %s23
    %p34 = scmp.eq.s32.totalorder %s14, 0
    %p35 = por %p33, %p34
    %p36 = scmp.ne.s32.totalorder %s22, %s23
    %p37 = scmp.eq.s32.totalorder %s15, 3
    %p38 = por %p36, %p37
    %p40 = scmp.ne.s32.totalorder %s23, %s39
    %p41 = scmp.eq.s32.totalorder %s15, 0
    %p42 = por %p40, %p41
    %s44 = sadd.s32 %s43, 1
    %p47 = scmp.eq.s32.totalorder %s9, 3
    %p48 = scmp.ne.s32.totalorder %s43, %s45
    %p49 = scmp.eq.s32.totalorder %s9, 0
    %p50 = por %p48, %p49
    %p51 = scmp.ne.s32.totalorder %s43, %s45
    %p52 = scmp.eq.s32.totalorder %s14, 3
    %p53 = por %p51, %p52
    %p54 = scmp.ne.s32.totalorder %s45, %s46
    %p55 = scmp.eq.s32.totalorder %s14, 0
    %p56 = por %p54, %p55
    %p57 = scmp.ne.s32.totalorder %s45, %s46
    %p58 = scmp.eq.s32.totalorder %s15, 3
    %p59 = por %p57, %p58
    %p61 = scmp.ne.s32.totalorder %s46, %s60
    %p62 = scmp.eq.s32.totalorder %s15, 0
    %p63 = por %p61, %p62
    %s65 = sadd.s32 %s64, 1
    %p68 = scmp.eq.s32.totalorder %s9, 3
    %p69 = scmp.ne.s32.totalorder %s64, %s66
    %p70 = scmp.eq.s32.totalorder %s9, 0
    %p71 = por %p69, %p70
    %p72 = scmp.ne.s32.totalorder %s64, %s66
    %p73 = scmp.eq.s32.totalorder %s14, 3
    %p74 = por %p72, %p73
    %p75 = scmp.ne.s32.totalorder %s66, %s67
    %p76 = scmp.eq.s32.totalorder %s14, 0
    %p77 = por %p75, %p76
    %p78 = scmp.ne.s32.totalorder %s66, %s67
    %p79 = scmp.eq.s32.totalorder %s15, 3
    %p80 = por %p78, %p79
    %p82 = scmp.ne.s32.totalorder %s67, %s81
    %p83 = scmp.eq.s32.totalorder %s15, 0
    %p84 = por %p82, %p83
    %s85 = ssub.s32 %s9, %s16
    %p86 = scmp.eq.s32.totalorder %s85, 0
    %s88 = sadd.s32 %s87, 1
    %s89 = scalar_select %p86, %s87, %s88
    %p92 = pneg %p86
    %p93 = scmp.eq.s32.totalorder %s9, 3
    %p94 = por %p92, %p93
    %p95 = scmp.ne.s32.totalorder %s87, %s90
    %p96 = scmp.eq.s32.totalorder %s9, 0
    %p97 = por %p95, %p96
    %p98 = scmp.ne.s32.totalorder %s87, %s90
    %p99 = scmp.eq.s32.totalorder %s14, 3
    %p100 = por %p98, %p99
    %p101 = scmp.ne.s32.totalorder %s90, %s91
    %p102 = scmp.eq.s32.totalorder %s14, 0
    %p103 = por %p101, %p102
    %p104 = scmp.ne.s32.totalorder %s90, %s91
    %p105 = scmp.eq.s32.totalorder %s15, 3
    %p106 = por %p104, %p105
    %p108 = scmp.ne.s32.totalorder %s91, %s107
    %p109 = scmp.eq.s32.totalorder %s15, 0
    %p110 = por %p108, %p109
    %p111 = scmp.le.s32.totalorder 1, %s9
    %p112 = scmp.lt.s32.totalorder %s9, 5
    %p113 = pnand %p111, %p112
    %p114 = pneg %p113
    // Predicated region
    $region9: #{dlinknet_forward.23} parent=5 // pred_check
      _
    $region10: #{dlinknet_forward.23} parent=5 // pred_check_branch
      %116 = sbr.rel (%p113) target = $region12
    $region11: #{dlinknet_forward.23} parent=5 // pred_region
      %s117 = ssub.s32 %s9, 1
      // Predicated region
      $region13: #{dlinknet_forward.23} parent=11 // pred_check
        %p118 = pneg %p56
      $region14: #{dlinknet_forward.23} parent=11 // pred_check_branch
        %120 = sbr.rel (%p118) target = $region16
      $region15: #{dlinknet_forward.23} parent=11 // pred_region
        _
      $region16: #{dlinknet_forward.23} parent=11 // pred_fallthru
        _
      // Predicated region
      $region17: #{dlinknet_forward.23} parent=11 // pred_check
        %p121 = pneg %p77
      $region18: #{dlinknet_forward.23} parent=11 // pred_check_branch
        %123 = sbr.rel (%p121) target = $region20
      $region19: #{dlinknet_forward.23} parent=11 // pred_region
        _
      $region20: #{dlinknet_forward.23} parent=11 // pred_fallthru
        _
    $region12: #{dlinknet_forward.23} parent=5 // pred_fallthru
      _
    %p124 = scmp.lt.s32.totalorder %s9, 4
    // Predicated region
    $region21: #{dlinknet_forward.23} parent=5 // pred_check
      %p125 = pneg %p124
    $region22: #{dlinknet_forward.23} parent=5 // pred_check_branch
      %127 = sbr.rel (%p125) target = $region24
    $region23: #{dlinknet_forward.23} parent=5 // pred_region
      // Predicated region
      $region25: #{dlinknet_forward.23} parent=23 // pred_check
        %p128 = pneg %p29
      $region26: #{dlinknet_forward.23} parent=23 // pred_check_branch
        %130 = sbr.rel (%p128) target = $region28
      $region27: #{dlinknet_forward.23} parent=23 // pred_region
        %s131 = smul.u32 16, %s9
        %p132 = scmp.lt.s32.totalorder %s131, 63
        %s133 = scalar_select %p132, %s131, 63
        %s134 = smul.addr %s133, 3
        %s135 = smul.addr %s134, 4
        %s136 = scalar_lea.vmem %s0, %s135
        %s137 = smul.u32 16, %s9
      $region28: #{dlinknet_forward.23} parent=23 // pred_fallthru
        _
    $region24: #{dlinknet_forward.23} parent=5 // pred_fallthru
      _
    %p138 = scmp.le.s32.totalorder 1, %s9
    %p139 = scmp.lt.s32.totalorder %s9, 5
    %p140 = pnand %p138, %p139
    %p141 = pneg %p140
    // Predicated region
    $region29: #{dlinknet_forward.23} parent=5 // pred_check
      _
    $region30: #{dlinknet_forward.23} parent=5 // pred_check_branch
      %143 = sbr.rel (%p140) target = $region32
    $region31: #{dlinknet_forward.23} parent=5 // pred_region
      %s144 = ssub.s32 %s9, 1
      %s145 = smul.u32 16, %s14
      %p146 = scmp.lt.s32.totalorder %s145, 63
      %s147 = scalar_select %p146, %s145, 63
      %s148 = smul.addr %s147, 3
      %s149 = smul.addr %s148, 4
      %s150 = scalar_lea.vmem %s0, %s149
      %p151 = pneg %p35
      %p152 = pneg %p32
      %p153 = pneg %p56
      %p154 = pneg %p53
      %p155 = pneg %p77
      %p156 = pneg %p74
      %p157 = pneg %p103
      %p158 = pneg %p100
      %s159 = smul.u32 16, %s14
      %p160 = scmp.lt.s32.totalorder %s159, 63
      %s161 = scalar_select %p160, %s159, 63
      %s162 = smul.addr %s161, 8
      %s163 = scalar_lea.vmem %s3, %s162
      %s164 = smul.u32 16, %s14
      %p165 = scmp.lt.s32.totalorder %s164, 63
      %s166 = scalar_select %p165, %s164, 63
      %s167 = smul.addr %s166, 3
      %s168 = smul.addr %s167, 4
      %s169 = scalar_lea.vmem %s0, %s168
      %s170 = smul.u32 16, %s14
      %s171 = smul.u32 16, %s14
      %p172 = scmp.lt.s32.totalorder %s171, 63
      %s173 = scalar_select %p172, %s171, 63
      %s174 = smul.addr %s173, 8
      %s175 = scalar_lea.vmem %s3, %s174
      %s176 = smul.u32 16, %s14
      %v177 = vld [vmem:[%s169] sm:$0xff]
      %v178 = vld [vmem:[%s169 + $0x8] sm:$0xf]
      %v179 = vld [vmem:[%s169 + $0xc] sm:$0xff]
      %v180 = vld [vmem:[%s169 + $0x14] sm:$0xf]
      %v181 = vld [vmem:[%s169 + $0x18] sm:$0xff]
      %v182 = vld [vmem:[%s169 + $0x20] sm:$0xf]
      %v183 = vld [vmem:[%s169 + $0x24] sm:$0xff]
      %v184 = vld [vmem:[%s169 + $0x2c] sm:$0xf]
      %v185 = vld [vmem:[%s169 + $0x30] sm:$0xff]
      %v186 = vld [vmem:[%s169 + $0x38] sm:$0xf]
      %v187 = vld [vmem:[%s169 + $0x3c] sm:$0xff]
      %v188 = vld [vmem:[%s169 + $0x44] sm:$0xf]
      %v189 = vld [vmem:[%s169 + $0x48] sm:$0xff]
      %v190 = vld [vmem:[%s169 + $0x50] sm:$0xf]
      %v191 = vld [vmem:[%s169 + $0x54] sm:$0xff]
      %v192 = vld [vmem:[%s169 + $0x5c] sm:$0xf]
      %v193 = vld [vmem:[%s169 + $0x60] sm:$0xff]
      %v194 = vld [vmem:[%s169 + $0x68] sm:$0xf]
      %v195 = vld [vmem:[%s169 + $0x6c] sm:$0xff]
      %v196 = vld [vmem:[%s169 + $0x74] sm:$0xf]
      %v197 = vld [vmem:[%s169 + $0x78] sm:$0xff]
      %v198 = vld [vmem:[%s169 + $0x80] sm:$0xf]
      %v199 = vld [vmem:[%s169 + $0x84] sm:$0xff]
      %v200 = vld [vmem:[%s169 + $0x8c] sm:$0xf]
      %v201 = vld [vmem:[%s169 + $0x90] sm:$0xff]
      %v202 = vld [vmem:[%s169 + $0x98] sm:$0xf]
      %v203 = vld [vmem:[%s169 + $0x9c] sm:$0xff]
      %v204 = vld [vmem:[%s169 + $0xa4] sm:$0xf]
      %v205 = vld [vmem:[%s169 + $0xa8] sm:$0xff]
      %v206 = vld [vmem:[%s169 + $0xb0] sm:$0xf]
      %v207 = vld [vmem:[%s169 + $0xb4] sm:$0xff]
      %v208 = vld [vmem:[%s169 + $0xbc] sm:$0xf]
      %v209 = vld [vmem:[%s1] sm:$0xf]
      %v210 = vld [vmem:[%s1 + $0x4] sm:$0xf]
      %v211 = vld [vmem:[%s1 + $0x8] sm:$0xf]
      %v212 = vld [vmem:[%s1 + $0xc] sm:$0xf]
      %v213 = vld [vmem:[%s1 + $0x10] sm:$0xf]
      %v214 = vld [vmem:[%s1 + $0x14] sm:$0xf]
      %v215 = vld [vmem:[%s1 + $0x18] sm:$0xf]
      %v216 = vld [vmem:[%s1 + $0x1c] sm:$0xf]
      %v217 = vld [vmem:[%s1 + $0x20] sm:$0xf]
      %v218 = vld [vmem:[%s1 + $0x24] sm:$0xf]
      %v219 = vld [vmem:[%s1 + $0x28] sm:$0xf]
      %v220 = vld [vmem:[%s1 + $0x2c] sm:$0xf]
      %v221 = vld [vmem:[%s1 + $0x30] sm:$0xf]
      %v222 = vld [vmem:[%s1 + $0x34] sm:$0xf]
      %v223 = vld [vmem:[%s1 + $0x38] sm:$0xf]
      %v224 = vld [vmem:[%s1 + $0x3c] sm:$0xf]
      %v225 = vld [vmem:[%s1 + $0x40] sm:$0xf]
      %v226 = vld [vmem:[%s1 + $0x44] sm:$0xf]
      %v227 = vld [vmem:[%s1 + $0x48] sm:$0xf]
      %v228 = vld [vmem:[%s1 + $0x4c] sm:$0xf]
      %v229 = vld [vmem:[%s1 + $0x50] sm:$0xf]
      %v230 = vld [vmem:[%s1 + $0x54] sm:$0xf]
      %v231 = vld [vmem:[%s1 + $0x58] sm:$0xf]
      %v232 = vld [vmem:[%s1 + $0x5c] sm:$0xf]
      %v233 = vld [vmem:[%s1 + $0x60] sm:$0xf]
      %v234 = vld [vmem:[%s1 + $0x64] sm:$0xf]
      %v235 = vld [vmem:[%s1 + $0x68] sm:$0xf]
      %v236 = vld [vmem:[%s1 + $0x6c] sm:$0xf]
      %v237 = vld [vmem:[%s1 + $0x70] sm:$0xf]
      %v238 = vld [vmem:[%s1 + $0x74] sm:$0xf]
      %v239 = vld [vmem:[%s1 + $0x78] sm:$0xf]
      %v240 = vld [vmem:[%s1 + $0x7c] sm:$0xf]
      %v241 = vld [vmem:[%s1 + $0x80] sm:$0xf]
      %v242 = vld [vmem:[%s1 + $0x84] sm:$0xf]
      %v243 = vld [vmem:[%s1 + $0x88] sm:$0xf]
      %v244 = vld [vmem:[%s1 + $0x8c] sm:$0xf]
      %v245 = vld [vmem:[%s1 + $0x90] sm:$0xf]
      %v246 = vld [vmem:[%s1 + $0x94] sm:$0xf]
      %v247 = vld [vmem:[%s1 + $0x98] sm:$0xf]
      %v248 = vld [vmem:[%s1 + $0x9c] sm:$0xf]
      %v249 = vld [vmem:[%s1 + $0xa0] sm:$0xf]
      %v250 = vld [vmem:[%s1 + $0xa4] sm:$0xf]
      %v251 = vld [vmem:[%s1 + $0xa8] sm:$0xf]
      %v252 = vld [vmem:[%s1 + $0xac] sm:$0xf]
      %v253 = vld [vmem:[%s1 + $0xb0] sm:$0xf]
      %v254 = vld [vmem:[%s1 + $0xb4] sm:$0xf]
      %v255 = vld [vmem:[%s1 + $0xb8] sm:$0xf]
      %v256 = vld [vmem:[%s1 + $0xbc] sm:$0xf]
      %v257 = vld [vmem:[%s2] sm:$0x1]
      %v259 = vperm.slane %v257, 0
      %v293 = vunpack.c.l.b16 %v177
      %v294 = vunpack.c.h.b16 %v177
      %v295 = vunpack.c.l.b16 %v178
      %v296 = vunpack.c.l.b16 %v179
      %v297 = vunpack.c.h.b16 %v179
      %v298 = vunpack.c.l.b16 %v180
      %v299 = vunpack.c.l.b16 %v181
      %v300 = vunpack.c.h.b16 %v181
      %v301 = vunpack.c.l.b16 %v182
      %v302 = vunpack.c.l.b16 %v183
      %v303 = vunpack.c.h.b16 %v183
      %v304 = vunpack.c.l.b16 %v184
      %v305 = vunpack.c.l.b16 %v185
      %v306 = vunpack.c.h.b16 %v185
      %v307 = vunpack.c.l.b16 %v186
      %v308 = vunpack.c.l.b16 %v187
      %v309 = vunpack.c.h.b16 %v187
      %v310 = vunpack.c.l.b16 %v188
      %v311 = vunpack.c.l.b16 %v189
      %v312 = vunpack.c.h.b16 %v189
      %v313 = vunpack.c.l.b16 %v190
      %v314 = vunpack.c.l.b16 %v191
      %v315 = vunpack.c.h.b16 %v191
      %v316 = vunpack.c.l.b16 %v192
      %v317 = vunpack.c.l.b16 %v193
      %v318 = vunpack.c.h.b16 %v193
      %v319 = vunpack.c.l.b16 %v194
      %v320 = vunpack.c.l.b16 %v195
      %v321 = vunpack.c.h.b16 %v195
      %v322 = vunpack.c.l.b16 %v196
      %v323 = vunpack.c.l.b16 %v197
      %v324 = vunpack.c.h.b16 %v197
      %v325 = vunpack.c.l.b16 %v198
      %v326 = vunpack.c.l.b16 %v199
      %v327 = vunpack.c.h.b16 %v199
      %v328 = vunpack.c.l.b16 %v200
      %v329 = vunpack.c.l.b16 %v201
      %v330 = vunpack.c.h.b16 %v201
      %v331 = vunpack.c.l.b16 %v202
      %v332 = vunpack.c.l.b16 %v203
      %v333 = vunpack.c.h.b16 %v203
      %v334 = vunpack.c.l.b16 %v204
      %v335 = vunpack.c.l.b16 %v205
      %v336 = vunpack.c.h.b16 %v205
      %v337 = vunpack.c.l.b16 %v206
      %v338 = vunpack.c.l.b16 %v207
      %v339 = vunpack.c.h.b16 %v207
      %v340 = vunpack.c.l.b16 %v208
      %v341 = vpack.c.b16 %v296, %v293
      %v342 = vpack.c.b16 %v297, %v294
      %v343 = vpack.c.b16 %v298, %v295
      %v344 = vpack.c.b16 %v302, %v299
      %v345 = vpack.c.b16 %v303, %v300
      %v346 = vpack.c.b16 %v304, %v301
      %v347 = vpack.c.b16 %v308, %v305
      %v348 = vpack.c.b16 %v309, %v306
      %v349 = vpack.c.b16 %v310, %v307
      %v350 = vpack.c.b16 %v314, %v311
      %v351 = vpack.c.b16 %v315, %v312
      %v352 = vpack.c.b16 %v316, %v313
      %v353 = vpack.c.b16 %v320, %v317
      %v354 = vpack.c.b16 %v321, %v318
      %v355 = vpack.c.b16 %v322, %v319
      %v356 = vpack.c.b16 %v326, %v323
      %v357 = vpack.c.b16 %v327, %v324
      %v358 = vpack.c.b16 %v328, %v325
      %v359 = vpack.c.b16 %v332, %v329
      %v360 = vpack.c.b16 %v333, %v330
      %v361 = vpack.c.b16 %v334, %v331
      %v362 = vpack.c.b16 %v338, %v335
      %v363 = vpack.c.b16 %v339, %v336
      %v364 = vpack.c.b16 %v340, %v337
      %v437 = vunpack.c.l.b16 %v209
      %v438 = vunpack.c.l.b16 %v210
      %v439 = vunpack.c.l.b16 %v211
      %v440 = vunpack.c.l.b16 %v212
      %v441 = vunpack.c.l.b16 %v213
      %v442 = vunpack.c.l.b16 %v214
      %v443 = vunpack.c.l.b16 %v215
      %v444 = vunpack.c.l.b16 %v216
      %v445 = vunpack.c.l.b16 %v217
      %v446 = vunpack.c.l.b16 %v218
      %v447 = vunpack.c.l.b16 %v219
      %v448 = vunpack.c.l.b16 %v220
      %v449 = vunpack.c.l.b16 %v221
      %v450 = vunpack.c.l.b16 %v222
      %v451 = vunpack.c.l.b16 %v223
      %v452 = vunpack.c.l.b16 %v224
      %v453 = vunpack.c.l.b16 %v225
      %v454 = vunpack.c.l.b16 %v226
      %v455 = vunpack.c.l.b16 %v227
      %v456 = vunpack.c.l.b16 %v228
      %v457 = vunpack.c.l.b16 %v229
      %v458 = vunpack.c.l.b16 %v230
      %v459 = vunpack.c.l.b16 %v231
      %v460 = vunpack.c.l.b16 %v232
      %v461 = vunpack.c.l.b16 %v233
      %v462 = vunpack.c.l.b16 %v234
      %v463 = vunpack.c.l.b16 %v235
      %v464 = vunpack.c.l.b16 %v236
      %v465 = vunpack.c.l.b16 %v237
      %v466 = vunpack.c.l.b16 %v238
      %v467 = vunpack.c.l.b16 %v239
      %v468 = vunpack.c.l.b16 %v240
      %v469 = vunpack.c.l.b16 %v241
      %v470 = vunpack.c.l.b16 %v242
      %v471 = vunpack.c.l.b16 %v243
      %v472 = vunpack.c.l.b16 %v244
      %v473 = vunpack.c.l.b16 %v245
      %v474 = vunpack.c.l.b16 %v246
      %v475 = vunpack.c.l.b16 %v247
      %v476 = vunpack.c.l.b16 %v248
      %v477 = vunpack.c.l.b16 %v249
      %v478 = vunpack.c.l.b16 %v250
      %v479 = vunpack.c.l.b16 %v251
      %v480 = vunpack.c.l.b16 %v252
      %v481 = vunpack.c.l.b16 %v253
      %v482 = vunpack.c.l.b16 %v254
      %v483 = vunpack.c.l.b16 %v255
      %v484 = vunpack.c.l.b16 %v256
      %v485 = vpack.c.b16 %v438, %v437
      %v486 = vpack.c.b16 %v440, %v439
      %v487 = vpack.c.b16 %v442, %v441
      %v488 = vpack.c.b16 %v444, %v443
      %v489 = vpack.c.b16 %v446, %v445
      %v490 = vpack.c.b16 %v448, %v447
      %v491 = vpack.c.b16 %v450, %v449
      %v492 = vpack.c.b16 %v452, %v451
      %v493 = vpack.c.b16 %v454, %v453
      %v494 = vpack.c.b16 %v456, %v455
      %v495 = vpack.c.b16 %v458, %v457
      %v496 = vpack.c.b16 %v460, %v459
      %v497 = vpack.c.b16 %v462, %v461
      %v498 = vpack.c.b16 %v464, %v463
      %v499 = vpack.c.b16 %v466, %v465
      %v500 = vpack.c.b16 %v468, %v467
      %v501 = vpack.c.b16 %v470, %v469
      %v502 = vpack.c.b16 %v472, %v471
      %v503 = vpack.c.b16 %v474, %v473
      %v504 = vpack.c.b16 %v476, %v475
      %v505 = vpack.c.b16 %v478, %v477
      %v506 = vpack.c.b16 %v480, %v479
      %v507 = vpack.c.b16 %v482, %v481
      %v508 = vpack.c.b16 %v484, %v483
      %533 = vmatpush.bf16.msra.mxu0 %v492
      %534 = vmatpush.bf16.msra.mxu0 %v491
      %535 = vmatpush.bf16.msra.mxu0 %v490
      %536 = vmatpush.bf16.msra.mxu0 %v489
      %537 = vmatpush.bf16.msra.mxu0 %v488
      %538 = vmatpush.bf16.msra.mxu0 %v487
      %539 = vmatpush.bf16.msra.mxu0 %v486
      %540 = vmatpush.bf16.msra.mxu0 %v485
      %541 = vmatmul.bf16.gmra.mxu0 %v341
      %v542 = vpop.f32.mrf.mxu0
      %v543 = vadd.f32 %v259, %v542
      %v544 = vpop.f32.mrf.mxu0
      %v545 = vadd.f32 %v259, %v544
      %546 = vmatmul.bf16.gmra.mxu0 %v344
      %v547 = vpop.f32.mrf.mxu0
      %v548 = vadd.f32 %v259, %v547
      %v549 = vpop.f32.mrf.mxu0
      %v550 = vadd.f32 %v259, %v549
      %551 = vmatmul.bf16.gmra.mxu0 %v347
      %v552 = vpop.f32.mrf.mxu0
      %v553 = vadd.f32 %v259, %v552
      %v554 = vpop.f32.mrf.mxu0
      %v555 = vadd.f32 %v259, %v554
      %556 = vmatmul.bf16.gmra.mxu0 %v350
      %v557 = vpop.f32.mrf.mxu0
      %v558 = vadd.f32 %v259, %v557
      %v559 = vpop.f32.mrf.mxu0
      %v560 = vadd.f32 %v259, %v559
      %561 = vmatmul.bf16.gmra.mxu0 %v353
      %v562 = vpop.f32.mrf.mxu0
      %v563 = vadd.f32 %v259, %v562
      %v564 = vpop.f32.mrf.mxu0
      %v565 = vadd.f32 %v259, %v564
      %566 = vmatmul.bf16.gmra.mxu0 %v356
      %v567 = vpop.f32.mrf.mxu0
      %v568 = vadd.f32 %v259, %v567
      %v569 = vpop.f32.mrf.mxu0
      %v570 = vadd.f32 %v259, %v569
      %571 = vmatmul.bf16.gmra.mxu0 %v359
      %v572 = vpop.f32.mrf.mxu0
      %v573 = vadd.f32 %v259, %v572
      %v574 = vpop.f32.mrf.mxu0
      %v575 = vadd.f32 %v259, %v574
      %576 = vmatmul.bf16.gmra.mxu0 %v362
      %v577 = vpop.f32.mrf.mxu0
      %v578 = vadd.f32 %v259, %v577
      %v579 = vpop.f32.mrf.mxu0
      %v580 = vadd.f32 %v259, %v579
      %581 = vdwg.mxu0
      %582 = vmatpush.bf16.msra.mxu0 %v500
      %583 = vmatpush.bf16.msra.mxu0 %v499
      %584 = vmatpush.bf16.msra.mxu0 %v498
      %585 = vmatpush.bf16.msra.mxu0 %v497
      %586 = vmatpush.bf16.msra.mxu0 %v496
      %587 = vmatpush.bf16.msra.mxu0 %v495
      %588 = vmatpush.bf16.msra.mxu0 %v494
      %589 = vmatpush.bf16.msra.mxu0 %v493
      %590 = vmatmul.bf16.gmra.mxu0 %v342
      %v591 = vpop.f32.mrf.mxu0
      %v592 = vadd.f32 %v543, %v591
      %v593 = vpop.f32.mrf.mxu0
      %v594 = vadd.f32 %v545, %v593
      %595 = vmatmul.bf16.gmra.mxu0 %v345
      %v596 = vpop.f32.mrf.mxu0
      %v597 = vadd.f32 %v548, %v596
      %v598 = vpop.f32.mrf.mxu0
      %v599 = vadd.f32 %v550, %v598
      %600 = vmatmul.bf16.gmra.mxu0 %v348
      %v601 = vpop.f32.mrf.mxu0
      %v602 = vadd.f32 %v553, %v601
      %v603 = vpop.f32.mrf.mxu0
      %v604 = vadd.f32 %v555, %v603
      %605 = vmatmul.bf16.gmra.mxu0 %v351
      %v606 = vpop.f32.mrf.mxu0
      %v607 = vadd.f32 %v558, %v606
      %v608 = vpop.f32.mrf.mxu0
      %v609 = vadd.f32 %v560, %v608
      %610 = vmatmul.bf16.gmra.mxu0 %v354
      %v611 = vpop.f32.mrf.mxu0
      %v612 = vadd.f32 %v563, %v611
      %v613 = vpop.f32.mrf.mxu0
      %v614 = vadd.f32 %v565, %v613
      %615 = vmatmul.bf16.gmra.mxu0 %v357
      %v616 = vpop.f32.mrf.mxu0
      %v617 = vadd.f32 %v568, %v616
      %v618 = vpop.f32.mrf.mxu0
      %v619 = vadd.f32 %v570, %v618
      %620 = vmatmul.bf16.gmra.mxu0 %v360
      %v621 = vpop.f32.mrf.mxu0
      %v622 = vadd.f32 %v573, %v621
      %v623 = vpop.f32.mrf.mxu0
      %v624 = vadd.f32 %v575, %v623
      %625 = vmatmul.bf16.gmra.mxu0 %v363
      %v626 = vpop.f32.mrf.mxu0
      %v627 = vadd.f32 %v578, %v626
      %v628 = vpop.f32.mrf.mxu0
      %v629 = vadd.f32 %v580, %v628
      %630 = vdwg.mxu0
      %631 = vmatpush.bf16.msra.mxu0 %v508
      %632 = vmatpush.bf16.msra.mxu0 %v507
      %633 = vmatpush.bf16.msra.mxu0 %v506
      %634 = vmatpush.bf16.msra.mxu0 %v505
      %635 = vmatpush.bf16.msra.mxu0 %v504
      %636 = vmatpush.bf16.msra.mxu0 %v503
      %637 = vmatpush.bf16.msra.mxu0 %v502
      %638 = vmatpush.bf16.msra.mxu0 %v501
      %639 = vmatmul.bf16.gmra.mxu0 %v343
      %v640 = vpop.f32.mrf.mxu0
      %v641 = vadd.f32 %v592, %v640
      %v642 = vpop.f32.mrf.mxu0
      %v643 = vadd.f32 %v594, %v642
      %644 = vmatmul.bf16.gmra.mxu0 %v346
      %v645 = vpop.f32.mrf.mxu0
      %v646 = vadd.f32 %v597, %v645
      %v647 = vpop.f32.mrf.mxu0
      %v648 = vadd.f32 %v599, %v647
      %649 = vmatmul.bf16.gmra.mxu0 %v349
      %v650 = vpop.f32.mrf.mxu0
      %v651 = vadd.f32 %v602, %v650
      %v652 = vpop.f32.mrf.mxu0
      %v653 = vadd.f32 %v604, %v652
      %654 = vmatmul.bf16.gmra.mxu0 %v352
      %v655 = vpop.f32.mrf.mxu0
      %v656 = vadd.f32 %v607, %v655
      %v657 = vpop.f32.mrf.mxu0
      %v658 = vadd.f32 %v609, %v657
      %659 = vmatmul.bf16.gmra.mxu0 %v355
      %v660 = vpop.f32.mrf.mxu0
      %v661 = vadd.f32 %v612, %v660
      %v662 = vpop.f32.mrf.mxu0
      %v663 = vadd.f32 %v614, %v662
      %664 = vmatmul.bf16.gmra.mxu0 %v358
      %v665 = vpop.f32.mrf.mxu0
      %v666 = vadd.f32 %v617, %v665
      %v667 = vpop.f32.mrf.mxu0
      %v668 = vadd.f32 %v619, %v667
      %669 = vmatmul.bf16.gmra.mxu0 %v361
      %v670 = vpop.f32.mrf.mxu0
      %v671 = vadd.f32 %v622, %v670
      %v672 = vpop.f32.mrf.mxu0
      %v673 = vadd.f32 %v624, %v672
      %674 = vmatmul.bf16.gmra.mxu0 %v364
      %v675 = vpop.f32.mrf.mxu0
      %v676 = vadd.f32 %v627, %v675
      %v677 = vpop.f32.mrf.mxu0
      %v678 = vadd.f32 %v629, %v677
      %679 = vdwg.mxu0
      %v680 = vsub.f32 0.0, %v641
      %v681 = vsub.f32 0.0, %v643
      %v682 = vsub.f32 0.0, %v646
      %v683 = vsub.f32 0.0, %v648
      %v684 = vsub.f32 0.0, %v651
      %v685 = vsub.f32 0.0, %v653
      %v686 = vsub.f32 0.0, %v656
      %v687 = vsub.f32 0.0, %v658
      %v688 = vsub.f32 0.0, %v661
      %v689 = vsub.f32 0.0, %v663
      %v690 = vsub.f32 0.0, %v666
      %v691 = vsub.f32 0.0, %v668
      %v692 = vsub.f32 0.0, %v671
      %v693 = vsub.f32 0.0, %v673
      %v694 = vsub.f32 0.0, %v676
      %v695 = vsub.f32 0.0, %v678
      %v696 = vmul.f32 %v680, 1.442695
      %v697 = vpow.pop %v696
      %v698 = vmul.f32 %v681, 1.442695
      %v699 = vpow.pop %v698
      %v700 = vmul.f32 %v682, 1.442695
      %v701 = vpow.pop %v700
      %v702 = vmul.f32 %v683, 1.442695
      %v703 = vpow.pop %v702
      %v704 = vmul.f32 %v684, 1.442695
      %v705 = vpow.pop %v704
      %v706 = vmul.f32 %v685, 1.442695
      %v707 = vpow.pop %v706
      %v708 = vmul.f32 %v686, 1.442695
      %v709 = vpow.pop %v708
      %v710 = vmul.f32 %v687, 1.442695
      %v711 = vpow.pop %v710
      %v712 = vmul.f32 %v688, 1.442695
      %v713 = vpow.pop %v712
      %v714 = vmul.f32 %v689, 1.442695
      %v715 = vpow.pop %v714
      %v716 = vmul.f32 %v690, 1.442695
      %v717 = vpow.pop %v716
      %v718 = vmul.f32 %v691, 1.442695
      %v719 = vpow.pop %v718
      %v720 = vmul.f32 %v692, 1.442695
      %v721 = vpow.pop %v720
      %v722 = vmul.f32 %v693, 1.442695
      %v723 = vpow.pop %v722
      %v724 = vmul.f32 %v694, 1.442695
      %v725 = vpow.pop %v724
      %v726 = vmul.f32 %v695, 1.442695
      %v727 = vpow.pop %v726
      %v728 = vadd.f32 %v697, 1.0
      %v729 = vadd.f32 %v699, 1.0
      %v730 = vadd.f32 %v701, 1.0
      %v731 = vadd.f32 %v703, 1.0
      %v732 = vadd.f32 %v705, 1.0
      %v733 = vadd.f32 %v707, 1.0
      %v734 = vadd.f32 %v709, 1.0
      %v735 = vadd.f32 %v711, 1.0
      %v736 = vadd.f32 %v713, 1.0
      %v737 = vadd.f32 %v715, 1.0
      %v738 = vadd.f32 %v717, 1.0
      %v739 = vadd.f32 %v719, 1.0
      %v740 = vadd.f32 %v721, 1.0
      %v741 = vadd.f32 %v723, 1.0
      %v742 = vadd.f32 %v725, 1.0
      %v743 = vadd.f32 %v727, 1.0
      %v744 = vrcp.pop %v728
      %v745 = vrcp.pop %v729
      %v746 = vrcp.pop %v730
      %v747 = vrcp.pop %v731
      %v748 = vrcp.pop %v732
      %v749 = vrcp.pop %v733
      %v750 = vrcp.pop %v734
      %v751 = vrcp.pop %v735
      %v752 = vrcp.pop %v736
      %v753 = vrcp.pop %v737
      %v754 = vrcp.pop %v738
      %v755 = vrcp.pop %v739
      %v756 = vrcp.pop %v740
      %v757 = vrcp.pop %v741
      %v758 = vrcp.pop %v742
      %v759 = vrcp.pop %v743
      %v760 = vmax.f32 %v744, 0.0
      %v761 = vmax.f32 %v745, 0.0
      %v762 = vmax.f32 %v746, 0.0
      %v763 = vmax.f32 %v747, 0.0
      %v764 = vmax.f32 %v748, 0.0
      %v765 = vmax.f32 %v749, 0.0
      %v766 = vmax.f32 %v750, 0.0
      %v767 = vmax.f32 %v751, 0.0
      %v768 = vmax.f32 %v752, 0.0
      %v769 = vmax.f32 %v753, 0.0
      %v770 = vmax.f32 %v754, 0.0
      %v771 = vmax.f32 %v755, 0.0
      %v772 = vmax.f32 %v756, 0.0
      %v773 = vmax.f32 %v757, 0.0
      %v774 = vmax.f32 %v758, 0.0
      %v775 = vmax.f32 %v759, 0.0
      %v776 = vmin.f32 %v760, 1.0
      %v777 = vmin.f32 %v761, 1.0
      %v778 = vmin.f32 %v762, 1.0
      %v779 = vmin.f32 %v763, 1.0
      %v780 = vmin.f32 %v764, 1.0
      %v781 = vmin.f32 %v765, 1.0
      %v782 = vmin.f32 %v766, 1.0
      %v783 = vmin.f32 %v767, 1.0
      %v784 = vmin.f32 %v768, 1.0
      %v785 = vmin.f32 %v769, 1.0
      %v786 = vmin.f32 %v770, 1.0
      %v787 = vmin.f32 %v771, 1.0
      %v788 = vmin.f32 %v772, 1.0
      %v789 = vmin.f32 %v773, 1.0
      %v790 = vmin.f32 %v774, 1.0
      %v791 = vmin.f32 %v775, 1.0
      %vm792 = vcmask 64512
      %793 = vst.msk [vmem:[%s175] sm:$0xff] %vm792, %v776
      %794 = vst.msk [vmem:[%s175 + $0x8] sm:$0xff] %vm792, %v777
      %795 = vst.msk [vmem:[%s175 + $0x10] sm:$0xff] %vm792, %v778
      %796 = vst.msk [vmem:[%s175 + $0x18] sm:$0xff] %vm792, %v779
      %797 = vst.msk [vmem:[%s175 + $0x20] sm:$0xff] %vm792, %v780
      %798 = vst.msk [vmem:[%s175 + $0x28] sm:$0xff] %vm792, %v781
      %799 = vst.msk [vmem:[%s175 + $0x30] sm:$0xff] %vm792, %v782
      %800 = vst.msk [vmem:[%s175 + $0x38] sm:$0xff] %vm792, %v783
      %801 = vst.msk [vmem:[%s175 + $0x40] sm:$0xff] %vm792, %v784
      %802 = vst.msk [vmem:[%s175 + $0x48] sm:$0xff] %vm792, %v785
      %803 = vst.msk [vmem:[%s175 + $0x50] sm:$0xff] %vm792, %v786
      %804 = vst.msk [vmem:[%s175 + $0x58] sm:$0xff] %vm792, %v787
      %805 = vst.msk [vmem:[%s175 + $0x60] sm:$0xff] %vm792, %v788
      %806 = vst.msk [vmem:[%s175 + $0x68] sm:$0xff] %vm792, %v789
      %807 = vst.msk [vmem:[%s175 + $0x70] sm:$0xff] %vm792, %v790
      %808 = vst.msk [vmem:[%s175 + $0x78] sm:$0xff] %vm792, %v791
      %s809 = smul.u32 16, %s14
      %p810 = scmp.lt.s32.totalorder %s809, 63
      %s811 = scalar_select %p810, %s809, 63
      %s812 = smul.addr %s811, 8
      %s813 = scalar_lea.vmem %s3, %s812
      // Predicated region
      $region33: #{dlinknet_forward.23} parent=31 // pred_check
        %p814 = pneg %p100
      $region34: #{dlinknet_forward.23} parent=31 // pred_check_branch
        %816 = sbr.rel (%p814) target = $region36
      $region35: #{dlinknet_forward.23} parent=31 // pred_region
        %s817 = smul.u32 16, %s14
      $region36: #{dlinknet_forward.23} parent=31 // pred_fallthru
        _
    $region32: #{dlinknet_forward.23} parent=5 // pred_fallthru
      _
    %p818 = scmp.le.s32.totalorder 2, %s9
    // Predicated region
    $region37: #{dlinknet_forward.23} parent=5 // pred_check
      %p819 = pneg %p818
    $region38: #{dlinknet_forward.23} parent=5 // pred_check_branch
      %821 = sbr.rel (%p819) target = $region40
    $region39: #{dlinknet_forward.23} parent=5 // pred_region
      %s822 = ssub.s32 %s9, 2
      // Predicated region
      $region41: #{dlinknet_forward.23} parent=39 // pred_check
        %p823 = pneg %p106
      $region42: #{dlinknet_forward.23} parent=39 // pred_check_branch
        %825 = sbr.rel (%p823) target = $region44
      $region43: #{dlinknet_forward.23} parent=39 // pred_region
        %s826 = smul.u32 16, %s15
        %p827 = scmp.lt.s32.totalorder %s826, 63
        %s828 = scalar_select %p827, %s826, 63
        %s829 = smul.addr %s828, 8
        %s830 = scalar_lea.vmem %s3, %s829
      $region44: #{dlinknet_forward.23} parent=39 // pred_fallthru
        _
    $region40: #{dlinknet_forward.23} parent=5 // pred_fallthru
      _
  $region6: #{dlinknet_forward.23} parent=0 // loop_footer
    %s13 = sadd.s32 1, %s9
  $region7: #{dlinknet_forward.23} parent=0 // loop_footer_branch
    %8 = sbr.rel target = $region3
  $region8: #{dlinknet_forward.23} parent=0 // loop_exit
    _

</llo_original>
